<compile_context>
chip_gen: v5e
topology: v5e:2x2
jax: 0.10.0
libtpu: 0.0.40
codegen_flags: <defaults>
</compile_context>

<pallas_src>
import functools

import jax
import jax.numpy as jnp
from jax.experimental import pallas as pl
from jax.experimental.pallas import tpu as pltpu

LN_EPS = 1e-5  # PyTorch nn.LayerNorm default


# ---------------------------------------------------------------------------
# shared helpers
# ---------------------------------------------------------------------------
def _round_up(x, m):
    return (x + m - 1) // m * m


def _ln_silu(h, gamma_row, beta_row):
    """SiLU(LayerNorm(h)) on an f32 tile.

    One-pass statistics (sum + sum-of-squares), single rsqrt, gamma folded
    into the normalization scale so the apply is one multiply-add / element.
    """
    out_f = h.shape[-1]
    inv_n = 1.0 / out_f
    s = jnp.sum(h, axis=-1, keepdims=True)
    ssq = jnp.sum(h * h, axis=-1, keepdims=True)
    mean = s * inv_n
    var = ssq * inv_n - mean * mean
    rstd = jax.lax.rsqrt(var + LN_EPS)
    scale = gamma_row * rstd                    # (tm, out_f)
    shift = beta_row - mean * scale             # (tm, out_f)
    y = h * scale + shift
    return y * jax.nn.sigmoid(y)                # sigmoid -> EUP, mul -> VPU


def _const_spec(shape, single_buffer):
    """BlockSpec for a grid-invariant operand (weight / bias / LN params)."""
    if single_buffer:
        return pl.BlockSpec(shape, lambda i: (0, 0), pipeline_mode=pl.Buffered(1))
    return pl.BlockSpec(shape, lambda i: (0, 0))


# ---------------------------------------------------------------------------
# Kernel 1: MLPLayer  (Linear -> LayerNorm -> SiLU)
# ---------------------------------------------------------------------------
def mlp_layer_kernel(x_ref, w_ref, b_ref, g_ref, be_ref, o_ref):
    """One row-tile of SiLU(LayerNorm(x @ W + b))."""
    h = jnp.dot(x_ref[...], w_ref[...], preferred_element_type=jnp.float32)
    h = h + b_ref[...].astype(jnp.float32)
    y = _ln_silu(h, g_ref[...].astype(jnp.float32), be_ref[...].astype(jnp.float32))
    o_ref[...] = y.astype(o_ref.dtype)


def _mlp_call(n_pad, tm, in_f, out_f, out_dtype, single_buffer):
    in_specs = [
        pl.BlockSpec((tm, in_f), lambda i: (i, 0)),        # x row tile
        _const_spec((in_f, out_f), single_buffer),         # weight
        _const_spec((1, out_f), single_buffer),            # bias
        _const_spec((1, out_f), single_buffer),            # LN gamma
        _const_spec((1, out_f), single_buffer),            # LN beta
    ]
    return pl.pallas_call(
        mlp_layer_kernel,
        out_shape=jax.ShapeDtypeStruct((n_pad, out_f), out_dtype),
        grid_spec=pltpu.PrefetchScalarGridSpec(
            num_scalar_prefetch=0,
            grid=(n_pad // tm,),
            in_specs=in_specs,
            out_specs=pl.BlockSpec((tm, out_f), lambda i: (i, 0)),
        ),
        compiler_params=pltpu.CompilerParams(
            dimension_semantics=("parallel",),
        ),
    )


def mlp_layer(x, w, b, gamma, beta, *, tm=256, vmem_budget_bytes=24 << 20):
    """SiLU(LayerNorm(x @ W + b)) via a Pallas TPU kernel.

    x:     [N, in_features]
    w:     [in_features, out_features]   (transposed PyTorch weight)
    b, gamma, beta: [out_features]
    """
    N, in_f = x.shape
    in_f_w, out_f = w.shape
    assert in_f_w == in_f, "weight must be [in_features, out_features]"

    itemsize = jnp.dtype(x.dtype).itemsize
    sublane = 16 if itemsize == 2 else 8

    tm = min(tm, _round_up(N, sublane))
    tm = max(sublane, (tm // sublane) * sublane)

    def vmem_estimate(t):
        return (2 * t * in_f * itemsize          # double-buffered x tile
                + 2 * t * out_f * itemsize       # double-buffered out tile
                + in_f * out_f * itemsize        # single-buffered weight
                + 3 * out_f * 4)                 # b / gamma / beta
    while tm > sublane and vmem_estimate(tm) > vmem_budget_bytes:
        tm //= 2
    tm = max(sublane, (tm // sublane) * sublane)

    n_pad = _round_up(N, tm)
    if n_pad != N:
        x = jnp.pad(x, ((0, n_pad - N), (0, 0)))

    b2 = b.reshape(1, out_f)
    g2 = gamma.reshape(1, out_f)
    be2 = beta.reshape(1, out_f)

    try:
        out = _mlp_call(n_pad, tm, in_f, out_f, x.dtype, True)(x, w, b2, g2, be2)
    except Exception:
        # Fallback for JAX versions that reject per-BlockSpec Buffered(1).
        out = _mlp_call(n_pad, tm, in_f, out_f, x.dtype, False)(x, w, b2, g2, be2)

    return out[:N] if n_pad != N else out


# ---------------------------------------------------------------------------
# Kernel 2: fused RBFExpansion -> MLPLayer -> MLPLayer  (edge/angle embedding)
# ---------------------------------------------------------------------------
def rbf_mlp2_kernel(d_ref, c_ref, w1_ref, b1_ref, g1_ref, be1_ref,
                    w2_ref, b2_ref, g2_ref, be2_ref, o_ref, *, gamma):
    """One row-tile of MLP2(MLP1(RBF(d))) with everything kept in VMEM/vregs."""
    d = d_ref[...].astype(jnp.float32)                    # (tm, 1)
    centers = c_ref[...].astype(jnp.float32)              # (1, bins)
    diff = d - centers
    rbf = jnp.exp(-gamma * diff * diff)                   # (tm, bins), EUP exp

    # MLPLayer 1: bins -> embedding_features
    h1 = jnp.dot(rbf.astype(w1_ref.dtype), w1_ref[...],
                 preferred_element_type=jnp.float32)
    h1 = h1 + b1_ref[...].astype(jnp.float32)
    y1 = _ln_silu(h1, g1_ref[...].astype(jnp.float32), be1_ref[...].astype(jnp.float32))

    # MLPLayer 2: embedding_features -> hidden_features
    h2 = jnp.dot(y1.astype(w2_ref.dtype), w2_ref[...],
                 preferred_element_type=jnp.float32)
    h2 = h2 + b2_ref[...].astype(jnp.float32)
    y2 = _ln_silu(h2, g2_ref[...].astype(jnp.float32), be2_ref[...].astype(jnp.float32))

    o_ref[...] = y2.astype(o_ref.dtype)


def _rbf_mlp2_call(n_pad, tm, bins, emb_f, hid_f, out_dtype, gamma, single_buffer):
    in_specs = [
        pl.BlockSpec((tm, 1), lambda i: (i, 0)),           # distance column
        _const_spec((1, bins), single_buffer),             # RBF centers
        _const_spec((bins, emb_f), single_buffer),         # W1
        _const_spec((1, emb_f), single_buffer),            # b1
        _const_spec((1, emb_f), single_buffer),            # LN1 gamma
        _const_spec((1, emb_f), single_buffer),            # LN1 beta
        _const_spec((emb_f, hid_f), single_buffer),        # W2
        _const_spec((1, hid_f), single_buffer),            # b2
        _const_spec((1, hid_f), single_buffer),            # LN2 gamma
        _const_spec((1, hid_f), single_buffer),            # LN2 beta
    ]
    return pl.pallas_call(
        functools.partial(rbf_mlp2_kernel, gamma=gamma),
        out_shape=jax.ShapeDtypeStruct((n_pad, hid_f), out_dtype),
        grid_spec=pltpu.PrefetchScalarGridSpec(
            num_scalar_prefetch=0,
            grid=(n_pad // tm,),
            in_specs=in_specs,
            out_specs=pl.BlockSpec((tm, hid_f), lambda i: (i, 0)),
        ),
        compiler_params=pltpu.CompilerParams(
            dimension_semantics=("parallel",),
        ),
    )


def rbf_mlp2_embedding(dist, centers, gamma, w1, b1, g1, be1, w2, b2, g2, be2,
                       *, tm=256, vmem_budget_bytes=24 << 20):
    """Fused RBFExpansion + two MLPLayers (ALIGNN edge/angle embedding).

    dist:    [N]              per-edge scalar (e.g. bond length / cos angle)
    centers: [bins]           RBF centers (torch.linspace(vmin, vmax, bins))
    gamma:   python float     RBF gamma (1 / lengthscale, as in RBFExpansion)
    w1:      [bins, emb]      b1/g1/be1: [emb]
    w2:      [emb, hid]       b2/g2/be2: [hid]
    """
    N = dist.shape[0]
    bins, emb_f = w1.shape
    emb_f2, hid_f = w2.shape
    assert emb_f2 == emb_f and centers.shape[0] == bins

    itemsize = jnp.dtype(w1.dtype).itemsize
    sublane = 16 if itemsize == 2 else 8

    tm = min(tm, _round_up(N, sublane))
    tm = max(sublane, (tm // sublane) * sublane)

    def vmem_estimate(t):
        return (2 * t * 4                                   # distance column
                + 2 * t * hid_f * 4                         # output tile
                + (bins * emb_f + emb_f * hid_f) * itemsize  # weights
                + (bins + 3 * emb_f + 3 * hid_f) * 4)        # small params
    while tm > sublane and vmem_estimate(tm) > vmem_budget_bytes:
        tm //= 2
    tm = max(sublane, (tm // sublane) * sublane)

    n_pad = _round_up(N, tm)
    d2 = dist.reshape(N, 1)
    if n_pad != N:
        d2 = jnp.pad(d2, ((0, n_pad - N), (0, 0)))

    c2 = centers.reshape(1, bins)
    b1r, g1r, be1r = b1.reshape(1, emb_f), g1.reshape(1, emb_f), be1.reshape(1, emb_f)
    b2r, g2r, be2r = b2.reshape(1, hid_f), g2.reshape(1, hid_f), be2.reshape(1, hid_f)

    args = (d2, c2, w1, b1r, g1r, be1r, w2, b2r, g2r, be2r)
    out_dtype = dist.dtype
    gamma = float(gamma)
    try:
        out = _rbf_mlp2_call(n_pad, tm, bins, emb_f, hid_f, out_dtype, gamma, True)(*args)
    except Exception:
        out = _rbf_mlp2_call(n_pad, tm, bins, emb_f, hid_f, out_dtype, gamma, False)(*args)

    return out[:N] if n_pad != N else out


# ---------------------------------------------------------------------------
# pure-JAX references (PyTorch Linear/LayerNorm/SiLU/RBFExpansion semantics)
# ---------------------------------------------------------------------------
def reference_mlp_layer(x, w, b, gamma, beta):
    h = x.astype(jnp.float32) @ w.astype(jnp.float32) + b
    mean = jnp.mean(h, axis=-1, keepdims=True)
    var = jnp.mean((h - mean) ** 2, axis=-1, keepdims=True)
    y = (h - mean) / jnp.sqrt(var + LN_EPS) * gamma + beta
    return (y * jax.nn.sigmoid(y)).astype(x.dtype)


def reference_rbf_mlp2(dist, centers, gamma, w1, b1, g1, be1, w2, b2, g2, be2):
    rbf = jnp.exp(-gamma * (dist[:, None] - centers[None, :]) ** 2)
    h1 = reference_mlp_layer(rbf.astype(dist.dtype), w1, b1, g1, be1)
    return reference_mlp_layer(h1, w2, b2, g2, be2)


# ---------------------------------------------------------------------------
# self-test
# ---------------------------------------------------------------------------
if __name__ == "__main__":
    key = jax.random.PRNGKey(0)
    keys = jax.random.split(key, 16)

    # ---- MLPLayer: atom_embedding (atom_input_features=92 -> hidden=256) ----
    N_atoms = 600          # not a tile multiple -> exercises padding; >1 tile
    in_features = 92
    hidden = 256

    x = jax.random.normal(keys[0], (N_atoms, in_features), dtype=jnp.float32)
    bound = 1.0 / jnp.sqrt(jnp.float32(in_features))
    w = jax.random.uniform(keys[1], (in_features, hidden),
                           minval=-bound, maxval=bound, dtype=jnp.float32)
    b = jax.random.uniform(keys[2], (hidden,), minval=-bound, maxval=bound,
                           dtype=jnp.float32)
    gma = 1.0 + 0.1 * jax.random.normal(keys[3], (hidden,), dtype=jnp.float32)
    bta = 0.1 * jax.random.normal(keys[4], (hidden,), dtype=jnp.float32)

    out = jax.block_until_ready(mlp_layer(x, w, b, gma, bta, tm=256))
    ref = reference_mlp_layer(x, w, b, gma, bta)
    assert out.shape == (N_atoms, hidden)
    assert jnp.allclose(out, ref, atol=1e-4, rtol=1e-4), "MLPLayer mismatch"

    # ---- fused edge_embedding: RBF(0..8, 80 bins) -> MLP(80->64) -> MLP(64->256) ----
    n_edges = 350
    bins = 80              # edge_input_features
    emb = 64               # embedding_features

    bondlength = 8.0 * jax.random.uniform(keys[5], (n_edges,), dtype=jnp.float32)
    centers = jnp.linspace(0.0, 8.0, bins, dtype=jnp.float32)
    lengthscale = jnp.diff(centers).mean()
    rbf_gamma = float(1.0 / lengthscale)        # RBFExpansion default (lengthscale=None)

    bnd1 = 1.0 / jnp.sqrt(jnp.float32(bins))
    w1 = jax.random.uniform(keys[6], (bins, emb), minval=-bnd1, maxval=bnd1,
                            dtype=jnp.float32)
    b1 = jax.random.uniform(keys[7], (emb,), minval=-bnd1, maxval=bnd1,
                            dtype=jnp.float32)
    g1 = 1.0 + 0.1 * jax.random.normal(keys[8], (emb,), dtype=jnp.float32)
    be1 = 0.1 * jax.random.normal(keys[9], (emb,), dtype=jnp.float32)

    bnd2 = 1.0 / jnp.sqrt(jnp.float32(emb))
    w2 = jax.random.uniform(keys[10], (emb, hidden), minval=-bnd2, maxval=bnd2,
                            dtype=jnp.float32)
    b2 = jax.random.uniform(keys[11], (hidden,), minval=-bnd2, maxval=bnd2,
                            dtype=jnp.float32)
    g2 = 1.0 + 0.1 * jax.random.normal(keys[12], (hidden,), dtype=jnp.float32)
    be2 = 0.1 * jax.random.normal(keys[13], (hidden,), dtype=jnp.float32)

    y_edge = jax.block_until_ready(
        rbf_mlp2_embedding(bondlength, centers, rbf_gamma,
                           w1, b1, g1, be1, w2, b2, g2, be2, tm=256))
    y_ref = reference_rbf_mlp2(bondlength, centers, rbf_gamma,
                               w1, b1, g1, be1, w2, b2, g2, be2)
    assert y_edge.shape == (n_edges, hidden)
    assert jnp.allclose(y_edge, y_ref, atol=2e-4, rtol=2e-4), "edge embedding mismatch"

    print("KERNEL_OK")
</pallas_src>

<mosaic_0001>
module attributes {stable_mosaic.version = 11 : i64} {
  func.func @mlp_layer_kernel(%arg0: i32, %arg1: memref<256x92xf32, #tpu.memory_space<vmem>>, %arg2: memref<92x256xf32, #tpu.memory_space<vmem>>, %arg3: memref<1x256xf32, #tpu.memory_space<vmem>>, %arg4: memref<1x256xf32, #tpu.memory_space<vmem>>, %arg5: memref<1x256xf32, #tpu.memory_space<vmem>>, %arg6: memref<256x256xf32, #tpu.memory_space<vmem>>) attributes {dimension_semantics = [#tpu.dimension_semantics<parallel>], iteration_bounds = array<i64: 3>, scalar_prefetch = 0 : i64, scratch_operands = 0 : i64, tpu.core_type = #tpu.core_type<tc>, window_params = [{transform_indices = @transform_0, window_bounds = array<i64: 256, 92>}, {pipeline_mode = #tpu.pipeline_mode<synchronous>, transform_indices = @transform_1, window_bounds = array<i64: 92, 256>}, {pipeline_mode = #tpu.pipeline_mode<synchronous>, transform_indices = @transform_2, window_bounds = array<i64: 1, 256>}, {pipeline_mode = #tpu.pipeline_mode<synchronous>, transform_indices = @transform_3, window_bounds = array<i64: 1, 256>}, {pipeline_mode = #tpu.pipeline_mode<synchronous>, transform_indices = @transform_4, window_bounds = array<i64: 1, 256>}, {transform_indices = @transform_5, window_bounds = array<i64: 256, 256>}]} {
    %c0 = arith.constant 0 : index
    %c0_0 = arith.constant 0 : index
    %0 = vector.load %arg1[%c0, %c0_0] : memref<256x92xf32, #tpu.memory_space<vmem>>, vector<256x92xf32>
    %c0_1 = arith.constant 0 : index
    %c0_2 = arith.constant 0 : index
    %1 = vector.load %arg2[%c0_1, %c0_2] : memref<92x256xf32, #tpu.memory_space<vmem>>, vector<92x256xf32>
    %cst = arith.constant dense<0.000000e+00> : vector<256x256xf32>
    %2 = tpu.matmul %0, %1, %cst {dimension_numbers = #tpu.dot_dimension_numbers<[1], [0], [0], [1], [0, 0, 1, 1], [], []>} : vector<256x92xf32>, vector<92x256xf32>, vector<256x256xf32> -> vector<256x256xf32>
    %c0_3 = arith.constant 0 : index
    %c0_4 = arith.constant 0 : index
    %3 = vector.load %arg3[%c0_3, %c0_4] : memref<1x256xf32, #tpu.memory_space<vmem>>, vector<1x256xf32>
    %4 = vector.broadcast %3 : vector<1x256xf32> to vector<256x256xf32>
    %5 = arith.addf %2, %4 : vector<256x256xf32>
    %c0_5 = arith.constant 0 : index
    %c0_6 = arith.constant 0 : index
    %6 = vector.load %arg4[%c0_5, %c0_6] : memref<1x256xf32, #tpu.memory_space<vmem>>, vector<1x256xf32>
    %c0_7 = arith.constant 0 : index
    %c0_8 = arith.constant 0 : index
    %7 = vector.load %arg5[%c0_7, %c0_8] : memref<1x256xf32, #tpu.memory_space<vmem>>, vector<1x256xf32>
    %cst_9 = arith.constant dense<0.000000e+00> : vector<256xf32>
    %8 = vector.multi_reduction <add>, %5, %cst_9 [1] : vector<256x256xf32> to vector<256xf32>
    %9 = vector.shape_cast %8 : vector<256xf32> to vector<256x1xf32>
    %10 = arith.mulf %5, %5 : vector<256x256xf32>
    %cst_10 = arith.constant dense<0.000000e+00> : vector<256xf32>
    %11 = vector.multi_reduction <add>, %10, %cst_10 [1] : vector<256x256xf32> to vector<256xf32>
    %12 = vector.shape_cast %11 : vector<256xf32> to vector<256x1xf32>
    %cst_11 = arith.constant 3.906250e-03 : f32
    %13 = vector.broadcast %cst_11 : f32 to vector<256x1xf32>
    %14 = arith.mulf %9, %13 : vector<256x1xf32>
    %cst_12 = arith.constant 3.906250e-03 : f32
    %15 = vector.broadcast %cst_12 : f32 to vector<256x1xf32>
    %16 = arith.mulf %12, %15 : vector<256x1xf32>
    %17 = arith.mulf %14, %14 : vector<256x1xf32>
    %18 = arith.subf %16, %17 : vector<256x1xf32>
    %cst_13 = arith.constant 9.99999974E-6 : f32
    %19 = vector.broadcast %cst_13 : f32 to vector<256x1xf32>
    %20 = arith.addf %18, %19 : vector<256x1xf32>
    %21 = math.rsqrt %20 : vector<256x1xf32>
    %22 = vector.broadcast %6 : vector<1x256xf32> to vector<256x256xf32>
    %23 = vector.broadcast %21 : vector<256x1xf32> to vector<256x256xf32>
    %24 = arith.mulf %22, %23 : vector<256x256xf32>
    %25 = vector.broadcast %14 : vector<256x1xf32> to vector<256x256xf32>
    %26 = arith.mulf %25, %24 : vector<256x256xf32>
    %27 = vector.broadcast %7 : vector<1x256xf32> to vector<256x256xf32>
    %28 = arith.subf %27, %26 : vector<256x256xf32>
    %29 = arith.mulf %5, %24 : vector<256x256xf32>
    %30 = arith.addf %29, %28 : vector<256x256xf32>
    %31 = arith.negf %30 : vector<256x256xf32>
    %32 = math.exp %31 : vector<256x256xf32>
    %cst_14 = arith.constant 1.000000e+00 : f32
    %33 = vector.broadcast %cst_14 : f32 to vector<256x256xf32>
    %34 = arith.addf %33, %32 : vector<256x256xf32>
    %35 = arith.divf %33, %34 : vector<256x256xf32>
    %36 = arith.mulf %30, %35 : vector<256x256xf32>
    %c0_15 = arith.constant 0 : index
    %c0_16 = arith.constant 0 : index
    %37 = vector.load %arg6[%c0_15, %c0_16] : memref<256x256xf32, #tpu.memory_space<vmem>>, vector<256x256xf32>
    tpu.vector_store %arg6[%c0_15, %c0_16], %36 {strides = array<i32>} : memref<256x256xf32, #tpu.memory_space<vmem>>, vector<256x256xf32>,
    return
  }
  func.func @transform_0(%arg0: i32) -> (i32, i32) {
    %c0_i32 = arith.constant 0 : i32
    %c0_i32_0 = arith.constant 0 : i32
    return %arg0, %c0_i32 : i32, i32
  }
  func.func @transform_1(%arg0: i32) -> (i32, i32) {
    %c0_i32 = arith.constant 0 : i32
    %c0_i32_0 = arith.constant 0 : i32
    %c0_i32_1 = arith.constant 0 : i32
    return %c0_i32, %c0_i32_0 : i32, i32
  }
  func.func @transform_2(%arg0: i32) -> (i32, i32) {
    %c0_i32 = arith.constant 0 : i32
    %c0_i32_0 = arith.constant 0 : i32
    %c0_i32_1 = arith.constant 0 : i32
    return %c0_i32, %c0_i32_0 : i32, i32
  }
  func.func @transform_3(%arg0: i32) -> (i32, i32) {
    %c0_i32 = arith.constant 0 : i32
    %c0_i32_0 = arith.constant 0 : i32
    %c0_i32_1 = arith.constant 0 : i32
    return %c0_i32, %c0_i32_0 : i32, i32
  }
  func.func @transform_4(%arg0: i32) -> (i32, i32) {
    %c0_i32 = arith.constant 0 : i32
    %c0_i32_0 = arith.constant 0 : i32
    %c0_i32_1 = arith.constant 0 : i32
    return %c0_i32, %c0_i32_0 : i32, i32
  }
  func.func @transform_5(%arg0: i32) -> (i32, i32) {
    %c0_i32 = arith.constant 0 : i32
    %c0_i32_0 = arith.constant 0 : i32
    return %arg0, %c0_i32 : i32, i32
  }
}

module attributes {stable_mosaic.version = 11 : i64} {
  func.func @mlp_layer_kernel(%arg0: i32, %arg1: memref<256x92xf32, #tpu.memory_space<vmem>>, %arg2: memref<92x256xf32, #tpu.memory_space<vmem>>, %arg3: memref<1x256xf32, #tpu.memory_space<vmem>>, %arg4: memref<1x256xf32, #tpu.memory_space<vmem>>, %arg5: memref<1x256xf32, #tpu.memory_space<vmem>>, %arg6: memref<256x256xf32, #tpu.memory_space<vmem>>) attributes {dimension_semantics = [#tpu.dimension_semantics<parallel>], iteration_bounds = array<i64: 3>, scalar_prefetch = 0 : i64, scratch_operands = 0 : i64, tpu.core_type = #tpu.core_type<tc>, window_params = [{transform_indices = @transform_0, window_bounds = array<i64: 256, 92>}, {pipeline_mode = #tpu.pipeline_mode<synchronous>, transform_indices = @transform_1, window_bounds = array<i64: 92, 256>}, {pipeline_mode = #tpu.pipeline_mode<synchronous>, transform_indices = @transform_2, window_bounds = array<i64: 1, 256>}, {pipeline_mode = #tpu.pipeline_mode<synchronous>, transform_indices = @transform_3, window_bounds = array<i64: 1, 256>}, {pipeline_mode = #tpu.pipeline_mode<synchronous>, transform_indices = @transform_4, window_bounds = array<i64: 1, 256>}, {transform_indices = @transform_5, window_bounds = array<i64: 256, 256>}]} {
    %c0 = arith.constant 0 : index
    %c0_0 = arith.constant 0 : index
    %0 = vector.load %arg1[%c0, %c0_0] : memref<256x92xf32, #tpu.memory_space<vmem>>, vector<256x92xf32>
    %c0_1 = arith.constant 0 : index
    %c0_2 = arith.constant 0 : index
    %1 = vector.load %arg2[%c0_1, %c0_2] : memref<92x256xf32, #tpu.memory_space<vmem>>, vector<92x256xf32>
    %cst = arith.constant dense<0.000000e+00> : vector<256x256xf32>
    %2 = tpu.matmul %0, %1, %cst {dimension_numbers = #tpu.dot_dimension_numbers<[1], [0], [0], [1], [0, 0, 1, 1], [], []>} : vector<256x92xf32>, vector<92x256xf32>, vector<256x256xf32> -> vector<256x256xf32>
    %c0_3 = arith.constant 0 : index
    %c0_4 = arith.constant 0 : index
    %3 = vector.load %arg3[%c0_3, %c0_4] : memref<1x256xf32, #tpu.memory_space<vmem>>, vector<1x256xf32>
    %4 = vector.broadcast %3 : vector<1x256xf32> to vector<256x256xf32>
    %5 = arith.addf %2, %4 : vector<256x256xf32>
    %c0_5 = arith.constant 0 : index
    %c0_6 = arith.constant 0 : index
    %6 = vector.load %arg4[%c0_5, %c0_6] : memref<1x256xf32, #tpu.memory_space<vmem>>, vector<1x256xf32>
    %c0_7 = arith.constant 0 : index
    %c0_8 = arith.constant 0 : index
    %7 = vector.load %arg5[%c0_7, %c0_8] : memref<1x256xf32, #tpu.memory_space<vmem>>, vector<1x256xf32>
    %cst_9 = arith.constant dense<0.000000e+00> : vector<256xf32>
    %8 = vector.multi_reduction <add>, %5, %cst_9 [1] : vector<256x256xf32> to vector<256xf32>
    %9 = vector.shape_cast %8 : vector<256xf32> to vector<256x1xf32>
    %10 = arith.mulf %5, %5 : vector<256x256xf32>
    %cst_10 = arith.constant dense<0.000000e+00> : vector<256xf32>
    %11 = vector.multi_reduction <add>, %10, %cst_10 [1] : vector<256x256xf32> to vector<256xf32>
    %12 = vector.shape_cast %11 : vector<256xf32> to vector<256x1xf32>
    %cst_11 = arith.constant 3.906250e-03 : f32
    %13 = vector.broadcast %cst_11 : f32 to vector<256x1xf32>
    %14 = arith.mulf %9, %13 : vector<256x1xf32>
    %cst_12 = arith.constant 3.906250e-03 : f32
    %15 = vector.broadcast %cst_12 : f32 to vector<256x1xf32>
    %16 = arith.mulf %12, %15 : vector<256x1xf32>
    %17 = arith.mulf %14, %14 : vector<256x1xf32>
    %18 = arith.subf %16, %17 : vector<256x1xf32>
    %cst_13 = arith.constant 9.99999974E-6 : f32
    %19 = vector.broadcast %cst_13 : f32 to vector<256x1xf32>
    %20 = arith.addf %18, %19 : vector<256x1xf32>
    %21 = math.rsqrt %20 : vector<256x1xf32>
    %22 = vector.broadcast %6 : vector<1x256xf32> to vector<256x256xf32>
    %23 = vector.broadcast %21 : vector<256x1xf32> to vector<256x256xf32>
    %24 = arith.mulf %22, %23 : vector<256x256xf32>
    %25 = vector.broadcast %14 : vector<256x1xf32> to vector<256x256xf32>
    %26 = arith.mulf %25, %24 : vector<256x256xf32>
    %27 = vector.broadcast %7 : vector<1x256xf32> to vector<256x256xf32>
    %28 = arith.subf %27, %26 : vector<256x256xf32>
    %29 = arith.mulf %5, %24 : vector<256x256xf32>
    %30 = arith.addf %29, %28 : vector<256x256xf32>
    %31 = arith.negf %30 : vector<256x256xf32>
    %32 = math.exp %31 : vector<256x256xf32>
    %cst_14 = arith.constant 1.000000e+00 : f32
    %33 = vector.broadcast %cst_14 : f32 to vector<256x256xf32>
    %34 = arith.addf %33, %32 : vector<256x256xf32>
    %35 = arith.divf %33, %34 : vector<256x256xf32>
    %36 = arith.mulf %30, %35 : vector<256x256xf32>
    %c0_15 = arith.constant 0 : index
    %c0_16 = arith.constant 0 : index
    %37 = vector.load %arg6[%c0_15, %c0_16] : memref<256x256xf32, #tpu.memory_space<vmem>>, vector<256x256xf32>
    tpu.vector_store %arg6[%c0_15, %c0_16], %36 {strides = array<i32>} : memref<256x256xf32, #tpu.memory_space<vmem>>, vector<256x256xf32>,
    return
  }
  func.func @transform_0(%arg0: i32) -> (i32, i32) {
    %c0_i32 = arith.constant 0 : i32
    %c0_i32_0 = arith.constant 0 : i32
    return %arg0, %c0_i32 : i32, i32
  }
  func.func @transform_1(%arg0: i32) -> (i32, i32) {
    %c0_i32 = arith.constant 0 : i32
    %c0_i32_0 = arith.constant 0 : i32
    %c0_i32_1 = arith.constant 0 : i32
    return %c0_i32, %c0_i32_0 : i32, i32
  }
  func.func @transform_2(%arg0: i32) -> (i32, i32) {
    %c0_i32 = arith.constant 0 : i32
    %c0_i32_0 = arith.constant 0 : i32
    %c0_i32_1 = arith.constant 0 : i32
    return %c0_i32, %c0_i32_0 : i32, i32
  }
  func.func @transform_3(%arg0: i32) -> (i32, i32) {
    %c0_i32 = arith.constant 0 : i32
    %c0_i32_0 = arith.constant 0 : i32
    %c0_i32_1 = arith.constant 0 : i32
    return %c0_i32, %c0_i32_0 : i32, i32
  }
  func.func @transform_4(%arg0: i32) -> (i32, i32) {
    %c0_i32 = arith.constant 0 : i32
    %c0_i32_0 = arith.constant 0 : i32
    %c0_i32_1 = arith.constant 0 : i32
    return %c0_i32, %c0_i32_0 : i32, i32
  }
  func.func @transform_5(%arg0: i32) -> (i32, i32) {
    %c0_i32 = arith.constant 0 : i32
    %c0_i32_0 = arith.constant 0 : i32
    return %arg0, %c0_i32 : i32, i32
  }
}

</mosaic_0001>

<llo_original>
// kernel: tpu_custom_call.1
$region0: #{tpu_custom_call.1}
  #allocation0 [shape = 'u32[]', space=smem, size = 0x4, offset = 0x4, fixed_abs, tag = 'smem constant byte address 0x4 - core index']
  #allocation1 [shape = 'u32[72,128]{1,0:T(1,128)}', space=vmem, size = 0x9000, scoped, tag = 'internal scratch']
  %s0 = inlined_call_operand.vmem [shape: f32[768,92], index: 0, kind: input, shape index: {}]
  %s1 = inlined_call_operand.vmem [shape: f32[92,256], index: 1, kind: input, shape index: {}]
  %s2 = inlined_call_operand.vmem [shape: f32[1,256], index: 2, kind: input, shape index: {}]
  %s3 = inlined_call_operand.vmem [shape: f32[1,256], index: 3, kind: input, shape index: {}]
  %s4 = inlined_call_operand.vmem [shape: f32[1,256], index: 4, kind: input, shape index: {}]
  %s5 = inlined_call_operand.hbm [shape: f32[768,256], index: 5, kind: output, shape index: {}]
  %s6 = sld [smem:[#allocation0]]
  $region53: #{tpu_custom_call.1} parent=0
    _
  %s8 = ssub.s32 1, %s6
  %s9 = scalar_select 0, %s8, %s6
  $region1: #{tpu_custom_call.1} parent=0
    #allocation2 [shape = 'u8[524288]{0}', space=vmem, size = 0x80000, scoped, tag = 'output window, operand 0']
    #allocation3 [shape = 's32[2]{0}', space=sflag, size = 0x8, scoped, tag = 'scoped memory for tpu_custom_call.1']
    %10 = vsyncpa [#allocation3], 0
    %s11 = scalar_lea.sflag [#allocation3], 1
    %12 = vsyncpa %s11, 0
    loop: start=0, step=1, limit=5
    $region2: #{tpu_custom_call.1} parent=1 // loop_pre_header
      _
    $region3: #{tpu_custom_call.1} parent=1 // loop_header
      %s14 = sphi 0, %s18
      %p15 = scmp.ge.s32.totalorder %s14, 5
      %s24 = sphi 0, %s26
      %s27 = sphi 0, %s24
      %s28 = sphi 0, %s27
      %s44 = sphi 0, %s28
      %s48 = sphi 0, %s48
      %s50 = sphi 0, %s48
      %s51 = sphi 0, %s50
      %s65 = sphi 0, %s51
      %s69 = sphi 0, %s69
      %s71 = sphi 0, %s69
      %s72 = sphi 0, %s71
      %s86 = sphi 0, %s72
      %s90 = sphi 0, %s90
      %s92 = sphi 0, %s90
      %s93 = sphi 0, %s92
      %s107 = sphi 0, %s93
      %s111 = sphi 0, %s111
      %s113 = sphi 0, %s111
      %s114 = sphi 0, %s113
      %s128 = sphi 0, %s114
      %s134 = sphi 0, %s136
      %s137 = sphi 0, %s134
      %s138 = sphi 0, %s137
      %s154 = sphi 0, %s138
    $region4: #{tpu_custom_call.1} parent=1 // loop_header_branch
      %17 = sbr.rel (%p15) target = $region8
    $region5: #{tpu_custom_call.1} parent=1 // loop_body
      %s19 = ssub.s32 %s14, 1
      %s20 = ssub.s32 %s14, 2
      %s21 = sadd.s32 %s14, 1
      %s22 = ssub.s32 %s14, %s21
      %p23 = scmp.eq.s32.totalorder %s22, 0
      %s25 = sadd.s32 %s24, 1
      %s26 = scalar_select %p23, %s24, %s25
      %p29 = pneg %p23
      %p30 = scmp.eq.s32.totalorder %s14, 2
      %p31 = por %p29, %p30
      %p32 = scmp.ne.s32.totalorder %s24, %s27
      %p33 = scmp.eq.s32.totalorder %s14, 0
      %p34 = por %p32, %p33
      %p35 = scmp.ne.s32.totalorder %s24, %s27
      %p36 = scmp.eq.s32.totalorder %s19, 2
      %p37 = por %p35, %p36
      %p38 = scmp.ne.s32.totalorder %s27, %s28
      %p39 = scmp.eq.s32.totalorder %s19, 0
      %p40 = por %p38, %p39
      %p41 = scmp.ne.s32.totalorder %s27, %s28
      %p42 = scmp.eq.s32.totalorder %s20, 2
      %p43 = por %p41, %p42
      %p45 = scmp.ne.s32.totalorder %s28, %s44
      %p46 = scmp.eq.s32.totalorder %s20, 0
      %p47 = por %p45, %p46
      %s49 = sadd.s32 %s48, 1
      %p52 = scmp.eq.s32.totalorder %s14, 2
      %p53 = scmp.ne.s32.totalorder %s48, %s50
      %p54 = scmp.eq.s32.totalorder %s14, 0
      %p55 = por %p53, %p54
      %p56 = scmp.ne.s32.totalorder %s48, %s50
      %p57 = scmp.eq.s32.totalorder %s19, 2
      %p58 = por %p56, %p57
      %p59 = scmp.ne.s32.totalorder %s50, %s51
      %p60 = scmp.eq.s32.totalorder %s19, 0
      %p61 = por %p59, %p60
      %p62 = scmp.ne.s32.totalorder %s50, %s51
      %p63 = scmp.eq.s32.totalorder %s20, 2
      %p64 = por %p62, %p63
      %p66 = scmp.ne.s32.totalorder %s51, %s65
      %p67 = scmp.eq.s32.totalorder %s20, 0
      %p68 = por %p66, %p67
      %s70 = sadd.s32 %s69, 1
      %p73 = scmp.eq.s32.totalorder %s14, 2
      %p74 = scmp.ne.s32.totalorder %s69, %s71
      %p75 = scmp.eq.s32.totalorder %s14, 0
      %p76 = por %p74, %p75
      %p77 = scmp.ne.s32.totalorder %s69, %s71
      %p78 = scmp.eq.s32.totalorder %s19, 2
      %p79 = por %p77, %p78
      %p80 = scmp.ne.s32.totalorder %s71, %s72
      %p81 = scmp.eq.s32.totalorder %s19, 0
      %p82 = por %p80, %p81
      %p83 = scmp.ne.s32.totalorder %s71, %s72
      %p84 = scmp.eq.s32.totalorder %s20, 2
      %p85 = por %p83, %p84
      %p87 = scmp.ne.s32.totalorder %s72, %s86
      %p88 = scmp.eq.s32.totalorder %s20, 0
      %p89 = por %p87, %p88
      %s91 = sadd.s32 %s90, 1
      %p94 = scmp.eq.s32.totalorder %s14, 2
      %p95 = scmp.ne.s32.totalorder %s90, %s92
      %p96 = scmp.eq.s32.totalorder %s14, 0
      %p97 = por %p95, %p96
      %p98 = scmp.ne.s32.totalorder %s90, %s92
      %p99 = scmp.eq.s32.totalorder %s19, 2
      %p100 = por %p98, %p99
      %p101 = scmp.ne.s32.totalorder %s92, %s93
      %p102 = scmp.eq.s32.totalorder %s19, 0
      %p103 = por %p101, %p102
      %p104 = scmp.ne.s32.totalorder %s92, %s93
      %p105 = scmp.eq.s32.totalorder %s20, 2
      %p106 = por %p104, %p105
      %p108 = scmp.ne.s32.totalorder %s93, %s107
      %p109 = scmp.eq.s32.totalorder %s20, 0
      %p110 = por %p108, %p109
      %s112 = sadd.s32 %s111, 1
      %p115 = scmp.eq.s32.totalorder %s14, 2
      %p116 = scmp.ne.s32.totalorder %s111, %s113
      %p117 = scmp.eq.s32.totalorder %s14, 0
      %p118 = por %p116, %p117
      %p119 = scmp.ne.s32.totalorder %s111, %s113
      %p120 = scmp.eq.s32.totalorder %s19, 2
      %p121 = por %p119, %p120
      %p122 = scmp.ne.s32.totalorder %s113, %s114
      %p123 = scmp.eq.s32.totalorder %s19, 0
      %p124 = por %p122, %p123
      %p125 = scmp.ne.s32.totalorder %s113, %s114
      %p126 = scmp.eq.s32.totalorder %s20, 2
      %p127 = por %p125, %p126
      %p129 = scmp.ne.s32.totalorder %s114, %s128
      %p130 = scmp.eq.s32.totalorder %s20, 0
      %p131 = por %p129, %p130
      %s132 = ssub.s32 %s14, %s21
      %p133 = scmp.eq.s32.totalorder %s132, 0
      %s135 = sadd.s32 %s134, 1
      %s136 = scalar_select %p133, %s134, %s135
      %p139 = pneg %p133
      %p140 = scmp.eq.s32.totalorder %s14, 2
      %p141 = por %p139, %p140
      %p142 = scmp.ne.s32.totalorder %s134, %s137
      %p143 = scmp.eq.s32.totalorder %s14, 0
      %p144 = por %p142, %p143
      %p145 = scmp.ne.s32.totalorder %s134, %s137
      %p146 = scmp.eq.s32.totalorder %s19, 2
      %p147 = por %p145, %p146
      %p148 = scmp.ne.s32.totalorder %s137, %s138
      %p149 = scmp.eq.s32.totalorder %s19, 0
      %p150 = por %p148, %p149
      %p151 = scmp.ne.s32.totalorder %s137, %s138
      %p152 = scmp.eq.s32.totalorder %s20, 2
      %p153 = por %p151, %p152
      %p155 = scmp.ne.s32.totalorder %s138, %s154
      %p156 = scmp.eq.s32.totalorder %s20, 0
      %p157 = por %p155, %p156
      %p158 = scmp.le.s32.totalorder 1, %s14
      %p159 = scmp.lt.s32.totalorder %s14, 4
      %p160 = pnand %p158, %p159
      %p161 = pneg %p160
      // Predicated region
      $region9: #{tpu_custom_call.1} parent=5 // pred_check
        _
      $region10: #{tpu_custom_call.1} parent=5 // pred_check_branch
        %163 = sbr.rel (%p160) target = $region12
      $region11: #{tpu_custom_call.1} parent=5 // pred_region
        %s164 = ssub.s32 %s14, 1
        // Predicated region
        $region13: #{tpu_custom_call.1} parent=11 // pred_check
          %p165 = pneg %p61
        $region14: #{tpu_custom_call.1} parent=11 // pred_check_branch
          %167 = sbr.rel (%p165) target = $region16
        $region15: #{tpu_custom_call.1} parent=11 // pred_region
          _
        $region16: #{tpu_custom_call.1} parent=11 // pred_fallthru
          _
        // Predicated region
        $region17: #{tpu_custom_call.1} parent=11 // pred_check
          %p168 = pneg %p82
        $region18: #{tpu_custom_call.1} parent=11 // pred_check_branch
          %170 = sbr.rel (%p168) target = $region20
        $region19: #{tpu_custom_call.1} parent=11 // pred_region
          _
        $region20: #{tpu_custom_call.1} parent=11 // pred_fallthru
          _
        // Predicated region
        $region21: #{tpu_custom_call.1} parent=11 // pred_check
          %p171 = pneg %p103
        $region22: #{tpu_custom_call.1} parent=11 // pred_check_branch
          %173 = sbr.rel (%p171) target = $region24
        $region23: #{tpu_custom_call.1} parent=11 // pred_region
          _
        $region24: #{tpu_custom_call.1} parent=11 // pred_fallthru
          _
        // Predicated region
        $region25: #{tpu_custom_call.1} parent=11 // pred_check
          %p174 = pneg %p124
        $region26: #{tpu_custom_call.1} parent=11 // pred_check_branch
          %176 = sbr.rel (%p174) target = $region28
        $region27: #{tpu_custom_call.1} parent=11 // pred_region
          _
        $region28: #{tpu_custom_call.1} parent=11 // pred_fallthru
          _
      $region12: #{tpu_custom_call.1} parent=5 // pred_fallthru
        _
      %p177 = scmp.lt.s32.totalorder %s14, 3
      // Predicated region
      $region29: #{tpu_custom_call.1} parent=5 // pred_check
        %p178 = pneg %p177
      $region30: #{tpu_custom_call.1} parent=5 // pred_check_branch
        %180 = sbr.rel (%p178) target = $region32
      $region31: #{tpu_custom_call.1} parent=5 // pred_region
        // Predicated region
        $region33: #{tpu_custom_call.1} parent=31 // pred_check
          %p181 = pneg %p34
        $region34: #{tpu_custom_call.1} parent=31 // pred_check_branch
          %183 = sbr.rel (%p181) target = $region36
        $region35: #{tpu_custom_call.1} parent=31 // pred_region
          %s184 = smul.u32 32, %s14
          %p185 = scmp.lt.s32.totalorder %s184, 95
          %s186 = scalar_select %p185, %s184, 95
          %s187 = smul.addr %s186, 8
          %s188 = scalar_lea.vmem %s0, %s187
          %s189 = smul.u32 32, %s14
        $region36: #{tpu_custom_call.1} parent=31 // pred_fallthru
          _
      $region32: #{tpu_custom_call.1} parent=5 // pred_fallthru
        _
      %p190 = scmp.le.s32.totalorder 1, %s14
      %p191 = scmp.lt.s32.totalorder %s14, 4
      %p192 = pnand %p190, %p191
      %p193 = pneg %p192
      // Predicated region
      $region37: #{tpu_custom_call.1} parent=5 // pred_check
        _
      $region38: #{tpu_custom_call.1} parent=5 // pred_check_branch
        %195 = sbr.rel (%p192) target = $region40
      $region39: #{tpu_custom_call.1} parent=5 // pred_region
        %s196 = ssub.s32 %s14, 1
        %s197 = smul.u32 32, %s19
        %p198 = scmp.lt.s32.totalorder %s197, 95
        %s199 = scalar_select %p198, %s197, 95
        %s200 = smul.addr %s199, 8
        %s201 = scalar_lea.vmem %s0, %s200
        %p202 = pneg %p40
        %p203 = pneg %p37
        %p204 = pneg %p61
        %p205 = pneg %p58
        %p206 = pneg %p82
        %p207 = pneg %p79
        %p208 = pneg %p103
        %p209 = pneg %p100
        %p210 = pneg %p124
        %p211 = pneg %p121
        %p212 = pneg %p150
        %p213 = pneg %p147
        %s214 = sand.u32 %s137, 1
        %s215 = scalar_lea.sflag [#allocation3], %s214
        %s216 = sand.u32 %s137, 1
        %s217 = smul.addr %s216, 512
        %s218 = scalar_lea.vmem [#allocation2], %s217
        %s219 = smul.u32 32, %s19
        %p220 = scmp.lt.s32.totalorder %s219, 95
        %s221 = scalar_select %p220, %s219, 95
        %s222 = smul.addr %s221, 8
        %s223 = scalar_lea.vmem %s0, %s222
        %s224 = smul.u32 32, %s19
        %s225 = smul.u32 32, %s19
        %v226 = vld [vmem:[%s223] sm:$0xff]
        %v227 = vld [vmem:[%s223 + $0x8] sm:$0xff]
        %v228 = vld [vmem:[%s223 + $0x10] sm:$0xff]
        %v229 = vld [vmem:[%s223 + $0x18] sm:$0xff]
        %v230 = vld [vmem:[%s223 + $0x20] sm:$0xff]
        %v231 = vld [vmem:[%s223 + $0x28] sm:$0xff]
        %v232 = vld [vmem:[%s223 + $0x30] sm:$0xff]
        %v233 = vld [vmem:[%s223 + $0x38] sm:$0xff]
        %v234 = vld [vmem:[%s223 + $0x40] sm:$0xff]
        %v235 = vld [vmem:[%s223 + $0x48] sm:$0xff]
        %v236 = vld [vmem:[%s223 + $0x50] sm:$0xff]
        %v237 = vld [vmem:[%s223 + $0x58] sm:$0xff]
        %v238 = vld [vmem:[%s223 + $0x60] sm:$0xff]
        %v239 = vld [vmem:[%s223 + $0x68] sm:$0xff]
        %v240 = vld [vmem:[%s223 + $0x70] sm:$0xff]
        %v241 = vld [vmem:[%s223 + $0x78] sm:$0xff]
        %v242 = vld [vmem:[%s223 + $0x80] sm:$0xff]
        %v243 = vld [vmem:[%s223 + $0x88] sm:$0xff]
        %v244 = vld [vmem:[%s223 + $0x90] sm:$0xff]
        %v245 = vld [vmem:[%s223 + $0x98] sm:$0xff]
        %v246 = vld [vmem:[%s223 + $0xa0] sm:$0xff]
        %v247 = vld [vmem:[%s223 + $0xa8] sm:$0xff]
        %v248 = vld [vmem:[%s223 + $0xb0] sm:$0xff]
        %v249 = vld [vmem:[%s223 + $0xb8] sm:$0xff]
        %v250 = vld [vmem:[%s223 + $0xc0] sm:$0xff]
        %v251 = vld [vmem:[%s223 + $0xc8] sm:$0xff]
        %v252 = vld [vmem:[%s223 + $0xd0] sm:$0xff]
        %v253 = vld [vmem:[%s223 + $0xd8] sm:$0xff]
        %v254 = vld [vmem:[%s223 + $0xe0] sm:$0xff]
        %v255 = vld [vmem:[%s223 + $0xe8] sm:$0xff]
        %v256 = vld [vmem:[%s223 + $0xf0] sm:$0xff]
        %v257 = vld [vmem:[%s223 + $0xf8] sm:$0xff]
        %v258 = vld [vmem:[%s1] sm:$0xff]
        %v259 = vld [vmem:[%s1 + $0x8] sm:$0xff]
        %v260 = vld [vmem:[%s1 + $0x10] sm:$0xff]
        %v261 = vld [vmem:[%s1 + $0x18] sm:$0xff]
        %v262 = vld [vmem:[%s1 + $0x20] sm:$0xff]
        %v263 = vld [vmem:[%s1 + $0x28] sm:$0xff]
        %v264 = vld [vmem:[%s1 + $0x30] sm:$0xff]
        %v265 = vld [vmem:[%s1 + $0x38] sm:$0xff]
        %v266 = vld [vmem:[%s1 + $0x40] sm:$0xff]
        %v267 = vld [vmem:[%s1 + $0x48] sm:$0xff]
        %v268 = vld [vmem:[%s1 + $0x50] sm:$0xff]
        %v269 = vld [vmem:[%s1 + $0x58] sm:$0xff]
        %v270 = vld [vmem:[%s1 + $0x60] sm:$0xff]
        %v271 = vld [vmem:[%s1 + $0x68] sm:$0xff]
        %v272 = vld [vmem:[%s1 + $0x70] sm:$0xff]
        %v273 = vld [vmem:[%s1 + $0x78] sm:$0xff]
        %v274 = vld [vmem:[%s1 + $0x80] sm:$0xff]
        %v275 = vld [vmem:[%s1 + $0x88] sm:$0xff]
        %v276 = vld [vmem:[%s1 + $0x90] sm:$0xff]
        %v277 = vld [vmem:[%s1 + $0x98] sm:$0xff]
        %v278 = vld [vmem:[%s1 + $0xa0] sm:$0xff]
        %v279 = vld [vmem:[%s1 + $0xa8] sm:$0xff]
        %v280 = vld [vmem:[%s1 + $0xb0] sm:$0xf]
        %v281 = vld [vmem:[%s1 + $0xb8] sm:$0xf]
        %v282 = vld [vmem:[%s2] sm:$0x3]
        %v284 = vperm.slane %v282, 0
        %v285 = vperm.slane %v282, 1
        %vm288 = vcmask 752640
        %v290 = vsel %vm288, %v226, 0
        %v293 = vsel %vm288, %v227, 0
        %v296 = vsel %vm288, %v228, 0
        %v299 = vsel %vm288, %v229, 0
        %v302 = vsel %vm288, %v230, 0
        %v305 = vsel %vm288, %v231, 0
        %v308 = vsel %vm288, %v232, 0
        %v311 = vsel %vm288, %v233, 0
        %v314 = vsel %vm288, %v234, 0
        %v317 = vsel %vm288, %v235, 0
        %v320 = vsel %vm288, %v236, 0
        %v323 = vsel %vm288, %v237, 0
        %v326 = vsel %vm288, %v238, 0
        %v329 = vsel %vm288, %v239, 0
        %v332 = vsel %vm288, %v240, 0
        %v335 = vsel %vm288, %v241, 0
        %v338 = vsel %vm288, %v242, 0
        %v341 = vsel %vm288, %v243, 0
        %v344 = vsel %vm288, %v244, 0
        %v347 = vsel %vm288, %v245, 0
        %v350 = vsel %vm288, %v246, 0
        %v353 = vsel %vm288, %v247, 0
        %v356 = vsel %vm288, %v248, 0
        %v359 = vsel %vm288, %v249, 0
        %v362 = vsel %vm288, %v250, 0
        %v365 = vsel %vm288, %v251, 0
        %v368 = vsel %vm288, %v252, 0
        %v371 = vsel %vm288, %v253, 0
        %v374 = vsel %vm288, %v254, 0
        %v377 = vsel %vm288, %v255, 0
        %v380 = vsel %vm288, %v256, 0
        %v383 = vsel %vm288, %v257, 0
        %vm385 = vcmask 1043456
        %v387 = vsel %vm385, %v280, 0
        %v390 = vsel %vm385, %v281, 0
        %392 = vmatpush.msra.mxu0 0.0
        %393 = vmatpush.msra.mxu0 0.0
        %394 = vmatpush.msra.mxu0 0.0
        %395 = vmatpush.msra.mxu0 0.0
        %396 = vmatpush.msra.mxu0 %v387
        %397 = vmatpush.msra.mxu0 %v278
        %398 = vmatpush.msra.mxu0 %v276
        %399 = vmatpush.msra.mxu0 %v274
        %400 = vmatpush.msra.mxu0 %v272
        %401 = vmatpush.msra.mxu0 %v270
        %402 = vmatpush.msra.mxu0 %v268
        %403 = vmatpush.msra.mxu0 %v266
        %404 = vmatpush.msra.mxu0 %v264
        %405 = vmatpush.msra.mxu0 %v262
        %406 = vmatpush.msra.mxu0 %v260
        %407 = vmatpush.msra.mxu0 %v258
        %408 = vmatmul.f32.gmra.mxu0 %v290
        %v409 = vpop.f32.mrf.mxu0
        %v410 = vadd.f32 %v284, %v409
        %411 = vmatmul.f32.gmra.mxu0 %v293
        %v412 = vpop.f32.mrf.mxu0
        %v413 = vadd.f32 %v284, %v412
        %414 = vmatmul.f32.gmra.mxu0 %v296
        %v415 = vpop.f32.mrf.mxu0
        %v416 = vadd.f32 %v284, %v415
        %417 = vmatmul.f32.gmra.mxu0 %v299
        %v418 = vpop.f32.mrf.mxu0
        %v419 = vadd.f32 %v284, %v418
        %420 = vmatmul.f32.gmra.mxu0 %v302
        %v421 = vpop.f32.mrf.mxu0
        %v422 = vadd.f32 %v284, %v421
        %423 = vmatmul.f32.gmra.mxu0 %v305
        %v424 = vpop.f32.mrf.mxu0
        %v425 = vadd.f32 %v284, %v424
        %426 = vmatmul.f32.gmra.mxu0 %v308
        %v427 = vpop.f32.mrf.mxu0
        %v428 = vadd.f32 %v284, %v427
        %429 = vmatmul.f32.gmra.mxu0 %v311
        %v430 = vpop.f32.mrf.mxu0
        %v431 = vadd.f32 %v284, %v430
        %432 = vmatmul.f32.gmra.mxu0 %v314
        %v433 = vpop.f32.mrf.mxu0
        %v434 = vadd.f32 %v284, %v433
        %435 = vmatmul.f32.gmra.mxu0 %v317
        %v436 = vpop.f32.mrf.mxu0
        %v437 = vadd.f32 %v284, %v436
        %438 = vmatmul.f32.gmra.mxu0 %v320
        %v439 = vpop.f32.mrf.mxu0
        %v440 = vadd.f32 %v284, %v439
        %441 = vmatmul.f32.gmra.mxu0 %v323
        %v442 = vpop.f32.mrf.mxu0
        %v443 = vadd.f32 %v284, %v442
        %444 = vmatmul.f32.gmra.mxu0 %v326
        %v445 = vpop.f32.mrf.mxu0
        %v446 = vadd.f32 %v284, %v445
        %447 = vmatmul.f32.gmra.mxu0 %v329
        %v448 = vpop.f32.mrf.mxu0
        %v449 = vadd.f32 %v284, %v448
        %450 = vmatmul.f32.gmra.mxu0 %v332
        %v451 = vpop.f32.mrf.mxu0
        %v452 = vadd.f32 %v284, %v451
        %453 = vmatmul.f32.gmra.mxu0 %v335
        %v454 = vpop.f32.mrf.mxu0
        %v455 = vadd.f32 %v284, %v454
        %456 = vmatmul.f32.gmra.mxu0 %v338
        %v457 = vpop.f32.mrf.mxu0
        %v458 = vadd.f32 %v284, %v457
        %459 = vmatmul.f32.gmra.mxu0 %v341
        %v460 = vpop.f32.mrf.mxu0
        %v461 = vadd.f32 %v284, %v460
        %462 = vmatmul.f32.gmra.mxu0 %v344
        %v463 = vpop.f32.mrf.mxu0
        %v464 = vadd.f32 %v284, %v463
        %465 = vmatmul.f32.gmra.mxu0 %v347
        %v466 = vpop.f32.mrf.mxu0
        %v467 = vadd.f32 %v284, %v466
        %468 = vmatmul.f32.gmra.mxu0 %v350
        %v469 = vpop.f32.mrf.mxu0
        %v470 = vadd.f32 %v284, %v469
        %471 = vmatmul.f32.gmra.mxu0 %v353
        %v472 = vpop.f32.mrf.mxu0
        %v473 = vadd.f32 %v284, %v472
        %474 = vmatmul.f32.gmra.mxu0 %v356
        %v475 = vpop.f32.mrf.mxu0
        %v476 = vadd.f32 %v284, %v475
        %477 = vmatmul.f32.gmra.mxu0 %v359
        %v478 = vpop.f32.mrf.mxu0
        %v479 = vadd.f32 %v284, %v478
        %480 = vmatmul.f32.gmra.mxu0 %v362
        %v481 = vpop.f32.mrf.mxu0
        %v482 = vadd.f32 %v284, %v481
        %483 = vmatmul.f32.gmra.mxu0 %v365
        %v484 = vpop.f32.mrf.mxu0
        %v485 = vadd.f32 %v284, %v484
        %486 = vmatmul.f32.gmra.mxu0 %v368
        %v487 = vpop.f32.mrf.mxu0
        %v488 = vadd.f32 %v284, %v487
        %489 = vmatmul.f32.gmra.mxu0 %v371
        %v490 = vpop.f32.mrf.mxu0
        %v491 = vadd.f32 %v284, %v490
        %492 = vmatmul.f32.gmra.mxu0 %v374
        %v493 = vpop.f32.mrf.mxu0
        %v494 = vadd.f32 %v284, %v493
        %495 = vmatmul.f32.gmra.mxu0 %v377
        %v496 = vpop.f32.mrf.mxu0
        %v497 = vadd.f32 %v284, %v496
        %498 = vmatmul.f32.gmra.mxu0 %v380
        %v499 = vpop.f32.mrf.mxu0
        %v500 = vadd.f32 %v284, %v499
        %501 = vmatmul.f32.gmra.mxu0 %v383
        %v502 = vpop.f32.mrf.mxu0
        %v503 = vadd.f32 %v284, %v502
        %504 = vdwg.mxu0
        %505 = vmatpush.msra.mxu0 0.0
        %506 = vmatpush.msra.mxu0 0.0
        %507 = vmatpush.msra.mxu0 0.0
        %508 = vmatpush.msra.mxu0 0.0
        %509 = vmatpush.msra.mxu0 %v390
        %510 = vmatpush.msra.mxu0 %v279
        %511 = vmatpush.msra.mxu0 %v277
        %512 = vmatpush.msra.mxu0 %v275
        %513 = vmatpush.msra.mxu0 %v273
        %514 = vmatpush.msra.mxu0 %v271
        %515 = vmatpush.msra.mxu0 %v269
        %516 = vmatpush.msra.mxu0 %v267
        %517 = vmatpush.msra.mxu0 %v265
        %518 = vmatpush.msra.mxu0 %v263
        %519 = vmatpush.msra.mxu0 %v261
        %520 = vmatpush.msra.mxu0 %v259
        %521 = vmatmul.f32.gmra.mxu0 %v290
        %v522 = vpop.f32.mrf.mxu0
        %v523 = vadd.f32 %v285, %v522
        %524 = vmatmul.f32.gmra.mxu0 %v293
        %v525 = vpop.f32.mrf.mxu0
        %v526 = vadd.f32 %v285, %v525
        %527 = vmatmul.f32.gmra.mxu0 %v296
        %v528 = vpop.f32.mrf.mxu0
        %v529 = vadd.f32 %v285, %v528
        %530 = vmatmul.f32.gmra.mxu0 %v299
        %v531 = vpop.f32.mrf.mxu0
        %v532 = vadd.f32 %v285, %v531
        %533 = vmatmul.f32.gmra.mxu0 %v302
        %v534 = vpop.f32.mrf.mxu0
        %v535 = vadd.f32 %v285, %v534
        %536 = vmatmul.f32.gmra.mxu0 %v305
        %v537 = vpop.f32.mrf.mxu0
        %v538 = vadd.f32 %v285, %v537
        %539 = vmatmul.f32.gmra.mxu0 %v308
        %v540 = vpop.f32.mrf.mxu0
        %v541 = vadd.f32 %v285, %v540
        %542 = vmatmul.f32.gmra.mxu0 %v311
        %v543 = vpop.f32.mrf.mxu0
        %v544 = vadd.f32 %v285, %v543
        %545 = vmatmul.f32.gmra.mxu0 %v314
        %v546 = vpop.f32.mrf.mxu0
        %v547 = vadd.f32 %v285, %v546
        %548 = vmatmul.f32.gmra.mxu0 %v317
        %v549 = vpop.f32.mrf.mxu0
        %v550 = vadd.f32 %v285, %v549
        %551 = vmatmul.f32.gmra.mxu0 %v320
        %v552 = vpop.f32.mrf.mxu0
        %v553 = vadd.f32 %v285, %v552
        %554 = vmatmul.f32.gmra.mxu0 %v323
        %v555 = vpop.f32.mrf.mxu0
        %v556 = vadd.f32 %v285, %v555
        %557 = vmatmul.f32.gmra.mxu0 %v326
        %v558 = vpop.f32.mrf.mxu0
        %v559 = vadd.f32 %v285, %v558
        %560 = vmatmul.f32.gmra.mxu0 %v329
        %v561 = vpop.f32.mrf.mxu0
        %v562 = vadd.f32 %v285, %v561
        %563 = vmatmul.f32.gmra.mxu0 %v332
        %v564 = vpop.f32.mrf.mxu0
        %v565 = vadd.f32 %v285, %v564
        %566 = vmatmul.f32.gmra.mxu0 %v335
        %v567 = vpop.f32.mrf.mxu0
        %v568 = vadd.f32 %v285, %v567
        %569 = vmatmul.f32.gmra.mxu0 %v338
        %v570 = vpop.f32.mrf.mxu0
        %v571 = vadd.f32 %v285, %v570
        %572 = vmatmul.f32.gmra.mxu0 %v341
        %v573 = vpop.f32.mrf.mxu0
        %v574 = vadd.f32 %v285, %v573
        %575 = vmatmul.f32.gmra.mxu0 %v344
        %v576 = vpop.f32.mrf.mxu0
        %v577 = vadd.f32 %v285, %v576
        %578 = vmatmul.f32.gmra.mxu0 %v347
        %v579 = vpop.f32.mrf.mxu0
        %v580 = vadd.f32 %v285, %v579
        %581 = vmatmul.f32.gmra.mxu0 %v350
        %v582 = vpop.f32.mrf.mxu0
        %v583 = vadd.f32 %v285, %v582
        %584 = vmatmul.f32.gmra.mxu0 %v353
        %v585 = vpop.f32.mrf.mxu0
        %v586 = vadd.f32 %v285, %v585
        %587 = vmatmul.f32.gmra.mxu0 %v356
        %v588 = vpop.f32.mrf.mxu0
        %v589 = vadd.f32 %v285, %v588
        %590 = vmatmul.f32.gmra.mxu0 %v359
        %v591 = vpop.f32.mrf.mxu0
        %v592 = vadd.f32 %v285, %v591
        %593 = vmatmul.f32.gmra.mxu0 %v362
        %v594 = vpop.f32.mrf.mxu0
        %v595 = vadd.f32 %v285, %v594
        %596 = vmatmul.f32.gmra.mxu0 %v365
        %v597 = vpop.f32.mrf.mxu0
        %v598 = vadd.f32 %v285, %v597
        %599 = vmatmul.f32.gmra.mxu0 %v368
        %v600 = vpop.f32.mrf.mxu0
        %v601 = vadd.f32 %v285, %v600
        %602 = vmatmul.f32.gmra.mxu0 %v371
        %v603 = vpop.f32.mrf.mxu0
        %v604 = vadd.f32 %v285, %v603
        %605 = vmatmul.f32.gmra.mxu0 %v374
        %v606 = vpop.f32.mrf.mxu0
        %v607 = vadd.f32 %v285, %v606
        %608 = vmatmul.f32.gmra.mxu0 %v377
        %v609 = vpop.f32.mrf.mxu0
        %v610 = vadd.f32 %v285, %v609
        %611 = vmatmul.f32.gmra.mxu0 %v380
        %v612 = vpop.f32.mrf.mxu0
        %v613 = vadd.f32 %v285, %v612
        %614 = vmatmul.f32.gmra.mxu0 %v383
        %v615 = vpop.f32.mrf.mxu0
        %v616 = vadd.f32 %v285, %v615
        %617 = vdwg.mxu0
        %v618 = vld [vmem:[%s3] sm:$0x3]
        %v619 = vld [vmem:[%s4] sm:$0x3]
        %v620 = vadd.f32 %v410, %v523
        %621 = vadd.xlane.f32.xlu0 %v620
        %v622 = vpop.xlane.xlu0 %621
        %v623 = vadd.f32 %v413, %v526
        %624 = vadd.xlane.f32.xlu0 %v623
        %v625 = vpop.xlane.xlu0 %624
        %v626 = vadd.f32 %v416, %v529
        %627 = vadd.xlane.f32.xlu0 %v626
        %v628 = vpop.xlane.xlu0 %627
        %v629 = vadd.f32 %v419, %v532
        %630 = vadd.xlane.f32.xlu0 %v629
        %v631 = vpop.xlane.xlu0 %630
        %v632 = vadd.f32 %v422, %v535
        %633 = vadd.xlane.f32.xlu0 %v632
        %v634 = vpop.xlane.xlu0 %633
        %v635 = vadd.f32 %v425, %v538
        %636 = vadd.xlane.f32.xlu0 %v635
        %v637 = vpop.xlane.xlu0 %636
        %v638 = vadd.f32 %v428, %v541
        %639 = vadd.xlane.f32.xlu0 %v638
        %v640 = vpop.xlane.xlu0 %639
        %v641 = vadd.f32 %v431, %v544
        %642 = vadd.xlane.f32.xlu0 %v641
        %v643 = vpop.xlane.xlu0 %642
        %v644 = vadd.f32 %v434, %v547
        %645 = vadd.xlane.f32.xlu0 %v644
        %v646 = vpop.xlane.xlu0 %645
        %v647 = vadd.f32 %v437, %v550
        %648 = vadd.xlane.f32.xlu0 %v647
        %v649 = vpop.xlane.xlu0 %648
        %v650 = vadd.f32 %v440, %v553
        %651 = vadd.xlane.f32.xlu0 %v650
        %v652 = vpop.xlane.xlu0 %651
        %v653 = vadd.f32 %v443, %v556
        %654 = vadd.xlane.f32.xlu0 %v653
        %v655 = vpop.xlane.xlu0 %654
        %v656 = vadd.f32 %v446, %v559
        %657 = vadd.xlane.f32.xlu0 %v656
        %v658 = vpop.xlane.xlu0 %657
        %v659 = vadd.f32 %v449, %v562
        %660 = vadd.xlane.f32.xlu0 %v659
        %v661 = vpop.xlane.xlu0 %660
        %v662 = vadd.f32 %v452, %v565
        %663 = vadd.xlane.f32.xlu0 %v662
        %v664 = vpop.xlane.xlu0 %663
        %v665 = vadd.f32 %v455, %v568
        %666 = vadd.xlane.f32.xlu0 %v665
        %v667 = vpop.xlane.xlu0 %666
        %v668 = vadd.f32 %v458, %v571
        %669 = vadd.xlane.f32.xlu0 %v668
        %v670 = vpop.xlane.xlu0 %669
        %v671 = vadd.f32 %v461, %v574
        %672 = vadd.xlane.f32.xlu0 %v671
        %v673 = vpop.xlane.xlu0 %672
        %v674 = vadd.f32 %v464, %v577
        %675 = vadd.xlane.f32.xlu0 %v674
        %v676 = vpop.xlane.xlu0 %675
        %v677 = vadd.f32 %v467, %v580
        %678 = vadd.xlane.f32.xlu0 %v677
        %v679 = vpop.xlane.xlu0 %678
        %v680 = vadd.f32 %v470, %v583
        %681 = vadd.xlane.f32.xlu0 %v680
        %v682 = vpop.xlane.xlu0 %681
        %v683 = vadd.f32 %v473, %v586
        %684 = vadd.xlane.f32.xlu0 %v683
        %v685 = vpop.xlane.xlu0 %684
        %v686 = vadd.f32 %v476, %v589
        %687 = vadd.xlane.f32.xlu0 %v686
        %v688 = vpop.xlane.xlu0 %687
        %v689 = vadd.f32 %v479, %v592
        %690 = vadd.xlane.f32.xlu0 %v689
        %v691 = vpop.xlane.xlu0 %690
        %v692 = vadd.f32 %v482, %v595
        %693 = vadd.xlane.f32.xlu0 %v692
        %v694 = vpop.xlane.xlu0 %693
        %v695 = vadd.f32 %v485, %v598
        %696 = vadd.xlane.f32.xlu0 %v695
        %v697 = vpop.xlane.xlu0 %696
        %v698 = vadd.f32 %v488, %v601
        %699 = vadd.xlane.f32.xlu0 %v698
        %v700 = vpop.xlane.xlu0 %699
        %v701 = vadd.f32 %v491, %v604
        %702 = vadd.xlane.f32.xlu0 %v701
        %v703 = vpop.xlane.xlu0 %702
        %v704 = vadd.f32 %v494, %v607
        %705 = vadd.xlane.f32.xlu0 %v704
        %v706 = vpop.xlane.xlu0 %705
        %v707 = vadd.f32 %v497, %v610
        %708 = vadd.xlane.f32.xlu0 %v707
        %v709 = vpop.xlane.xlu0 %708
        %v710 = vadd.f32 %v500, %v613
        %711 = vadd.xlane.f32.xlu0 %v710
        %v712 = vpop.xlane.xlu0 %711
        %v713 = vadd.f32 %v503, %v616
        %714 = vadd.xlane.f32.xlu0 %v713
        %v715 = vpop.xlane.xlu0 %714
        %v716 = vmul.f32 %v410, %v410
        %v717 = vmul.f32 %v523, %v523
        %v718 = vmul.f32 %v413, %v413
        %v719 = vmul.f32 %v526, %v526
        %v720 = vmul.f32 %v416, %v416
        %v721 = vmul.f32 %v529, %v529
        %v722 = vmul.f32 %v419, %v419
        %v723 = vmul.f32 %v532, %v532
        %v724 = vmul.f32 %v422, %v422
        %v725 = vmul.f32 %v535, %v535
        %v726 = vmul.f32 %v425, %v425
        %v727 = vmul.f32 %v538, %v538
        %v728 = vmul.f32 %v428, %v428
        %v729 = vmul.f32 %v541, %v541
        %v730 = vmul.f32 %v431, %v431
        %v731 = vmul.f32 %v544, %v544
        %v732 = vmul.f32 %v434, %v434
        %v733 = vmul.f32 %v547, %v547
        %v734 = vmul.f32 %v437, %v437
        %v735 = vmul.f32 %v550, %v550
        %v736 = vmul.f32 %v440, %v440
        %v737 = vmul.f32 %v553, %v553
        %v738 = vmul.f32 %v443, %v443
        %v739 = vmul.f32 %v556, %v556
        %v740 = vmul.f32 %v446, %v446
        %v741 = vmul.f32 %v559, %v559
        %v742 = vmul.f32 %v449, %v449
        %v743 = vmul.f32 %v562, %v562
        %v744 = vmul.f32 %v452, %v452
        %v745 = vmul.f32 %v565, %v565
        %v746 = vmul.f32 %v455, %v455
        %v747 = vmul.f32 %v568, %v568
        %v748 = vmul.f32 %v458, %v458
        %v749 = vmul.f32 %v571, %v571
        %v750 = vmul.f32 %v461, %v461
        %v751 = vmul.f32 %v574, %v574
        %v752 = vmul.f32 %v464, %v464
        %v753 = vmul.f32 %v577, %v577
        %v754 = vmul.f32 %v467, %v467
        %v755 = vmul.f32 %v580, %v580
        %v756 = vmul.f32 %v470, %v470
        %v757 = vmul.f32 %v583, %v583
        %v758 = vmul.f32 %v473, %v473
        %v759 = vmul.f32 %v586, %v586
        %v760 = vmul.f32 %v476, %v476
        %v761 = vmul.f32 %v589, %v589
        %v762 = vmul.f32 %v479, %v479
        %v763 = vmul.f32 %v592, %v592
        %v764 = vmul.f32 %v482, %v482
        %v765 = vmul.f32 %v595, %v595
        %v766 = vmul.f32 %v485, %v485
        %v767 = vmul.f32 %v598, %v598
        %v768 = vmul.f32 %v488, %v488
        %v769 = vmul.f32 %v601, %v601
        %v770 = vmul.f32 %v491, %v491
        %v771 = vmul.f32 %v604, %v604
        %v772 = vmul.f32 %v494, %v494
        %v773 = vmul.f32 %v607, %v607
        %v774 = vmul.f32 %v497, %v497
        %v775 = vmul.f32 %v610, %v610
        %v776 = vmul.f32 %v500, %v500
        %v777 = vmul.f32 %v613, %v613
        %v778 = vmul.f32 %v503, %v503
        %v779 = vmul.f32 %v616, %v616
        %v780 = vadd.f32 %v716, %v717
        %781 = vadd.xlane.f32.xlu0 %v780
        %v782 = vpop.xlane.xlu0 %781
        %v783 = vadd.f32 %v718, %v719
        %784 = vadd.xlane.f32.xlu0 %v783
        %v785 = vpop.xlane.xlu0 %784
        %v786 = vadd.f32 %v720, %v721
        %787 = vadd.xlane.f32.xlu0 %v786
        %v788 = vpop.xlane.xlu0 %787
        %v789 = vadd.f32 %v722, %v723
        %790 = vadd.xlane.f32.xlu0 %v789
        %v791 = vpop.xlane.xlu0 %790
        %v792 = vadd.f32 %v724, %v725
        %793 = vadd.xlane.f32.xlu0 %v792
        %v794 = vpop.xlane.xlu0 %793
        %v795 = vadd.f32 %v726, %v727
        %796 = vadd.xlane.f32.xlu0 %v795
        %v797 = vpop.xlane.xlu0 %796
        %v798 = vadd.f32 %v728, %v729
        %799 = vadd.xlane.f32.xlu0 %v798
        %v800 = vpop.xlane.xlu0 %799
        %v801 = vadd.f32 %v730, %v731
        %802 = vadd.xlane.f32.xlu0 %v801
        %v803 = vpop.xlane.xlu0 %802
        %v804 = vadd.f32 %v732, %v733
        %805 = vadd.xlane.f32.xlu0 %v804
        %v806 = vpop.xlane.xlu0 %805
        %v807 = vadd.f32 %v734, %v735
        %808 = vadd.xlane.f32.xlu0 %v807
        %v809 = vpop.xlane.xlu0 %808
        %v810 = vadd.f32 %v736, %v737
        %811 = vadd.xlane.f32.xlu0 %v810
        %v812 = vpop.xlane.xlu0 %811
        %v813 = vadd.f32 %v738, %v739
        %814 = vadd.xlane.f32.xlu0 %v813
        %v815 = vpop.xlane.xlu0 %814
        %v816 = vadd.f32 %v740, %v741
        %817 = vadd.xlane.f32.xlu0 %v816
        %v818 = vpop.xlane.xlu0 %817
        %v819 = vadd.f32 %v742, %v743
        %820 = vadd.xlane.f32.xlu0 %v819
        %v821 = vpop.xlane.xlu0 %820
        %v822 = vadd.f32 %v744, %v745
        %823 = vadd.xlane.f32.xlu0 %v822
        %v824 = vpop.xlane.xlu0 %823
        %v825 = vadd.f32 %v746, %v747
        %826 = vadd.xlane.f32.xlu0 %v825
        %v827 = vpop.xlane.xlu0 %826
        %v828 = vadd.f32 %v748, %v749
        %829 = vadd.xlane.f32.xlu0 %v828
        %v830 = vpop.xlane.xlu0 %829
        %v831 = vadd.f32 %v750, %v751
        %832 = vadd.xlane.f32.xlu0 %v831
        %v833 = vpop.xlane.xlu0 %832
        %v834 = vadd.f32 %v752, %v753
        %835 = vadd.xlane.f32.xlu0 %v834
        %v836 = vpop.xlane.xlu0 %835
        %v837 = vadd.f32 %v754, %v755
        %838 = vadd.xlane.f32.xlu0 %v837
        %v839 = vpop.xlane.xlu0 %838
        %v840 = vadd.f32 %v756, %v757
        %841 = vadd.xlane.f32.xlu0 %v840
        %v842 = vpop.xlane.xlu0 %841
        %v843 = vadd.f32 %v758, %v759
        %844 = vadd.xlane.f32.xlu0 %v843
        %v845 = vpop.xlane.xlu0 %844
        %v846 = vadd.f32 %v760, %v761
        %847 = vadd.xlane.f32.xlu0 %v846
        %v848 = vpop.xlane.xlu0 %847
        %v849 = vadd.f32 %v762, %v763
        %850 = vadd.xlane.f32.xlu0 %v849
        %v851 = vpop.xlane.xlu0 %850
        %v852 = vadd.f32 %v764, %v765
        %853 = vadd.xlane.f32.xlu0 %v852
        %v854 = vpop.xlane.xlu0 %853
        %v855 = vadd.f32 %v766, %v767
        %856 = vadd.xlane.f32.xlu0 %v855
        %v857 = vpop.xlane.xlu0 %856
        %v858 = vadd.f32 %v768, %v769
        %859 = vadd.xlane.f32.xlu0 %v858
        %v860 = vpop.xlane.xlu0 %859
        %v861 = vadd.f32 %v770, %v771
        %862 = vadd.xlane.f32.xlu0 %v861
        %v863 = vpop.xlane.xlu0 %862
        %v864 = vadd.f32 %v772, %v773
        %865 = vadd.xlane.f32.xlu0 %v864
        %v866 = vpop.xlane.xlu0 %865
        %v867 = vadd.f32 %v774, %v775
        %868 = vadd.xlane.f32.xlu0 %v867
        %v869 = vpop.xlane.xlu0 %868
        %v870 = vadd.f32 %v776, %v777
        %871 = vadd.xlane.f32.xlu0 %v870
        %v872 = vpop.xlane.xlu0 %871
        %v873 = vadd.f32 %v778, %v779
        %874 = vadd.xlane.f32.xlu0 %v873
        %v875 = vpop.xlane.xlu0 %874
        %v876 = vmul.f32 %v622, 0.00390625
        %v877 = vmul.f32 %v625, 0.00390625
        %v878 = vmul.f32 %v628, 0.00390625
        %v879 = vmul.f32 %v631, 0.00390625
        %v880 = vmul.f32 %v634, 0.00390625
        %v881 = vmul.f32 %v637, 0.00390625
        %v882 = vmul.f32 %v640, 0.00390625
        %v883 = vmul.f32 %v643, 0.00390625
        %v884 = vmul.f32 %v646, 0.00390625
        %v885 = vmul.f32 %v649, 0.00390625
        %v886 = vmul.f32 %v652, 0.00390625
        %v887 = vmul.f32 %v655, 0.00390625
        %v888 = vmul.f32 %v658, 0.00390625
        %v889 = vmul.f32 %v661, 0.00390625
        %v890 = vmul.f32 %v664, 0.00390625
        %v891 = vmul.f32 %v667, 0.00390625
        %v892 = vmul.f32 %v670, 0.00390625
        %v893 = vmul.f32 %v673, 0.00390625
        %v894 = vmul.f32 %v676, 0.00390625
        %v895 = vmul.f32 %v679, 0.00390625
        %v896 = vmul.f32 %v682, 0.00390625
        %v897 = vmul.f32 %v685, 0.00390625
        %v898 = vmul.f32 %v688, 0.00390625
        %v899 = vmul.f32 %v691, 0.00390625
        %v900 = vmul.f32 %v694, 0.00390625
        %v901 = vmul.f32 %v697, 0.00390625
        %v902 = vmul.f32 %v700, 0.00390625
        %v903 = vmul.f32 %v703, 0.00390625
        %v904 = vmul.f32 %v706, 0.00390625
        %v905 = vmul.f32 %v709, 0.00390625
        %v906 = vmul.f32 %v712, 0.00390625
        %v907 = vmul.f32 %v715, 0.00390625
        %v908 = vmul.f32 %v782, 0.00390625
        %v909 = vmul.f32 %v785, 0.00390625
        %v910 = vmul.f32 %v788, 0.00390625
        %v911 = vmul.f32 %v791, 0.00390625
        %v912 = vmul.f32 %v794, 0.00390625
        %v913 = vmul.f32 %v797, 0.00390625
        %v914 = vmul.f32 %v800, 0.00390625
        %v915 = vmul.f32 %v803, 0.00390625
        %v916 = vmul.f32 %v806, 0.00390625
        %v917 = vmul.f32 %v809, 0.00390625
        %v918 = vmul.f32 %v812, 0.00390625
        %v919 = vmul.f32 %v815, 0.00390625
        %v920 = vmul.f32 %v818, 0.00390625
        %v921 = vmul.f32 %v821, 0.00390625
        %v922 = vmul.f32 %v824, 0.00390625
        %v923 = vmul.f32 %v827, 0.00390625
        %v924 = vmul.f32 %v830, 0.00390625
        %v925 = vmul.f32 %v833, 0.00390625
        %v926 = vmul.f32 %v836, 0.00390625
        %v927 = vmul.f32 %v839, 0.00390625
        %v928 = vmul.f32 %v842, 0.00390625
        %v929 = vmul.f32 %v845, 0.00390625
        %v930 = vmul.f32 %v848, 0.00390625
        %v931 = vmul.f32 %v851, 0.00390625
        %v932 = vmul.f32 %v854, 0.00390625
        %v933 = vmul.f32 %v857, 0.00390625
        %v934 = vmul.f32 %v860, 0.00390625
        %v935 = vmul.f32 %v863, 0.00390625
        %v936 = vmul.f32 %v866, 0.00390625
        %v937 = vmul.f32 %v869, 0.00390625
        %v938 = vmul.f32 %v872, 0.00390625
        %v939 = vmul.f32 %v875, 0.00390625
        %v940 = vmul.f32 %v876, %v876
        %v941 = vmul.f32 %v877, %v877
        %v942 = vmul.f32 %v878, %v878
        %v943 = vmul.f32 %v879, %v879
        %v944 = vmul.f32 %v880, %v880
        %v945 = vmul.f32 %v881, %v881
        %v946 = vmul.f32 %v882, %v882
        %v947 = vmul.f32 %v883, %v883
        %v948 = vmul.f32 %v884, %v884
        %v949 = vmul.f32 %v885, %v885
        %v950 = vmul.f32 %v886, %v886
        %v951 = vmul.f32 %v887, %v887
        %v952 = vmul.f32 %v888, %v888
        %v953 = vmul.f32 %v889, %v889
        %v954 = vmul.f32 %v890, %v890
        %v955 = vmul.f32 %v891, %v891
        %v956 = vmul.f32 %v892, %v892
        %v957 = vmul.f32 %v893, %v893
        %v958 = vmul.f32 %v894, %v894
        %v959 = vmul.f32 %v895, %v895
        %v960 = vmul.f32 %v896, %v896
        %v961 = vmul.f32 %v897, %v897
        %v962 = vmul.f32 %v898, %v898
        %v963 = vmul.f32 %v899, %v899
        %v964 = vmul.f32 %v900, %v900
        %v965 = vmul.f32 %v901, %v901
        %v966 = vmul.f32 %v902, %v902
        %v967 = vmul.f32 %v903, %v903
        %v968 = vmul.f32 %v904, %v904
        %v969 = vmul.f32 %v905, %v905
        %v970 = vmul.f32 %v906, %v906
        %v971 = vmul.f32 %v907, %v907
        %v972 = vsub.f32 %v908, %v940
        %v973 = vsub.f32 %v909, %v941
        %v974 = vsub.f32 %v910, %v942
        %v975 = vsub.f32 %v911, %v943
        %v976 = vsub.f32 %v912, %v944
        %v977 = vsub.f32 %v913, %v945
        %v978 = vsub.f32 %v914, %v946
        %v979 = vsub.f32 %v915, %v947
        %v980 = vsub.f32 %v916, %v948
        %v981 = vsub.f32 %v917, %v949
        %v982 = vsub.f32 %v918, %v950
        %v983 = vsub.f32 %v919, %v951
        %v984 = vsub.f32 %v920, %v952
        %v985 = vsub.f32 %v921, %v953
        %v986 = vsub.f32 %v922, %v954
        %v987 = vsub.f32 %v923, %v955
        %v988 = vsub.f32 %v924, %v956
        %v989 = vsub.f32 %v925, %v957
        %v990 = vsub.f32 %v926, %v958
        %v991 = vsub.f32 %v927, %v959
        %v992 = vsub.f32 %v928, %v960
        %v993 = vsub.f32 %v929, %v961
        %v994 = vsub.f32 %v930, %v962
        %v995 = vsub.f32 %v931, %v963
        %v996 = vsub.f32 %v932, %v964
        %v997 = vsub.f32 %v933, %v965
        %v998 = vsub.f32 %v934, %v966
        %v999 = vsub.f32 %v935, %v967
        %v1000 = vsub.f32 %v936, %v968
        %v1001 = vsub.f32 %v937, %v969
        %v1002 = vsub.f32 %v938, %v970
        %v1003 = vsub.f32 %v939, %v971
        %v1004 = vadd.f32 %v972, 1e-05
        %v1005 = vadd.f32 %v973, 1e-05
        %v1006 = vadd.f32 %v974, 1e-05
        %v1007 = vadd.f32 %v975, 1e-05
        %v1008 = vadd.f32 %v976, 1e-05
        %v1009 = vadd.f32 %v977, 1e-05
        %v1010 = vadd.f32 %v978, 1e-05
        %v1011 = vadd.f32 %v979, 1e-05
        %v1012 = vadd.f32 %v980, 1e-05
        %v1013 = vadd.f32 %v981, 1e-05
        %v1014 = vadd.f32 %v982, 1e-05
        %v1015 = vadd.f32 %v983, 1e-05
        %v1016 = vadd.f32 %v984, 1e-05
        %v1017 = vadd.f32 %v985, 1e-05
        %v1018 = vadd.f32 %v986, 1e-05
        %v1019 = vadd.f32 %v987, 1e-05
        %v1020 = vadd.f32 %v988, 1e-05
        %v1021 = vadd.f32 %v989, 1e-05
        %v1022 = vadd.f32 %v990, 1e-05
        %v1023 = vadd.f32 %v991, 1e-05
        %v1024 = vadd.f32 %v992, 1e-05
        %v1025 = vadd.f32 %v993, 1e-05
        %v1026 = vadd.f32 %v994, 1e-05
        %v1027 = vadd.f32 %v995, 1e-05
        %v1028 = vadd.f32 %v996, 1e-05
        %v1029 = vadd.f32 %v997, 1e-05
        %v1030 = vadd.f32 %v998, 1e-05
        %v1031 = vadd.f32 %v999, 1e-05
        %v1032 = vadd.f32 %v1000, 1e-05
        %v1033 = vadd.f32 %v1001, 1e-05
        %v1034 = vadd.f32 %v1002, 1e-05
        %v1035 = vadd.f32 %v1003, 1e-05
        %v1036 = vrsqrt.pop %v1004
        %v1037 = vmul.f32 %v1036, %v1004
        %v1038 = vmul.f32 %v1037, %v1036
        %v1039 = vmul.f32 0.5, %v1038
        %v1040 = vsub.f32 1.5, %v1039
        %v1041 = vmul.f32 %v1036, %v1040
        %vm1042 = vweird.f32 %v1004
        %vm1043 = vweird.f32 %v1036
        %vm1044 = vmor %vm1042, %vm1043
        %v1045 = vsel %vm1044, %v1036, %v1041
        %v1046 = vrsqrt.pop %v1005
        %v1047 = vmul.f32 %v1046, %v1005
        %v1048 = vmul.f32 %v1047, %v1046
        %v1049 = vmul.f32 0.5, %v1048
        %v1050 = vsub.f32 1.5, %v1049
        %v1051 = vmul.f32 %v1046, %v1050
        %vm1052 = vweird.f32 %v1005
        %vm1053 = vweird.f32 %v1046
        %vm1054 = vmor %vm1052, %vm1053
        %v1055 = vsel %vm1054, %v1046, %v1051
        %v1056 = vrsqrt.pop %v1006
        %v1057 = vmul.f32 %v1056, %v1006
        %v1058 = vmul.f32 %v1057, %v1056
        %v1059 = vmul.f32 0.5, %v1058
        %v1060 = vsub.f32 1.5, %v1059
        %v1061 = vmul.f32 %v1056, %v1060
        %vm1062 = vweird.f32 %v1006
        %vm1063 = vweird.f32 %v1056
        %vm1064 = vmor %vm1062, %vm1063
        %v1065 = vsel %vm1064, %v1056, %v1061
        %v1066 = vrsqrt.pop %v1007
        %v1067 = vmul.f32 %v1066, %v1007
        %v1068 = vmul.f32 %v1067, %v1066
        %v1069 = vmul.f32 0.5, %v1068
        %v1070 = vsub.f32 1.5, %v1069
        %v1071 = vmul.f32 %v1066, %v1070
        %vm1072 = vweird.f32 %v1007
        %vm1073 = vweird.f32 %v1066
        %vm1074 = vmor %vm1072, %vm1073
        %v1075 = vsel %vm1074, %v1066, %v1071
        %v1076 = vrsqrt.pop %v1008
        %v1077 = vmul.f32 %v1076, %v1008
        %v1078 = vmul.f32 %v1077, %v1076
        %v1079 = vmul.f32 0.5, %v1078
        %v1080 = vsub.f32 1.5, %v1079
        %v1081 = vmul.f32 %v1076, %v1080
        %vm1082 = vweird.f32 %v1008
        %vm1083 = vweird.f32 %v1076
        %vm1084 = vmor %vm1082, %vm1083
        %v1085 = vsel %vm1084, %v1076, %v1081
        %v1086 = vrsqrt.pop %v1009
        %v1087 = vmul.f32 %v1086, %v1009
        %v1088 = vmul.f32 %v1087, %v1086
        %v1089 = vmul.f32 0.5, %v1088
        %v1090 = vsub.f32 1.5, %v1089
        %v1091 = vmul.f32 %v1086, %v1090
        %vm1092 = vweird.f32 %v1009
        %vm1093 = vweird.f32 %v1086
        %vm1094 = vmor %vm1092, %vm1093
        %v1095 = vsel %vm1094, %v1086, %v1091
        %v1096 = vrsqrt.pop %v1010
        %v1097 = vmul.f32 %v1096, %v1010
        %v1098 = vmul.f32 %v1097, %v1096
        %v1099 = vmul.f32 0.5, %v1098
        %v1100 = vsub.f32 1.5, %v1099
        %v1101 = vmul.f32 %v1096, %v1100
        %vm1102 = vweird.f32 %v1010
        %vm1103 = vweird.f32 %v1096
        %vm1104 = vmor %vm1102, %vm1103
        %v1105 = vsel %vm1104, %v1096, %v1101
        %v1106 = vrsqrt.pop %v1011
        %v1107 = vmul.f32 %v1106, %v1011
        %v1108 = vmul.f32 %v1107, %v1106
        %v1109 = vmul.f32 0.5, %v1108
        %v1110 = vsub.f32 1.5, %v1109
        %v1111 = vmul.f32 %v1106, %v1110
        %vm1112 = vweird.f32 %v1011
        %vm1113 = vweird.f32 %v1106
        %vm1114 = vmor %vm1112, %vm1113
        %v1115 = vsel %vm1114, %v1106, %v1111
        %v1116 = vrsqrt.pop %v1012
        %v1117 = vmul.f32 %v1116, %v1012
        %v1118 = vmul.f32 %v1117, %v1116
        %v1119 = vmul.f32 0.5, %v1118
        %v1120 = vsub.f32 1.5, %v1119
        %v1121 = vmul.f32 %v1116, %v1120
        %vm1122 = vweird.f32 %v1012
        %vm1123 = vweird.f32 %v1116
        %vm1124 = vmor %vm1122, %vm1123
        %v1125 = vsel %vm1124, %v1116, %v1121
        %v1126 = vrsqrt.pop %v1013
        %v1127 = vmul.f32 %v1126, %v1013
        %v1128 = vmul.f32 %v1127, %v1126
        %v1129 = vmul.f32 0.5, %v1128
        %v1130 = vsub.f32 1.5, %v1129
        %v1131 = vmul.f32 %v1126, %v1130
        %vm1132 = vweird.f32 %v1013
        %vm1133 = vweird.f32 %v1126
        %vm1134 = vmor %vm1132, %vm1133
        %v1135 = vsel %vm1134, %v1126, %v1131
        %v1136 = vrsqrt.pop %v1014
        %v1137 = vmul.f32 %v1136, %v1014
        %v1138 = vmul.f32 %v1137, %v1136
        %v1139 = vmul.f32 0.5, %v1138
        %v1140 = vsub.f32 1.5, %v1139
        %v1141 = vmul.f32 %v1136, %v1140
        %vm1142 = vweird.f32 %v1014
        %vm1143 = vweird.f32 %v1136
        %vm1144 = vmor %vm1142, %vm1143
        %v1145 = vsel %vm1144, %v1136, %v1141
        %v1146 = vrsqrt.pop %v1015
        %v1147 = vmul.f32 %v1146, %v1015
        %v1148 = vmul.f32 %v1147, %v1146
        %v1149 = vmul.f32 0.5, %v1148
        %v1150 = vsub.f32 1.5, %v1149
        %v1151 = vmul.f32 %v1146, %v1150
        %vm1152 = vweird.f32 %v1015
        %vm1153 = vweird.f32 %v1146
        %vm1154 = vmor %vm1152, %vm1153
        %v1155 = vsel %vm1154, %v1146, %v1151
        %v1156 = vrsqrt.pop %v1016
        %v1157 = vmul.f32 %v1156, %v1016
        %v1158 = vmul.f32 %v1157, %v1156
        %v1159 = vmul.f32 0.5, %v1158
        %v1160 = vsub.f32 1.5, %v1159
        %v1161 = vmul.f32 %v1156, %v1160
        %vm1162 = vweird.f32 %v1016
        %vm1163 = vweird.f32 %v1156
        %vm1164 = vmor %vm1162, %vm1163
        %v1165 = vsel %vm1164, %v1156, %v1161
        %v1166 = vrsqrt.pop %v1017
        %v1167 = vmul.f32 %v1166, %v1017
        %v1168 = vmul.f32 %v1167, %v1166
        %v1169 = vmul.f32 0.5, %v1168
        %v1170 = vsub.f32 1.5, %v1169
        %v1171 = vmul.f32 %v1166, %v1170
        %vm1172 = vweird.f32 %v1017
        %vm1173 = vweird.f32 %v1166
        %vm1174 = vmor %vm1172, %vm1173
        %v1175 = vsel %vm1174, %v1166, %v1171
        %v1176 = vrsqrt.pop %v1018
        %v1177 = vmul.f32 %v1176, %v1018
        %v1178 = vmul.f32 %v1177, %v1176
        %v1179 = vmul.f32 0.5, %v1178
        %v1180 = vsub.f32 1.5, %v1179
        %v1181 = vmul.f32 %v1176, %v1180
        %vm1182 = vweird.f32 %v1018
        %vm1183 = vweird.f32 %v1176
        %vm1184 = vmor %vm1182, %vm1183
        %v1185 = vsel %vm1184, %v1176, %v1181
        %v1186 = vrsqrt.pop %v1019
        %v1187 = vmul.f32 %v1186, %v1019
        %v1188 = vmul.f32 %v1187, %v1186
        %v1189 = vmul.f32 0.5, %v1188
        %v1190 = vsub.f32 1.5, %v1189
        %v1191 = vmul.f32 %v1186, %v1190
        %vm1192 = vweird.f32 %v1019
        %vm1193 = vweird.f32 %v1186
        %vm1194 = vmor %vm1192, %vm1193
        %v1195 = vsel %vm1194, %v1186, %v1191
        %v1196 = vrsqrt.pop %v1020
        %v1197 = vmul.f32 %v1196, %v1020
        %v1198 = vmul.f32 %v1197, %v1196
        %v1199 = vmul.f32 0.5, %v1198
        %v1200 = vsub.f32 1.5, %v1199
        %v1201 = vmul.f32 %v1196, %v1200
        %vm1202 = vweird.f32 %v1020
        %vm1203 = vweird.f32 %v1196
        %vm1204 = vmor %vm1202, %vm1203
        %v1205 = vsel %vm1204, %v1196, %v1201
        %v1206 = vrsqrt.pop %v1021
        %v1207 = vmul.f32 %v1206, %v1021
        %v1208 = vmul.f32 %v1207, %v1206
        %v1209 = vmul.f32 0.5, %v1208
        %v1210 = vsub.f32 1.5, %v1209
        %v1211 = vmul.f32 %v1206, %v1210
        %vm1212 = vweird.f32 %v1021
        %vm1213 = vweird.f32 %v1206
        %vm1214 = vmor %vm1212, %vm1213
        %v1215 = vsel %vm1214, %v1206, %v1211
        %v1216 = vrsqrt.pop %v1022
        %v1217 = vmul.f32 %v1216, %v1022
        %v1218 = vmul.f32 %v1217, %v1216
        %v1219 = vmul.f32 0.5, %v1218
        %v1220 = vsub.f32 1.5, %v1219
        %v1221 = vmul.f32 %v1216, %v1220
        %vm1222 = vweird.f32 %v1022
        %vm1223 = vweird.f32 %v1216
        %vm1224 = vmor %vm1222, %vm1223
        %v1225 = vsel %vm1224, %v1216, %v1221
        %v1226 = vrsqrt.pop %v1023
        %v1227 = vmul.f32 %v1226, %v1023
        %v1228 = vmul.f32 %v1227, %v1226
        %v1229 = vmul.f32 0.5, %v1228
        %v1230 = vsub.f32 1.5, %v1229
        %v1231 = vmul.f32 %v1226, %v1230
        %vm1232 = vweird.f32 %v1023
        %vm1233 = vweird.f32 %v1226
        %vm1234 = vmor %vm1232, %vm1233
        %v1235 = vsel %vm1234, %v1226, %v1231
        %v1236 = vrsqrt.pop %v1024
        %v1237 = vmul.f32 %v1236, %v1024
        %v1238 = vmul.f32 %v1237, %v1236
        %v1239 = vmul.f32 0.5, %v1238
        %v1240 = vsub.f32 1.5, %v1239
        %v1241 = vmul.f32 %v1236, %v1240
        %vm1242 = vweird.f32 %v1024
        %vm1243 = vweird.f32 %v1236
        %vm1244 = vmor %vm1242, %vm1243
        %v1245 = vsel %vm1244, %v1236, %v1241
        %v1246 = vrsqrt.pop %v1025
        %v1247 = vmul.f32 %v1246, %v1025
        %v1248 = vmul.f32 %v1247, %v1246
        %v1249 = vmul.f32 0.5, %v1248
        %v1250 = vsub.f32 1.5, %v1249
        %v1251 = vmul.f32 %v1246, %v1250
        %vm1252 = vweird.f32 %v1025
        %vm1253 = vweird.f32 %v1246
        %vm1254 = vmor %vm1252, %vm1253
        %v1255 = vsel %vm1254, %v1246, %v1251
        %v1256 = vrsqrt.pop %v1026
        %v1257 = vmul.f32 %v1256, %v1026
        %v1258 = vmul.f32 %v1257, %v1256
        %v1259 = vmul.f32 0.5, %v1258
        %v1260 = vsub.f32 1.5, %v1259
        %v1261 = vmul.f32 %v1256, %v1260
        %vm1262 = vweird.f32 %v1026
        %vm1263 = vweird.f32 %v1256
        %vm1264 = vmor %vm1262, %vm1263
        %v1265 = vsel %vm1264, %v1256, %v1261
        %v1266 = vrsqrt.pop %v1027
        %v1267 = vmul.f32 %v1266, %v1027
        %v1268 = vmul.f32 %v1267, %v1266
        %v1269 = vmul.f32 0.5, %v1268
        %v1270 = vsub.f32 1.5, %v1269
        %v1271 = vmul.f32 %v1266, %v1270
        %vm1272 = vweird.f32 %v1027
        %vm1273 = vweird.f32 %v1266
        %vm1274 = vmor %vm1272, %vm1273
        %v1275 = vsel %vm1274, %v1266, %v1271
        %v1276 = vrsqrt.pop %v1028
        %v1277 = vmul.f32 %v1276, %v1028
        %v1278 = vmul.f32 %v1277, %v1276
        %v1279 = vmul.f32 0.5, %v1278
        %v1280 = vsub.f32 1.5, %v1279
        %v1281 = vmul.f32 %v1276, %v1280
        %vm1282 = vweird.f32 %v1028
        %vm1283 = vweird.f32 %v1276
        %vm1284 = vmor %vm1282, %vm1283
        %v1285 = vsel %vm1284, %v1276, %v1281
        %v1286 = vrsqrt.pop %v1029
        %v1287 = vmul.f32 %v1286, %v1029
        %v1288 = vmul.f32 %v1287, %v1286
        %v1289 = vmul.f32 0.5, %v1288
        %v1290 = vsub.f32 1.5, %v1289
        %v1291 = vmul.f32 %v1286, %v1290
        %vm1292 = vweird.f32 %v1029
        %vm1293 = vweird.f32 %v1286
        %vm1294 = vmor %vm1292, %vm1293
        %v1295 = vsel %vm1294, %v1286, %v1291
        %v1296 = vrsqrt.pop %v1030
        %v1297 = vmul.f32 %v1296, %v1030
        %v1298 = vmul.f32 %v1297, %v1296
        %v1299 = vmul.f32 0.5, %v1298
        %v1300 = vsub.f32 1.5, %v1299
        %v1301 = vmul.f32 %v1296, %v1300
        %vm1302 = vweird.f32 %v1030
        %vm1303 = vweird.f32 %v1296
        %vm1304 = vmor %vm1302, %vm1303
        %v1305 = vsel %vm1304, %v1296, %v1301
        %v1306 = vrsqrt.pop %v1031
        %v1307 = vmul.f32 %v1306, %v1031
        %v1308 = vmul.f32 %v1307, %v1306
        %v1309 = vmul.f32 0.5, %v1308
        %v1310 = vsub.f32 1.5, %v1309
        %v1311 = vmul.f32 %v1306, %v1310
        %vm1312 = vweird.f32 %v1031
        %vm1313 = vweird.f32 %v1306
        %vm1314 = vmor %vm1312, %vm1313
        %v1315 = vsel %vm1314, %v1306, %v1311
        %v1316 = vrsqrt.pop %v1032
        %v1317 = vmul.f32 %v1316, %v1032
        %v1318 = vmul.f32 %v1317, %v1316
        %v1319 = vmul.f32 0.5, %v1318
        %v1320 = vsub.f32 1.5, %v1319
        %v1321 = vmul.f32 %v1316, %v1320
        %vm1322 = vweird.f32 %v1032
        %vm1323 = vweird.f32 %v1316
        %vm1324 = vmor %vm1322, %vm1323
        %v1325 = vsel %vm1324, %v1316, %v1321
        %v1326 = vrsqrt.pop %v1033
        %v1327 = vmul.f32 %v1326, %v1033
        %v1328 = vmul.f32 %v1327, %v1326
        %v1329 = vmul.f32 0.5, %v1328
        %v1330 = vsub.f32 1.5, %v1329
        %v1331 = vmul.f32 %v1326, %v1330
        %vm1332 = vweird.f32 %v1033
        %vm1333 = vweird.f32 %v1326
        %vm1334 = vmor %vm1332, %vm1333
        %v1335 = vsel %vm1334, %v1326, %v1331
        %v1336 = vrsqrt.pop %v1034
        %v1337 = vmul.f32 %v1336, %v1034
        %v1338 = vmul.f32 %v1337, %v1336
        %v1339 = vmul.f32 0.5, %v1338
        %v1340 = vsub.f32 1.5, %v1339
        %v1341 = vmul.f32 %v1336, %v1340
        %vm1342 = vweird.f32 %v1034
        %vm1343 = vweird.f32 %v1336
        %vm1344 = vmor %vm1342, %vm1343
        %v1345 = vsel %vm1344, %v1336, %v1341
        %v1346 = vrsqrt.pop %v1035
        %v1347 = vmul.f32 %v1346, %v1035
        %v1348 = vmul.f32 %v1347, %v1346
        %v1349 = vmul.f32 0.5, %v1348
        %v1350 = vsub.f32 1.5, %v1349
        %v1351 = vmul.f32 %v1346, %v1350
        %vm1352 = vweird.f32 %v1035
        %vm1353 = vweird.f32 %v1346
        %vm1354 = vmor %vm1352, %vm1353
        %v1355 = vsel %vm1354, %v1346, %v1351
        %v1357 = vperm.slane %v618, 0
        %v1358 = vperm.slane %v618, 1
        %v1361 = vmul.f32 %v1357, %v1045
        %v1362 = vmul.f32 %v1358, %v1045
        %v1363 = vmul.f32 %v1357, %v1055
        %v1364 = vmul.f32 %v1358, %v1055
        %v1365 = vmul.f32 %v1357, %v1065
        %v1366 = vmul.f32 %v1358, %v1065
        %v1367 = vmul.f32 %v1357, %v1075
        %v1368 = vmul.f32 %v1358, %v1075
        %v1369 = vmul.f32 %v1357, %v1085
        %v1370 = vmul.f32 %v1358, %v1085
        %v1371 = vmul.f32 %v1357, %v1095
        %v1372 = vmul.f32 %v1358, %v1095
        %v1373 = vmul.f32 %v1357, %v1105
        %v1374 = vmul.f32 %v1358, %v1105
        %v1375 = vmul.f32 %v1357, %v1115
        %v1376 = vmul.f32 %v1358, %v1115
        %v1377 = vmul.f32 %v1357, %v1125
        %v1378 = vmul.f32 %v1358, %v1125
        %v1379 = vmul.f32 %v1357, %v1135
        %v1380 = vmul.f32 %v1358, %v1135
        %v1381 = vmul.f32 %v1357, %v1145
        %v1382 = vmul.f32 %v1358, %v1145
        %v1383 = vmul.f32 %v1357, %v1155
        %v1384 = vmul.f32 %v1358, %v1155
        %v1385 = vmul.f32 %v1357, %v1165
        %v1386 = vmul.f32 %v1358, %v1165
        %v1387 = vmul.f32 %v1357, %v1175
        %v1388 = vmul.f32 %v1358, %v1175
        %v1389 = vmul.f32 %v1357, %v1185
        %v1390 = vmul.f32 %v1358, %v1185
        %v1391 = vmul.f32 %v1357, %v1195
        %v1392 = vmul.f32 %v1358, %v1195
        %v1393 = vmul.f32 %v1357, %v1205
        %v1394 = vmul.f32 %v1358, %v1205
        %v1395 = vmul.f32 %v1357, %v1215
        %v1396 = vmul.f32 %v1358, %v1215
        %v1397 = vmul.f32 %v1357, %v1225
        %v1398 = vmul.f32 %v1358, %v1225
        %v1399 = vmul.f32 %v1357, %v1235
        %v1400 = vmul.f32 %v1358, %v1235
        %v1401 = vmul.f32 %v1357, %v1245
        %v1402 = vmul.f32 %v1358, %v1245
        %v1403 = vmul.f32 %v1357, %v1255
        %v1404 = vmul.f32 %v1358, %v1255
        %v1405 = vmul.f32 %v1357, %v1265
        %v1406 = vmul.f32 %v1358, %v1265
        %v1407 = vmul.f32 %v1357, %v1275
        %v1408 = vmul.f32 %v1358, %v1275
        %v1409 = vmul.f32 %v1357, %v1285
        %v1410 = vmul.f32 %v1358, %v1285
        %v1411 = vmul.f32 %v1357, %v1295
        %v1412 = vmul.f32 %v1358, %v1295
        %v1413 = vmul.f32 %v1357, %v1305
        %v1414 = vmul.f32 %v1358, %v1305
        %v1415 = vmul.f32 %v1357, %v1315
        %v1416 = vmul.f32 %v1358, %v1315
        %v1417 = vmul.f32 %v1357, %v1325
        %v1418 = vmul.f32 %v1358, %v1325
        %v1419 = vmul.f32 %v1357, %v1335
        %v1420 = vmul.f32 %v1358, %v1335
        %v1421 = vmul.f32 %v1357, %v1345
        %v1422 = vmul.f32 %v1358, %v1345
        %v1423 = vmul.f32 %v1357, %v1355
        %v1424 = vmul.f32 %v1358, %v1355
        %v1425 = vmul.f32 %v876, %v1361
        %v1426 = vmul.f32 %v876, %v1362
        %v1427 = vmul.f32 %v877, %v1363
        %v1428 = vmul.f32 %v877, %v1364
        %v1429 = vmul.f32 %v878, %v1365
        %v1430 = vmul.f32 %v878, %v1366
        %v1431 = vmul.f32 %v879, %v1367
        %v1432 = vmul.f32 %v879, %v1368
        %v1433 = vmul.f32 %v880, %v1369
        %v1434 = vmul.f32 %v880, %v1370
        %v1435 = vmul.f32 %v881, %v1371
        %v1436 = vmul.f32 %v881, %v1372
        %v1437 = vmul.f32 %v882, %v1373
        %v1438 = vmul.f32 %v882, %v1374
        %v1439 = vmul.f32 %v883, %v1375
        %v1440 = vmul.f32 %v883, %v1376
        %v1441 = vmul.f32 %v884, %v1377
        %v1442 = vmul.f32 %v884, %v1378
        %v1443 = vmul.f32 %v885, %v1379
        %v1444 = vmul.f32 %v885, %v1380
        %v1445 = vmul.f32 %v886, %v1381
        %v1446 = vmul.f32 %v886, %v1382
        %v1447 = vmul.f32 %v887, %v1383
        %v1448 = vmul.f32 %v887, %v1384
        %v1449 = vmul.f32 %v888, %v1385
        %v1450 = vmul.f32 %v888, %v1386
        %v1451 = vmul.f32 %v889, %v1387
        %v1452 = vmul.f32 %v889, %v1388
        %v1453 = vmul.f32 %v890, %v1389
        %v1454 = vmul.f32 %v890, %v1390
        %v1455 = vmul.f32 %v891, %v1391
        %v1456 = vmul.f32 %v891, %v1392
        %v1457 = vmul.f32 %v892, %v1393
        %v1458 = vmul.f32 %v892, %v1394
        %v1459 = vmul.f32 %v893, %v1395
        %v1460 = vmul.f32 %v893, %v1396
        %v1461 = vmul.f32 %v894, %v1397
        %v1462 = vmul.f32 %v894, %v1398
        %v1463 = vmul.f32 %v895, %v1399
        %v1464 = vmul.f32 %v895, %v1400
        %v1465 = vmul.f32 %v896, %v1401
        %v1466 = vmul.f32 %v896, %v1402
        %v1467 = vmul.f32 %v897, %v1403
        %v1468 = vmul.f32 %v897, %v1404
        %v1469 = vmul.f32 %v898, %v1405
        %v1470 = vmul.f32 %v898, %v1406
        %v1471 = vmul.f32 %v899, %v1407
        %v1472 = vmul.f32 %v899, %v1408
        %v1473 = vmul.f32 %v900, %v1409
        %v1474 = vmul.f32 %v900, %v1410
        %v1475 = vmul.f32 %v901, %v1411
        %v1476 = vmul.f32 %v901, %v1412
        %v1477 = vmul.f32 %v902, %v1413
        %v1478 = vmul.f32 %v902, %v1414
        %v1479 = vmul.f32 %v903, %v1415
        %v1480 = vmul.f32 %v903, %v1416
        %v1481 = vmul.f32 %v904, %v1417
        %v1482 = vmul.f32 %v904, %v1418
        %v1483 = vmul.f32 %v905, %v1419
        %v1484 = vmul.f32 %v905, %v1420
        %v1485 = vmul.f32 %v906, %v1421
        %v1486 = vmul.f32 %v906, %v1422
        %v1487 = vmul.f32 %v907, %v1423
        %v1488 = vmul.f32 %v907, %v1424
        %v1490 = vperm.slane %v619, 0
        %v1491 = vperm.slane %v619, 1
        %v1494 = vsub.f32 %v1490, %v1425
        %v1495 = vsub.f32 %v1491, %v1426
        %v1496 = vsub.f32 %v1490, %v1427
        %v1497 = vsub.f32 %v1491, %v1428
        %v1498 = vsub.f32 %v1490, %v1429
        %v1499 = vsub.f32 %v1491, %v1430
        %v1500 = vsub.f32 %v1490, %v1431
        %v1501 = vsub.f32 %v1491, %v1432
        %v1502 = vsub.f32 %v1490, %v1433
        %v1503 = vsub.f32 %v1491, %v1434
        %v1504 = vsub.f32 %v1490, %v1435
        %v1505 = vsub.f32 %v1491, %v1436
        %v1506 = vsub.f32 %v1490, %v1437
        %v1507 = vsub.f32 %v1491, %v1438
        %v1508 = vsub.f32 %v1490, %v1439
        %v1509 = vsub.f32 %v1491, %v1440
        %v1510 = vsub.f32 %v1490, %v1441
        %v1511 = vsub.f32 %v1491, %v1442
        %v1512 = vsub.f32 %v1490, %v1443
        %v1513 = vsub.f32 %v1491, %v1444
        %v1514 = vsub.f32 %v1490, %v1445
        %v1515 = vsub.f32 %v1491, %v1446
        %v1516 = vsub.f32 %v1490, %v1447
        %v1517 = vsub.f32 %v1491, %v1448
        %v1518 = vsub.f32 %v1490, %v1449
        %v1519 = vsub.f32 %v1491, %v1450
        %v1520 = vsub.f32 %v1490, %v1451
        %v1521 = vsub.f32 %v1491, %v1452
        %v1522 = vsub.f32 %v1490, %v1453
        %v1523 = vsub.f32 %v1491, %v1454
        %v1524 = vsub.f32 %v1490, %v1455
        %v1525 = vsub.f32 %v1491, %v1456
        %v1526 = vsub.f32 %v1490, %v1457
        %v1527 = vsub.f32 %v1491, %v1458
        %v1528 = vsub.f32 %v1490, %v1459
        %v1529 = vsub.f32 %v1491, %v1460
        %v1530 = vsub.f32 %v1490, %v1461
        %v1531 = vsub.f32 %v1491, %v1462
        %v1532 = vsub.f32 %v1490, %v1463
        %v1533 = vsub.f32 %v1491, %v1464
        %v1534 = vsub.f32 %v1490, %v1465
        %v1535 = vsub.f32 %v1491, %v1466
        %v1536 = vsub.f32 %v1490, %v1467
        %v1537 = vsub.f32 %v1491, %v1468
        %v1538 = vsub.f32 %v1490, %v1469
        %v1539 = vsub.f32 %v1491, %v1470
        %v1540 = vsub.f32 %v1490, %v1471
        %v1541 = vsub.f32 %v1491, %v1472
        %v1542 = vsub.f32 %v1490, %v1473
        %v1543 = vsub.f32 %v1491, %v1474
        %v1544 = vsub.f32 %v1490, %v1475
        %v1545 = vsub.f32 %v1491, %v1476
        %v1546 = vsub.f32 %v1490, %v1477
        %v1547 = vsub.f32 %v1491, %v1478
        %v1548 = vsub.f32 %v1490, %v1479
        %v1549 = vsub.f32 %v1491, %v1480
        %v1550 = vsub.f32 %v1490, %v1481
        %v1551 = vsub.f32 %v1491, %v1482
        %v1552 = vsub.f32 %v1490, %v1483
        %v1553 = vsub.f32 %v1491, %v1484
        %v1554 = vsub.f32 %v1490, %v1485
        %v1555 = vsub.f32 %v1491, %v1486
        %v1556 = vsub.f32 %v1490, %v1487
        %v1557 = vsub.f32 %v1491, %v1488
        %v1558 = vmul.f32 %v410, %v1361
        %v1559 = vmul.f32 %v523, %v1362
        %v1560 = vmul.f32 %v413, %v1363
        %v1561 = vmul.f32 %v526, %v1364
        %v1562 = vmul.f32 %v416, %v1365
        %v1563 = vmul.f32 %v529, %v1366
        %v1564 = vmul.f32 %v419, %v1367
        %v1565 = vmul.f32 %v532, %v1368
        %v1566 = vmul.f32 %v422, %v1369
        %v1567 = vmul.f32 %v535, %v1370
        %v1568 = vmul.f32 %v425, %v1371
        %v1569 = vmul.f32 %v538, %v1372
        %v1570 = vmul.f32 %v428, %v1373
        %v1571 = vmul.f32 %v541, %v1374
        %v1572 = vmul.f32 %v431, %v1375
        %v1573 = vmul.f32 %v544, %v1376
        %v1574 = vmul.f32 %v434, %v1377
        %v1575 = vmul.f32 %v547, %v1378
        %v1576 = vmul.f32 %v437, %v1379
        %v1577 = vmul.f32 %v550, %v1380
        %v1578 = vmul.f32 %v440, %v1381
        %v1579 = vmul.f32 %v553, %v1382
        %v1580 = vmul.f32 %v443, %v1383
        %v1581 = vmul.f32 %v556, %v1384
        %v1582 = vmul.f32 %v446, %v1385
        %v1583 = vmul.f32 %v559, %v1386
        %v1584 = vmul.f32 %v449, %v1387
        %v1585 = vmul.f32 %v562, %v1388
        %v1586 = vmul.f32 %v452, %v1389
        %v1587 = vmul.f32 %v565, %v1390
        %v1588 = vmul.f32 %v455, %v1391
        %v1589 = vmul.f32 %v568, %v1392
        %v1590 = vmul.f32 %v458, %v1393
        %v1591 = vmul.f32 %v571, %v1394
        %v1592 = vmul.f32 %v461, %v1395
        %v1593 = vmul.f32 %v574, %v1396
        %v1594 = vmul.f32 %v464, %v1397
        %v1595 = vmul.f32 %v577, %v1398
        %v1596 = vmul.f32 %v467, %v1399
        %v1597 = vmul.f32 %v580, %v1400
        %v1598 = vmul.f32 %v470, %v1401
        %v1599 = vmul.f32 %v583, %v1402
        %v1600 = vmul.f32 %v473, %v1403
        %v1601 = vmul.f32 %v586, %v1404
        %v1602 = vmul.f32 %v476, %v1405
        %v1603 = vmul.f32 %v589, %v1406
        %v1604 = vmul.f32 %v479, %v1407
        %v1605 = vmul.f32 %v592, %v1408
        %v1606 = vmul.f32 %v482, %v1409
        %v1607 = vmul.f32 %v595, %v1410
        %v1608 = vmul.f32 %v485, %v1411
        %v1609 = vmul.f32 %v598, %v1412
        %v1610 = vmul.f32 %v488, %v1413
        %v1611 = vmul.f32 %v601, %v1414
        %v1612 = vmul.f32 %v491, %v1415
        %v1613 = vmul.f32 %v604, %v1416
        %v1614 = vmul.f32 %v494, %v1417
        %v1615 = vmul.f32 %v607, %v1418
        %v1616 = vmul.f32 %v497, %v1419
        %v1617 = vmul.f32 %v610, %v1420
        %v1618 = vmul.f32 %v500, %v1421
        %v1619 = vmul.f32 %v613, %v1422
        %v1620 = vmul.f32 %v503, %v1423
        %v1621 = vmul.f32 %v616, %v1424
        %v1622 = vadd.f32 %v1558, %v1494
        %v1623 = vadd.f32 %v1559, %v1495
        %v1624 = vadd.f32 %v1560, %v1496
        %v1625 = vadd.f32 %v1561, %v1497
        %v1626 = vadd.f32 %v1562, %v1498
        %v1627 = vadd.f32 %v1563, %v1499
        %v1628 = vadd.f32 %v1564, %v1500
        %v1629 = vadd.f32 %v1565, %v1501
        %v1630 = vadd.f32 %v1566, %v1502
        %v1631 = vadd.f32 %v1567, %v1503
        %v1632 = vadd.f32 %v1568, %v1504
        %v1633 = vadd.f32 %v1569, %v1505
        %v1634 = vadd.f32 %v1570, %v1506
        %v1635 = vadd.f32 %v1571, %v1507
        %v1636 = vadd.f32 %v1572, %v1508
        %v1637 = vadd.f32 %v1573, %v1509
        %v1638 = vadd.f32 %v1574, %v1510
        %v1639 = vadd.f32 %v1575, %v1511
        %v1640 = vadd.f32 %v1576, %v1512
        %v1641 = vadd.f32 %v1577, %v1513
        %v1642 = vadd.f32 %v1578, %v1514
        %v1643 = vadd.f32 %v1579, %v1515
        %v1644 = vadd.f32 %v1580, %v1516
        %v1645 = vadd.f32 %v1581, %v1517
        %v1646 = vadd.f32 %v1582, %v1518
        %v1647 = vadd.f32 %v1583, %v1519
        %v1648 = vadd.f32 %v1584, %v1520
        %v1649 = vadd.f32 %v1585, %v1521
        %v1650 = vadd.f32 %v1586, %v1522
        %v1651 = vadd.f32 %v1587, %v1523
        %v1652 = vadd.f32 %v1588, %v1524
        %v1653 = vadd.f32 %v1589, %v1525
        %v1654 = vadd.f32 %v1590, %v1526
        %v1655 = vadd.f32 %v1591, %v1527
        %v1656 = vadd.f32 %v1592, %v1528
        %v1657 = vadd.f32 %v1593, %v1529
        %v1658 = vadd.f32 %v1594, %v1530
        %v1659 = vadd.f32 %v1595, %v1531
        %v1660 = vadd.f32 %v1596, %v1532
        %v1661 = vadd.f32 %v1597, %v1533
        %v1662 = vadd.f32 %v1598, %v1534
        %v1663 = vadd.f32 %v1599, %v1535
        %v1664 = vadd.f32 %v1600, %v1536
        %v1665 = vadd.f32 %v1601, %v1537
        %v1666 = vadd.f32 %v1602, %v1538
        %v1667 = vadd.f32 %v1603, %v1539
        %v1668 = vadd.f32 %v1604, %v1540
        %v1669 = vadd.f32 %v1605, %v1541
        %v1670 = vadd.f32 %v1606, %v1542
        %v1671 = vadd.f32 %v1607, %v1543
        %v1672 = vadd.f32 %v1608, %v1544
        %v1673 = vadd.f32 %v1609, %v1545
        %v1674 = vadd.f32 %v1610, %v1546
        %v1675 = vadd.f32 %v1611, %v1547
        %v1676 = vadd.f32 %v1612, %v1548
        %v1677 = vadd.f32 %v1613, %v1549
        %v1678 = vadd.f32 %v1614, %v1550
        %v1679 = vadd.f32 %v1615, %v1551
        %v1680 = vadd.f32 %v1616, %v1552
        %v1681 = vadd.f32 %v1617, %v1553
        %v1682 = vadd.f32 %v1618, %v1554
        %v1683 = vadd.f32 %v1619, %v1555
        %v1684 = vadd.f32 %v1620, %v1556
        %v1685 = vadd.f32 %v1621, %v1557
        %v1686 = vxor.u32 %v1622, 2147483648
        %v1687 = vxor.u32 %v1623, 2147483648
        %v1688 = vxor.u32 %v1624, 2147483648
        %v1689 = vxor.u32 %v1625, 2147483648
        %v1690 = vxor.u32 %v1626, 2147483648
        %v1691 = vxor.u32 %v1627, 2147483648
        %v1692 = vxor.u32 %v1628, 2147483648
        %v1693 = vxor.u32 %v1629, 2147483648
        %v1694 = vxor.u32 %v1630, 2147483648
        %v1695 = vxor.u32 %v1631, 2147483648
        %v1696 = vxor.u32 %v1632, 2147483648
        %v1697 = vxor.u32 %v1633, 2147483648
        %v1698 = vxor.u32 %v1634, 2147483648
        %v1699 = vxor.u32 %v1635, 2147483648
        %v1700 = vxor.u32 %v1636, 2147483648
        %v1701 = vxor.u32 %v1637, 2147483648
        %v1702 = vxor.u32 %v1638, 2147483648
        %v1703 = vxor.u32 %v1639, 2147483648
        %v1704 = vxor.u32 %v1640, 2147483648
        %v1705 = vxor.u32 %v1641, 2147483648
        %v1706 = vxor.u32 %v1642, 2147483648
        %v1707 = vxor.u32 %v1643, 2147483648
        %v1708 = vxor.u32 %v1644, 2147483648
        %v1709 = vxor.u32 %v1645, 2147483648
        %v1710 = vxor.u32 %v1646, 2147483648
        %v1711 = vxor.u32 %v1647, 2147483648
        %v1712 = vxor.u32 %v1648, 2147483648
        %v1713 = vxor.u32 %v1649, 2147483648
        %v1714 = vxor.u32 %v1650, 2147483648
        %v1715 = vxor.u32 %v1651, 2147483648
        %v1716 = vxor.u32 %v1652, 2147483648
        %v1717 = vxor.u32 %v1653, 2147483648
        %v1718 = vxor.u32 %v1654, 2147483648
        %v1719 = vxor.u32 %v1655, 2147483648
        %v1720 = vxor.u32 %v1656, 2147483648
        %v1721 = vxor.u32 %v1657, 2147483648
        %v1722 = vxor.u32 %v1658, 2147483648
        %v1723 = vxor.u32 %v1659, 2147483648
        %v1724 = vxor.u32 %v1660, 2147483648
        %v1725 = vxor.u32 %v1661, 2147483648
        %v1726 = vxor.u32 %v1662, 2147483648
        %v1727 = vxor.u32 %v1663, 2147483648
        %v1728 = vxor.u32 %v1664, 2147483648
        %v1729 = vxor.u32 %v1665, 2147483648
        %v1730 = vxor.u32 %v1666, 2147483648
        %v1731 = vxor.u32 %v1667, 2147483648
        %v1732 = vxor.u32 %v1668, 2147483648
        %v1733 = vxor.u32 %v1669, 2147483648
        %v1734 = vxor.u32 %v1670, 2147483648
        %v1735 = vxor.u32 %v1671, 2147483648
        %v1736 = vxor.u32 %v1672, 2147483648
        %v1737 = vxor.u32 %v1673, 2147483648
        %v1738 = vxor.u32 %v1674, 2147483648
        %v1739 = vxor.u32 %v1675, 2147483648
        %v1740 = vxor.u32 %v1676, 2147483648
        %v1741 = vxor.u32 %v1677, 2147483648
        %v1742 = vxor.u32 %v1678, 2147483648
        %v1743 = vxor.u32 %v1679, 2147483648
        %v1744 = vxor.u32 %v1680, 2147483648
        %v1745 = vxor.u32 %v1681, 2147483648
        %v1746 = vxor.u32 %v1682, 2147483648
        %v1747 = vxor.u32 %v1683, 2147483648
        %v1748 = vxor.u32 %v1684, 2147483648
        %v1749 = vxor.u32 %v1685, 2147483648
        %v1750 = vmul.f32 %v1686, 1.442695
        %v1751 = vpow.pop %v1750
        %v1752 = vmul.f32 %v1687, 1.442695
        %v1753 = vpow.pop %v1752
        %v1754 = vmul.f32 %v1688, 1.442695
        %v1755 = vpow.pop %v1754
        %v1756 = vmul.f32 %v1689, 1.442695
        %v1757 = vpow.pop %v1756
        %v1758 = vmul.f32 %v1690, 1.442695
        %v1759 = vpow.pop %v1758
        %v1760 = vmul.f32 %v1691, 1.442695
        %v1761 = vpow.pop %v1760
        %v1762 = vmul.f32 %v1692, 1.442695
        %v1763 = vpow.pop %v1762
        %v1764 = vmul.f32 %v1693, 1.442695
        %v1765 = vpow.pop %v1764
        %v1766 = vmul.f32 %v1694, 1.442695
        %v1767 = vpow.pop %v1766
        %v1768 = vmul.f32 %v1695, 1.442695
        %v1769 = vpow.pop %v1768
        %v1770 = vmul.f32 %v1696, 1.442695
        %v1771 = vpow.pop %v1770
        %v1772 = vmul.f32 %v1697, 1.442695
        %v1773 = vpow.pop %v1772
        %v1774 = vmul.f32 %v1698, 1.442695
        %v1775 = vpow.pop %v1774
        %v1776 = vmul.f32 %v1699, 1.442695
        %v1777 = vpow.pop %v1776
        %v1778 = vmul.f32 %v1700, 1.442695
        %v1779 = vpow.pop %v1778
        %v1780 = vmul.f32 %v1701, 1.442695
        %v1781 = vpow.pop %v1780
        %v1782 = vmul.f32 %v1702, 1.442695
        %v1783 = vpow.pop %v1782
        %v1784 = vmul.f32 %v1703, 1.442695
        %v1785 = vpow.pop %v1784
        %v1786 = vmul.f32 %v1704, 1.442695
        %v1787 = vpow.pop %v1786
        %v1788 = vmul.f32 %v1705, 1.442695
        %v1789 = vpow.pop %v1788
        %v1790 = vmul.f32 %v1706, 1.442695
        %v1791 = vpow.pop %v1790
        %v1792 = vmul.f32 %v1707, 1.442695
        %v1793 = vpow.pop %v1792
        %v1794 = vmul.f32 %v1708, 1.442695
        %v1795 = vpow.pop %v1794
        %v1796 = vmul.f32 %v1709, 1.442695
        %v1797 = vpow.pop %v1796
        %v1798 = vmul.f32 %v1710, 1.442695
        %v1799 = vpow.pop %v1798
        %v1800 = vmul.f32 %v1711, 1.442695
        %v1801 = vpow.pop %v1800
        %v1802 = vmul.f32 %v1712, 1.442695
        %v1803 = vpow.pop %v1802
        %v1804 = vmul.f32 %v1713, 1.442695
        %v1805 = vpow.pop %v1804
        %v1806 = vmul.f32 %v1714, 1.442695
        %v1807 = vpow.pop %v1806
        %v1808 = vmul.f32 %v1715, 1.442695
        %v1809 = vpow.pop %v1808
        %v1810 = vmul.f32 %v1716, 1.442695
        %v1811 = vpow.pop %v1810
        %v1812 = vmul.f32 %v1717, 1.442695
        %v1813 = vpow.pop %v1812
        %v1814 = vmul.f32 %v1718, 1.442695
        %v1815 = vpow.pop %v1814
        %v1816 = vmul.f32 %v1719, 1.442695
        %v1817 = vpow.pop %v1816
        %v1818 = vmul.f32 %v1720, 1.442695
        %v1819 = vpow.pop %v1818
        %v1820 = vmul.f32 %v1721, 1.442695
        %v1821 = vpow.pop %v1820
        %v1822 = vmul.f32 %v1722, 1.442695
        %v1823 = vpow.pop %v1822
        %v1824 = vmul.f32 %v1723, 1.442695
        %v1825 = vpow.pop %v1824
        %v1826 = vmul.f32 %v1724, 1.442695
        %v1827 = vpow.pop %v1826
        %v1828 = vmul.f32 %v1725, 1.442695
        %v1829 = vpow.pop %v1828
        %v1830 = vmul.f32 %v1726, 1.442695
        %v1831 = vpow.pop %v1830
        %v1832 = vmul.f32 %v1727, 1.442695
        %v1833 = vpow.pop %v1832
        %v1834 = vmul.f32 %v1728, 1.442695
        %v1835 = vpow.pop %v1834
        %v1836 = vmul.f32 %v1729, 1.442695
        %v1837 = vpow.pop %v1836
        %v1838 = vmul.f32 %v1730, 1.442695
        %v1839 = vpow.pop %v1838
        %v1840 = vmul.f32 %v1731, 1.442695
        %v1841 = vpow.pop %v1840
        %v1842 = vmul.f32 %v1732, 1.442695
        %v1843 = vpow.pop %v1842
        %v1844 = vmul.f32 %v1733, 1.442695
        %v1845 = vpow.pop %v1844
        %v1846 = vmul.f32 %v1734, 1.442695
        %v1847 = vpow.pop %v1846
        %v1848 = vmul.f32 %v1735, 1.442695
        %v1849 = vpow.pop %v1848
        %v1850 = vmul.f32 %v1736, 1.442695
        %v1851 = vpow.pop %v1850
        %v1852 = vmul.f32 %v1737, 1.442695
        %v1853 = vpow.pop %v1852
        %v1854 = vmul.f32 %v1738, 1.442695
        %v1855 = vpow.pop %v1854
        %v1856 = vmul.f32 %v1739, 1.442695
        %v1857 = vpow.pop %v1856
        %v1858 = vmul.f32 %v1740, 1.442695
        %v1859 = vpow.pop %v1858
        %v1860 = vmul.f32 %v1741, 1.442695
        %v1861 = vpow.pop %v1860
        %v1862 = vmul.f32 %v1742, 1.442695
        %v1863 = vpow.pop %v1862
        %v1864 = vmul.f32 %v1743, 1.442695
        %v1865 = vpow.pop %v1864
        %v1866 = vmul.f32 %v1744, 1.442695
        %v1867 = vpow.pop %v1866
        %v1868 = vmul.f32 %v1745, 1.442695
        %v1869 = vpow.pop %v1868
        %v1870 = vmul.f32 %v1746, 1.442695
        %v1871 = vpow.pop %v1870
        %v1872 = vmul.f32 %v1747, 1.442695
        %v1873 = vpow.pop %v1872
        %v1874 = vmul.f32 %v1748, 1.442695
        %v1875 = vpow.pop %v1874
        %v1876 = vmul.f32 %v1749, 1.442695
        %v1877 = vpow.pop %v1876
        %v1878 = vadd.f32 %v1751, 1.0
        %v1879 = vadd.f32 %v1753, 1.0
        %v1880 = vadd.f32 %v1755, 1.0
        %v1881 = vadd.f32 %v1757, 1.0
        %v1882 = vadd.f32 %v1759, 1.0
        %v1883 = vadd.f32 %v1761, 1.0
        %v1884 = vadd.f32 %v1763, 1.0
        %v1885 = vadd.f32 %v1765, 1.0
        %v1886 = vadd.f32 %v1767, 1.0
        %v1887 = vadd.f32 %v1769, 1.0
        %v1888 = vadd.f32 %v1771, 1.0
        %v1889 = vadd.f32 %v1773, 1.0
        %v1890 = vadd.f32 %v1775, 1.0
        %v1891 = vadd.f32 %v1777, 1.0
        %v1892 = vadd.f32 %v1779, 1.0
        %v1893 = vadd.f32 %v1781, 1.0
        %v1894 = vadd.f32 %v1783, 1.0
        %v1895 = vadd.f32 %v1785, 1.0
        %v1896 = vadd.f32 %v1787, 1.0
        %v1897 = vadd.f32 %v1789, 1.0
        %v1898 = vadd.f32 %v1791, 1.0
        %v1899 = vadd.f32 %v1793, 1.0
        %v1900 = vadd.f32 %v1795, 1.0
        %v1901 = vadd.f32 %v1797, 1.0
        %v1902 = vadd.f32 %v1799, 1.0
        %v1903 = vadd.f32 %v1801, 1.0
        %v1904 = vadd.f32 %v1803, 1.0
        %v1905 = vadd.f32 %v1805, 1.0
        %v1906 = vadd.f32 %v1807, 1.0
        %v1907 = vadd.f32 %v1809, 1.0
        %v1908 = vadd.f32 %v1811, 1.0
        %v1909 = vadd.f32 %v1813, 1.0
        %v1910 = vadd.f32 %v1815, 1.0
        %v1911 = vadd.f32 %v1817, 1.0
        %v1912 = vadd.f32 %v1819, 1.0
        %v1913 = vadd.f32 %v1821, 1.0
        %v1914 = vadd.f32 %v1823, 1.0
        %v1915 = vadd.f32 %v1825, 1.0
        %v1916 = vadd.f32 %v1827, 1.0
        %v1917 = vadd.f32 %v1829, 1.0
        %v1918 = vadd.f32 %v1831, 1.0
        %v1919 = vadd.f32 %v1833, 1.0
        %v1920 = vadd.f32 %v1835, 1.0
        %v1921 = vadd.f32 %v1837, 1.0
        %v1922 = vadd.f32 %v1839, 1.0
        %v1923 = vadd.f32 %v1841, 1.0
        %v1924 = vadd.f32 %v1843, 1.0
        %v1925 = vadd.f32 %v1845, 1.0
        %v1926 = vadd.f32 %v1847, 1.0
        %v1927 = vadd.f32 %v1849, 1.0
        %v1928 = vadd.f32 %v1851, 1.0
        %v1929 = vadd.f32 %v1853, 1.0
        %v1930 = vadd.f32 %v1855, 1.0
        %v1931 = vadd.f32 %v1857, 1.0
        %v1932 = vadd.f32 %v1859, 1.0
        %v1933 = vadd.f32 %v1861, 1.0
        %v1934 = vadd.f32 %v1863, 1.0
        %v1935 = vadd.f32 %v1865, 1.0
        %v1936 = vadd.f32 %v1867, 1.0
        %v1937 = vadd.f32 %v1869, 1.0
        %v1938 = vadd.f32 %v1871, 1.0
        %v1939 = vadd.f32 %v1873, 1.0
        %v1940 = vadd.f32 %v1875, 1.0
        %v1941 = vadd.f32 %v1877, 1.0
        %v1942 = vrcp.pop %v1878
        %v1943 = vmul.f32 %v1878, %v1942
        %v1944 = vsub.f32 1.0, %v1943
        %v1945 = vmul.f32 %v1942, %v1944
        %v1946 = vadd.f32 %v1942, %v1945
        %vm1947 = vweird.f32 %v1878
        %vm1948 = vweird.f32 %v1942
        %vm1949 = vmor %vm1947, %vm1948
        %v1950 = vsel %vm1949, %v1942, %v1946
        %v1951 = vand.u32 2147483647, %v1878
        %vm1952 = vcmp.eq.f32.partialorder %v1951, 8.507059e+37
        %v1953 = vand.u32 %v1878, 2147483648
        %v1954 = vor.u32 1.1754944e-38, %v1953
        %v1955 = vsel %vm1952, %v1954, %v1950
        %v1956 = vmul.f32 1.0, %v1955
        %v1957 = vrcp.pop %v1879
        %v1958 = vmul.f32 %v1879, %v1957
        %v1959 = vsub.f32 1.0, %v1958
        %v1960 = vmul.f32 %v1957, %v1959
        %v1961 = vadd.f32 %v1957, %v1960
        %vm1962 = vweird.f32 %v1879
        %vm1963 = vweird.f32 %v1957
        %vm1964 = vmor %vm1962, %vm1963
        %v1965 = vsel %vm1964, %v1957, %v1961
        %v1966 = vand.u32 2147483647, %v1879
        %vm1967 = vcmp.eq.f32.partialorder %v1966, 8.507059e+37
        %v1968 = vand.u32 %v1879, 2147483648
        %v1969 = vor.u32 1.1754944e-38, %v1968
        %v1970 = vsel %vm1967, %v1969, %v1965
        %v1971 = vmul.f32 1.0, %v1970
        %v1972 = vrcp.pop %v1880
        %v1973 = vmul.f32 %v1880, %v1972
        %v1974 = vsub.f32 1.0, %v1973
        %v1975 = vmul.f32 %v1972, %v1974
        %v1976 = vadd.f32 %v1972, %v1975
        %vm1977 = vweird.f32 %v1880
        %vm1978 = vweird.f32 %v1972
        %vm1979 = vmor %vm1977, %vm1978
        %v1980 = vsel %vm1979, %v1972, %v1976
        %v1981 = vand.u32 2147483647, %v1880
        %vm1982 = vcmp.eq.f32.partialorder %v1981, 8.507059e+37
        %v1983 = vand.u32 %v1880, 2147483648
        %v1984 = vor.u32 1.1754944e-38, %v1983
        %v1985 = vsel %vm1982, %v1984, %v1980
        %v1986 = vmul.f32 1.0, %v1985
        %v1987 = vrcp.pop %v1881
        %v1988 = vmul.f32 %v1881, %v1987
        %v1989 = vsub.f32 1.0, %v1988
        %v1990 = vmul.f32 %v1987, %v1989
        %v1991 = vadd.f32 %v1987, %v1990
        %vm1992 = vweird.f32 %v1881
        %vm1993 = vweird.f32 %v1987
        %vm1994 = vmor %vm1992, %vm1993
        %v1995 = vsel %vm1994, %v1987, %v1991
        %v1996 = vand.u32 2147483647, %v1881
        %vm1997 = vcmp.eq.f32.partialorder %v1996, 8.507059e+37
        %v1998 = vand.u32 %v1881, 2147483648
        %v1999 = vor.u32 1.1754944e-38, %v1998
        %v2000 = vsel %vm1997, %v1999, %v1995
        %v2001 = vmul.f32 1.0, %v2000
        %v2002 = vrcp.pop %v1882
        %v2003 = vmul.f32 %v1882, %v2002
        %v2004 = vsub.f32 1.0, %v2003
        %v2005 = vmul.f32 %v2002, %v2004
        %v2006 = vadd.f32 %v2002, %v2005
        %vm2007 = vweird.f32 %v1882
        %vm2008 = vweird.f32 %v2002
        %vm2009 = vmor %vm2007, %vm2008
        %v2010 = vsel %vm2009, %v2002, %v2006
        %v2011 = vand.u32 2147483647, %v1882
        %vm2012 = vcmp.eq.f32.partialorder %v2011, 8.507059e+37
        %v2013 = vand.u32 %v1882, 2147483648
        %v2014 = vor.u32 1.1754944e-38, %v2013
        %v2015 = vsel %vm2012, %v2014, %v2010
        %v2016 = vmul.f32 1.0, %v2015
        %v2017 = vrcp.pop %v1883
        %v2018 = vmul.f32 %v1883, %v2017
        %v2019 = vsub.f32 1.0, %v2018
        %v2020 = vmul.f32 %v2017, %v2019
        %v2021 = vadd.f32 %v2017, %v2020
        %vm2022 = vweird.f32 %v1883
        %vm2023 = vweird.f32 %v2017
        %vm2024 = vmor %vm2022, %vm2023
        %v2025 = vsel %vm2024, %v2017, %v2021
        %v2026 = vand.u32 2147483647, %v1883
        %vm2027 = vcmp.eq.f32.partialorder %v2026, 8.507059e+37
        %v2028 = vand.u32 %v1883, 2147483648
        %v2029 = vor.u32 1.1754944e-38, %v2028
        %v2030 = vsel %vm2027, %v2029, %v2025
        %v2031 = vmul.f32 1.0, %v2030
        %v2032 = vrcp.pop %v1884
        %v2033 = vmul.f32 %v1884, %v2032
        %v2034 = vsub.f32 1.0, %v2033
        %v2035 = vmul.f32 %v2032, %v2034
        %v2036 = vadd.f32 %v2032, %v2035
        %vm2037 = vweird.f32 %v1884
        %vm2038 = vweird.f32 %v2032
        %vm2039 = vmor %vm2037, %vm2038
        %v2040 = vsel %vm2039, %v2032, %v2036
        %v2041 = vand.u32 2147483647, %v1884
        %vm2042 = vcmp.eq.f32.partialorder %v2041, 8.507059e+37
        %v2043 = vand.u32 %v1884, 2147483648
        %v2044 = vor.u32 1.1754944e-38, %v2043
        %v2045 = vsel %vm2042, %v2044, %v2040
        %v2046 = vmul.f32 1.0, %v2045
        %v2047 = vrcp.pop %v1885
        %v2048 = vmul.f32 %v1885, %v2047
        %v2049 = vsub.f32 1.0, %v2048
        %v2050 = vmul.f32 %v2047, %v2049
        %v2051 = vadd.f32 %v2047, %v2050
        %vm2052 = vweird.f32 %v1885
        %vm2053 = vweird.f32 %v2047
        %vm2054 = vmor %vm2052, %vm2053
        %v2055 = vsel %vm2054, %v2047, %v2051
        %v2056 = vand.u32 2147483647, %v1885
        %vm2057 = vcmp.eq.f32.partialorder %v2056, 8.507059e+37
        %v2058 = vand.u32 %v1885, 2147483648
        %v2059 = vor.u32 1.1754944e-38, %v2058
        %v2060 = vsel %vm2057, %v2059, %v2055
        %v2061 = vmul.f32 1.0, %v2060
        %v2062 = vrcp.pop %v1886
        %v2063 = vmul.f32 %v1886, %v2062
        %v2064 = vsub.f32 1.0, %v2063
        %v2065 = vmul.f32 %v2062, %v2064
        %v2066 = vadd.f32 %v2062, %v2065
        %vm2067 = vweird.f32 %v1886
        %vm2068 = vweird.f32 %v2062
        %vm2069 = vmor %vm2067, %vm2068
        %v2070 = vsel %vm2069, %v2062, %v2066
        %v2071 = vand.u32 2147483647, %v1886
        %vm2072 = vcmp.eq.f32.partialorder %v2071, 8.507059e+37
        %v2073 = vand.u32 %v1886, 2147483648
        %v2074 = vor.u32 1.1754944e-38, %v2073
        %v2075 = vsel %vm2072, %v2074, %v2070
        %v2076 = vmul.f32 1.0, %v2075
        %v2077 = vrcp.pop %v1887
        %v2078 = vmul.f32 %v1887, %v2077
        %v2079 = vsub.f32 1.0, %v2078
        %v2080 = vmul.f32 %v2077, %v2079
        %v2081 = vadd.f32 %v2077, %v2080
        %vm2082 = vweird.f32 %v1887
        %vm2083 = vweird.f32 %v2077
        %vm2084 = vmor %vm2082, %vm2083
        %v2085 = vsel %vm2084, %v2077, %v2081
        %v2086 = vand.u32 2147483647, %v1887
        %vm2087 = vcmp.eq.f32.partialorder %v2086, 8.507059e+37
        %v2088 = vand.u32 %v1887, 2147483648
        %v2089 = vor.u32 1.1754944e-38, %v2088
        %v2090 = vsel %vm2087, %v2089, %v2085
        %v2091 = vmul.f32 1.0, %v2090
        %v2092 = vrcp.pop %v1888
        %v2093 = vmul.f32 %v1888, %v2092
        %v2094 = vsub.f32 1.0, %v2093
        %v2095 = vmul.f32 %v2092, %v2094
        %v2096 = vadd.f32 %v2092, %v2095
        %vm2097 = vweird.f32 %v1888
        %vm2098 = vweird.f32 %v2092
        %vm2099 = vmor %vm2097, %vm2098
        %v2100 = vsel %vm2099, %v2092, %v2096
        %v2101 = vand.u32 2147483647, %v1888
        %vm2102 = vcmp.eq.f32.partialorder %v2101, 8.507059e+37
        %v2103 = vand.u32 %v1888, 2147483648
        %v2104 = vor.u32 1.1754944e-38, %v2103
        %v2105 = vsel %vm2102, %v2104, %v2100
        %v2106 = vmul.f32 1.0, %v2105
        %v2107 = vrcp.pop %v1889
        %v2108 = vmul.f32 %v1889, %v2107
        %v2109 = vsub.f32 1.0, %v2108
        %v2110 = vmul.f32 %v2107, %v2109
        %v2111 = vadd.f32 %v2107, %v2110
        %vm2112 = vweird.f32 %v1889
        %vm2113 = vweird.f32 %v2107
        %vm2114 = vmor %vm2112, %vm2113
        %v2115 = vsel %vm2114, %v2107, %v2111
        %v2116 = vand.u32 2147483647, %v1889
        %vm2117 = vcmp.eq.f32.partialorder %v2116, 8.507059e+37
        %v2118 = vand.u32 %v1889, 2147483648
        %v2119 = vor.u32 1.1754944e-38, %v2118
        %v2120 = vsel %vm2117, %v2119, %v2115
        %v2121 = vmul.f32 1.0, %v2120
        %v2122 = vrcp.pop %v1890
        %v2123 = vmul.f32 %v1890, %v2122
        %v2124 = vsub.f32 1.0, %v2123
        %v2125 = vmul.f32 %v2122, %v2124
        %v2126 = vadd.f32 %v2122, %v2125
        %vm2127 = vweird.f32 %v1890
        %vm2128 = vweird.f32 %v2122
        %vm2129 = vmor %vm2127, %vm2128
        %v2130 = vsel %vm2129, %v2122, %v2126
        %v2131 = vand.u32 2147483647, %v1890
        %vm2132 = vcmp.eq.f32.partialorder %v2131, 8.507059e+37
        %v2133 = vand.u32 %v1890, 2147483648
        %v2134 = vor.u32 1.1754944e-38, %v2133
        %v2135 = vsel %vm2132, %v2134, %v2130
        %v2136 = vmul.f32 1.0, %v2135
        %v2137 = vrcp.pop %v1891
        %v2138 = vmul.f32 %v1891, %v2137
        %v2139 = vsub.f32 1.0, %v2138
        %v2140 = vmul.f32 %v2137, %v2139
        %v2141 = vadd.f32 %v2137, %v2140
        %vm2142 = vweird.f32 %v1891
        %vm2143 = vweird.f32 %v2137
        %vm2144 = vmor %vm2142, %vm2143
        %v2145 = vsel %vm2144, %v2137, %v2141
        %v2146 = vand.u32 2147483647, %v1891
        %vm2147 = vcmp.eq.f32.partialorder %v2146, 8.507059e+37
        %v2148 = vand.u32 %v1891, 2147483648
        %v2149 = vor.u32 1.1754944e-38, %v2148
        %v2150 = vsel %vm2147, %v2149, %v2145
        %v2151 = vmul.f32 1.0, %v2150
        %v2152 = vrcp.pop %v1892
        %v2153 = vmul.f32 %v1892, %v2152
        %v2154 = vsub.f32 1.0, %v2153
        %v2155 = vmul.f32 %v2152, %v2154
        %v2156 = vadd.f32 %v2152, %v2155
        %vm2157 = vweird.f32 %v1892
        %vm2158 = vweird.f32 %v2152
        %vm2159 = vmor %vm2157, %vm2158
        %v2160 = vsel %vm2159, %v2152, %v2156
        %v2161 = vand.u32 2147483647, %v1892
        %vm2162 = vcmp.eq.f32.partialorder %v2161, 8.507059e+37
        %v2163 = vand.u32 %v1892, 2147483648
        %v2164 = vor.u32 1.1754944e-38, %v2163
        %v2165 = vsel %vm2162, %v2164, %v2160
        %v2166 = vmul.f32 1.0, %v2165
        %v2167 = vrcp.pop %v1893
        %v2168 = vmul.f32 %v1893, %v2167
        %v2169 = vsub.f32 1.0, %v2168
        %v2170 = vmul.f32 %v2167, %v2169
        %v2171 = vadd.f32 %v2167, %v2170
        %vm2172 = vweird.f32 %v1893
        %vm2173 = vweird.f32 %v2167
        %vm2174 = vmor %vm2172, %vm2173
        %v2175 = vsel %vm2174, %v2167, %v2171
        %v2176 = vand.u32 2147483647, %v1893
        %vm2177 = vcmp.eq.f32.partialorder %v2176, 8.507059e+37
        %v2178 = vand.u32 %v1893, 2147483648
        %v2179 = vor.u32 1.1754944e-38, %v2178
        %v2180 = vsel %vm2177, %v2179, %v2175
        %v2181 = vmul.f32 1.0, %v2180
        %v2182 = vrcp.pop %v1894
        %v2183 = vmul.f32 %v1894, %v2182
        %v2184 = vsub.f32 1.0, %v2183
        %v2185 = vmul.f32 %v2182, %v2184
        %v2186 = vadd.f32 %v2182, %v2185
        %vm2187 = vweird.f32 %v1894
        %vm2188 = vweird.f32 %v2182
        %vm2189 = vmor %vm2187, %vm2188
        %v2190 = vsel %vm2189, %v2182, %v2186
        %v2191 = vand.u32 2147483647, %v1894
        %vm2192 = vcmp.eq.f32.partialorder %v2191, 8.507059e+37
        %v2193 = vand.u32 %v1894, 2147483648
        %v2194 = vor.u32 1.1754944e-38, %v2193
        %v2195 = vsel %vm2192, %v2194, %v2190
        %v2196 = vmul.f32 1.0, %v2195
        %v2197 = vrcp.pop %v1895
        %v2198 = vmul.f32 %v1895, %v2197
        %v2199 = vsub.f32 1.0, %v2198
        %v2200 = vmul.f32 %v2197, %v2199
        %v2201 = vadd.f32 %v2197, %v2200
        %vm2202 = vweird.f32 %v1895
        %vm2203 = vweird.f32 %v2197
        %vm2204 = vmor %vm2202, %vm2203
        %v2205 = vsel %vm2204, %v2197, %v2201
        %v2206 = vand.u32 2147483647, %v1895
        %vm2207 = vcmp.eq.f32.partialorder %v2206, 8.507059e+37
        %v2208 = vand.u32 %v1895, 2147483648
        %v2209 = vor.u32 1.1754944e-38, %v2208
        %v2210 = vsel %vm2207, %v2209, %v2205
        %v2211 = vmul.f32 1.0, %v2210
        %v2212 = vrcp.pop %v1896
        %v2213 = vmul.f32 %v1896, %v2212
        %v2214 = vsub.f32 1.0, %v2213
        %v2215 = vmul.f32 %v2212, %v2214
        %v2216 = vadd.f32 %v2212, %v2215
        %vm2217 = vweird.f32 %v1896
        %vm2218 = vweird.f32 %v2212
        %vm2219 = vmor %vm2217, %vm2218
        %v2220 = vsel %vm2219, %v2212, %v2216
        %v2221 = vand.u32 2147483647, %v1896
        %vm2222 = vcmp.eq.f32.partialorder %v2221, 8.507059e+37
        %v2223 = vand.u32 %v1896, 2147483648
        %v2224 = vor.u32 1.1754944e-38, %v2223
        %v2225 = vsel %vm2222, %v2224, %v2220
        %v2226 = vmul.f32 1.0, %v2225
        %v2227 = vrcp.pop %v1897
        %v2228 = vmul.f32 %v1897, %v2227
        %v2229 = vsub.f32 1.0, %v2228
        %v2230 = vmul.f32 %v2227, %v2229
        %v2231 = vadd.f32 %v2227, %v2230
        %vm2232 = vweird.f32 %v1897
        %vm2233 = vweird.f32 %v2227
        %vm2234 = vmor %vm2232, %vm2233
        %v2235 = vsel %vm2234, %v2227, %v2231
        %v2236 = vand.u32 2147483647, %v1897
        %vm2237 = vcmp.eq.f32.partialorder %v2236, 8.507059e+37
        %v2238 = vand.u32 %v1897, 2147483648
        %v2239 = vor.u32 1.1754944e-38, %v2238
        %v2240 = vsel %vm2237, %v2239, %v2235
        %v2241 = vmul.f32 1.0, %v2240
        %v2242 = vrcp.pop %v1898
        %v2243 = vmul.f32 %v1898, %v2242
        %v2244 = vsub.f32 1.0, %v2243
        %v2245 = vmul.f32 %v2242, %v2244
        %v2246 = vadd.f32 %v2242, %v2245
        %vm2247 = vweird.f32 %v1898
        %vm2248 = vweird.f32 %v2242
        %vm2249 = vmor %vm2247, %vm2248
        %v2250 = vsel %vm2249, %v2242, %v2246
        %v2251 = vand.u32 2147483647, %v1898
        %vm2252 = vcmp.eq.f32.partialorder %v2251, 8.507059e+37
        %v2253 = vand.u32 %v1898, 2147483648
        %v2254 = vor.u32 1.1754944e-38, %v2253
        %v2255 = vsel %vm2252, %v2254, %v2250
        %v2256 = vmul.f32 1.0, %v2255
        %v2257 = vrcp.pop %v1899
        %v2258 = vmul.f32 %v1899, %v2257
        %v2259 = vsub.f32 1.0, %v2258
        %v2260 = vmul.f32 %v2257, %v2259
        %v2261 = vadd.f32 %v2257, %v2260
        %vm2262 = vweird.f32 %v1899
        %vm2263 = vweird.f32 %v2257
        %vm2264 = vmor %vm2262, %vm2263
        %v2265 = vsel %vm2264, %v2257, %v2261
        %v2266 = vand.u32 2147483647, %v1899
        %vm2267 = vcmp.eq.f32.partialorder %v2266, 8.507059e+37
        %v2268 = vand.u32 %v1899, 2147483648
        %v2269 = vor.u32 1.1754944e-38, %v2268
        %v2270 = vsel %vm2267, %v2269, %v2265
        %v2271 = vmul.f32 1.0, %v2270
        %v2272 = vrcp.pop %v1900
        %v2273 = vmul.f32 %v1900, %v2272
        %v2274 = vsub.f32 1.0, %v2273
        %v2275 = vmul.f32 %v2272, %v2274
        %v2276 = vadd.f32 %v2272, %v2275
        %vm2277 = vweird.f32 %v1900
        %vm2278 = vweird.f32 %v2272
        %vm2279 = vmor %vm2277, %vm2278
        %v2280 = vsel %vm2279, %v2272, %v2276
        %v2281 = vand.u32 2147483647, %v1900
        %vm2282 = vcmp.eq.f32.partialorder %v2281, 8.507059e+37
        %v2283 = vand.u32 %v1900, 2147483648
        %v2284 = vor.u32 1.1754944e-38, %v2283
        %v2285 = vsel %vm2282, %v2284, %v2280
        %v2286 = vmul.f32 1.0, %v2285
        %v2287 = vrcp.pop %v1901
        %v2288 = vmul.f32 %v1901, %v2287
        %v2289 = vsub.f32 1.0, %v2288
        %v2290 = vmul.f32 %v2287, %v2289
        %v2291 = vadd.f32 %v2287, %v2290
        %vm2292 = vweird.f32 %v1901
        %vm2293 = vweird.f32 %v2287
        %vm2294 = vmor %vm2292, %vm2293
        %v2295 = vsel %vm2294, %v2287, %v2291
        %v2296 = vand.u32 2147483647, %v1901
        %vm2297 = vcmp.eq.f32.partialorder %v2296, 8.507059e+37
        %v2298 = vand.u32 %v1901, 2147483648
        %v2299 = vor.u32 1.1754944e-38, %v2298
        %v2300 = vsel %vm2297, %v2299, %v2295
        %v2301 = vmul.f32 1.0, %v2300
        %v2302 = vrcp.pop %v1902
        %v2303 = vmul.f32 %v1902, %v2302
        %v2304 = vsub.f32 1.0, %v2303
        %v2305 = vmul.f32 %v2302, %v2304
        %v2306 = vadd.f32 %v2302, %v2305
        %vm2307 = vweird.f32 %v1902
        %vm2308 = vweird.f32 %v2302
        %vm2309 = vmor %vm2307, %vm2308
        %v2310 = vsel %vm2309, %v2302, %v2306
        %v2311 = vand.u32 2147483647, %v1902
        %vm2312 = vcmp.eq.f32.partialorder %v2311, 8.507059e+37
        %v2313 = vand.u32 %v1902, 2147483648
        %v2314 = vor.u32 1.1754944e-38, %v2313
        %v2315 = vsel %vm2312, %v2314, %v2310
        %v2316 = vmul.f32 1.0, %v2315
        %v2317 = vrcp.pop %v1903
        %v2318 = vmul.f32 %v1903, %v2317
        %v2319 = vsub.f32 1.0, %v2318
        %v2320 = vmul.f32 %v2317, %v2319
        %v2321 = vadd.f32 %v2317, %v2320
        %vm2322 = vweird.f32 %v1903
        %vm2323 = vweird.f32 %v2317
        %vm2324 = vmor %vm2322, %vm2323
        %v2325 = vsel %vm2324, %v2317, %v2321
        %v2326 = vand.u32 2147483647, %v1903
        %vm2327 = vcmp.eq.f32.partialorder %v2326, 8.507059e+37
        %v2328 = vand.u32 %v1903, 2147483648
        %v2329 = vor.u32 1.1754944e-38, %v2328
        %v2330 = vsel %vm2327, %v2329, %v2325
        %v2331 = vmul.f32 1.0, %v2330
        %v2332 = vrcp.pop %v1904
        %v2333 = vmul.f32 %v1904, %v2332
        %v2334 = vsub.f32 1.0, %v2333
        %v2335 = vmul.f32 %v2332, %v2334
        %v2336 = vadd.f32 %v2332, %v2335
        %vm2337 = vweird.f32 %v1904
        %vm2338 = vweird.f32 %v2332
        %vm2339 = vmor %vm2337, %vm2338
        %v2340 = vsel %vm2339, %v2332, %v2336
        %v2341 = vand.u32 2147483647, %v1904
        %vm2342 = vcmp.eq.f32.partialorder %v2341, 8.507059e+37
        %v2343 = vand.u32 %v1904, 2147483648
        %v2344 = vor.u32 1.1754944e-38, %v2343
        %v2345 = vsel %vm2342, %v2344, %v2340
        %v2346 = vmul.f32 1.0, %v2345
        %v2347 = vrcp.pop %v1905
        %v2348 = vmul.f32 %v1905, %v2347
        %v2349 = vsub.f32 1.0, %v2348
        %v2350 = vmul.f32 %v2347, %v2349
        %v2351 = vadd.f32 %v2347, %v2350
        %vm2352 = vweird.f32 %v1905
        %vm2353 = vweird.f32 %v2347
        %vm2354 = vmor %vm2352, %vm2353
        %v2355 = vsel %vm2354, %v2347, %v2351
        %v2356 = vand.u32 2147483647, %v1905
        %vm2357 = vcmp.eq.f32.partialorder %v2356, 8.507059e+37
        %v2358 = vand.u32 %v1905, 2147483648
        %v2359 = vor.u32 1.1754944e-38, %v2358
        %v2360 = vsel %vm2357, %v2359, %v2355
        %v2361 = vmul.f32 1.0, %v2360
        %v2362 = vrcp.pop %v1906
        %v2363 = vmul.f32 %v1906, %v2362
        %v2364 = vsub.f32 1.0, %v2363
        %v2365 = vmul.f32 %v2362, %v2364
        %v2366 = vadd.f32 %v2362, %v2365
        %vm2367 = vweird.f32 %v1906
        %vm2368 = vweird.f32 %v2362
        %vm2369 = vmor %vm2367, %vm2368
        %v2370 = vsel %vm2369, %v2362, %v2366
        %v2371 = vand.u32 2147483647, %v1906
        %vm2372 = vcmp.eq.f32.partialorder %v2371, 8.507059e+37
        %v2373 = vand.u32 %v1906, 2147483648
        %v2374 = vor.u32 1.1754944e-38, %v2373
        %v2375 = vsel %vm2372, %v2374, %v2370
        %v2376 = vmul.f32 1.0, %v2375
        %v2377 = vrcp.pop %v1907
        %v2378 = vmul.f32 %v1907, %v2377
        %v2379 = vsub.f32 1.0, %v2378
        %v2380 = vmul.f32 %v2377, %v2379
        %v2381 = vadd.f32 %v2377, %v2380
        %vm2382 = vweird.f32 %v1907
        %vm2383 = vweird.f32 %v2377
        %vm2384 = vmor %vm2382, %vm2383
        %v2385 = vsel %vm2384, %v2377, %v2381
        %v2386 = vand.u32 2147483647, %v1907
        %vm2387 = vcmp.eq.f32.partialorder %v2386, 8.507059e+37
        %v2388 = vand.u32 %v1907, 2147483648
        %v2389 = vor.u32 1.1754944e-38, %v2388
        %v2390 = vsel %vm2387, %v2389, %v2385
        %v2391 = vmul.f32 1.0, %v2390
        %v2392 = vrcp.pop %v1908
        %v2393 = vmul.f32 %v1908, %v2392
        %v2394 = vsub.f32 1.0, %v2393
        %v2395 = vmul.f32 %v2392, %v2394
        %v2396 = vadd.f32 %v2392, %v2395
        %vm2397 = vweird.f32 %v1908
        %vm2398 = vweird.f32 %v2392
        %vm2399 = vmor %vm2397, %vm2398
        %v2400 = vsel %vm2399, %v2392, %v2396
        %v2401 = vand.u32 2147483647, %v1908
        %vm2402 = vcmp.eq.f32.partialorder %v2401, 8.507059e+37
        %v2403 = vand.u32 %v1908, 2147483648
        %v2404 = vor.u32 1.1754944e-38, %v2403
        %v2405 = vsel %vm2402, %v2404, %v2400
        %v2406 = vmul.f32 1.0, %v2405
        %v2407 = vrcp.pop %v1909
        %v2408 = vmul.f32 %v1909, %v2407
        %v2409 = vsub.f32 1.0, %v2408
        %v2410 = vmul.f32 %v2407, %v2409
        %v2411 = vadd.f32 %v2407, %v2410
        %vm2412 = vweird.f32 %v1909
        %vm2413 = vweird.f32 %v2407
        %vm2414 = vmor %vm2412, %vm2413
        %v2415 = vsel %vm2414, %v2407, %v2411
        %v2416 = vand.u32 2147483647, %v1909
        %vm2417 = vcmp.eq.f32.partialorder %v2416, 8.507059e+37
        %v2418 = vand.u32 %v1909, 2147483648
        %v2419 = vor.u32 1.1754944e-38, %v2418
        %v2420 = vsel %vm2417, %v2419, %v2415
        %v2421 = vmul.f32 1.0, %v2420
        %v2422 = vrcp.pop %v1910
        %v2423 = vmul.f32 %v1910, %v2422
        %v2424 = vsub.f32 1.0, %v2423
        %v2425 = vmul.f32 %v2422, %v2424
        %v2426 = vadd.f32 %v2422, %v2425
        %vm2427 = vweird.f32 %v1910
        %vm2428 = vweird.f32 %v2422
        %vm2429 = vmor %vm2427, %vm2428
        %v2430 = vsel %vm2429, %v2422, %v2426
        %v2431 = vand.u32 2147483647, %v1910
        %vm2432 = vcmp.eq.f32.partialorder %v2431, 8.507059e+37
        %v2433 = vand.u32 %v1910, 2147483648
        %v2434 = vor.u32 1.1754944e-38, %v2433
        %v2435 = vsel %vm2432, %v2434, %v2430
        %v2436 = vmul.f32 1.0, %v2435
        %v2437 = vrcp.pop %v1911
        %v2438 = vmul.f32 %v1911, %v2437
        %v2439 = vsub.f32 1.0, %v2438
        %v2440 = vmul.f32 %v2437, %v2439
        %v2441 = vadd.f32 %v2437, %v2440
        %vm2442 = vweird.f32 %v1911
        %vm2443 = vweird.f32 %v2437
        %vm2444 = vmor %vm2442, %vm2443
        %v2445 = vsel %vm2444, %v2437, %v2441
        %v2446 = vand.u32 2147483647, %v1911
        %vm2447 = vcmp.eq.f32.partialorder %v2446, 8.507059e+37
        %v2448 = vand.u32 %v1911, 2147483648
        %v2449 = vor.u32 1.1754944e-38, %v2448
        %v2450 = vsel %vm2447, %v2449, %v2445
        %v2451 = vmul.f32 1.0, %v2450
        %v2452 = vrcp.pop %v1912
        %v2453 = vmul.f32 %v1912, %v2452
        %v2454 = vsub.f32 1.0, %v2453
        %v2455 = vmul.f32 %v2452, %v2454
        %v2456 = vadd.f32 %v2452, %v2455
        %vm2457 = vweird.f32 %v1912
        %vm2458 = vweird.f32 %v2452
        %vm2459 = vmor %vm2457, %vm2458
        %v2460 = vsel %vm2459, %v2452, %v2456
        %v2461 = vand.u32 2147483647, %v1912
        %vm2462 = vcmp.eq.f32.partialorder %v2461, 8.507059e+37
        %v2463 = vand.u32 %v1912, 2147483648
        %v2464 = vor.u32 1.1754944e-38, %v2463
        %v2465 = vsel %vm2462, %v2464, %v2460
        %v2466 = vmul.f32 1.0, %v2465
        %v2467 = vrcp.pop %v1913
        %v2468 = vmul.f32 %v1913, %v2467
        %v2469 = vsub.f32 1.0, %v2468
        %v2470 = vmul.f32 %v2467, %v2469
        %v2471 = vadd.f32 %v2467, %v2470
        %vm2472 = vweird.f32 %v1913
        %vm2473 = vweird.f32 %v2467
        %vm2474 = vmor %vm2472, %vm2473
        %v2475 = vsel %vm2474, %v2467, %v2471
        %v2476 = vand.u32 2147483647, %v1913
        %vm2477 = vcmp.eq.f32.partialorder %v2476, 8.507059e+37
        %v2478 = vand.u32 %v1913, 2147483648
        %v2479 = vor.u32 1.1754944e-38, %v2478
        %v2480 = vsel %vm2477, %v2479, %v2475
        %v2481 = vmul.f32 1.0, %v2480
        %v2482 = vrcp.pop %v1914
        %v2483 = vmul.f32 %v1914, %v2482
        %v2484 = vsub.f32 1.0, %v2483
        %v2485 = vmul.f32 %v2482, %v2484
        %v2486 = vadd.f32 %v2482, %v2485
        %vm2487 = vweird.f32 %v1914
        %vm2488 = vweird.f32 %v2482
        %vm2489 = vmor %vm2487, %vm2488
        %v2490 = vsel %vm2489, %v2482, %v2486
        %v2491 = vand.u32 2147483647, %v1914
        %vm2492 = vcmp.eq.f32.partialorder %v2491, 8.507059e+37
        %v2493 = vand.u32 %v1914, 2147483648
        %v2494 = vor.u32 1.1754944e-38, %v2493
        %v2495 = vsel %vm2492, %v2494, %v2490
        %v2496 = vmul.f32 1.0, %v2495
        %v2497 = vrcp.pop %v1915
        %v2498 = vmul.f32 %v1915, %v2497
        %v2499 = vsub.f32 1.0, %v2498
        %v2500 = vmul.f32 %v2497, %v2499
        %v2501 = vadd.f32 %v2497, %v2500
        %vm2502 = vweird.f32 %v1915
        %vm2503 = vweird.f32 %v2497
        %vm2504 = vmor %vm2502, %vm2503
        %v2505 = vsel %vm2504, %v2497, %v2501
        %v2506 = vand.u32 2147483647, %v1915
        %vm2507 = vcmp.eq.f32.partialorder %v2506, 8.507059e+37
        %v2508 = vand.u32 %v1915, 2147483648
        %v2509 = vor.u32 1.1754944e-38, %v2508
        %v2510 = vsel %vm2507, %v2509, %v2505
        %v2511 = vmul.f32 1.0, %v2510
        %v2512 = vrcp.pop %v1916
        %v2513 = vmul.f32 %v1916, %v2512
        %v2514 = vsub.f32 1.0, %v2513
        %v2515 = vmul.f32 %v2512, %v2514
        %v2516 = vadd.f32 %v2512, %v2515
        %vm2517 = vweird.f32 %v1916
        %vm2518 = vweird.f32 %v2512
        %vm2519 = vmor %vm2517, %vm2518
        %v2520 = vsel %vm2519, %v2512, %v2516
        %v2521 = vand.u32 2147483647, %v1916
        %vm2522 = vcmp.eq.f32.partialorder %v2521, 8.507059e+37
        %v2523 = vand.u32 %v1916, 2147483648
        %v2524 = vor.u32 1.1754944e-38, %v2523
        %v2525 = vsel %vm2522, %v2524, %v2520
        %v2526 = vmul.f32 1.0, %v2525
        %v2527 = vrcp.pop %v1917
        %v2528 = vmul.f32 %v1917, %v2527
        %v2529 = vsub.f32 1.0, %v2528
        %v2530 = vmul.f32 %v2527, %v2529
        %v2531 = vadd.f32 %v2527, %v2530
        %vm2532 = vweird.f32 %v1917
        %vm2533 = vweird.f32 %v2527
        %vm2534 = vmor %vm2532, %vm2533
        %v2535 = vsel %vm2534, %v2527, %v2531
        %v2536 = vand.u32 2147483647, %v1917
        %vm2537 = vcmp.eq.f32.partialorder %v2536, 8.507059e+37
        %v2538 = vand.u32 %v1917, 2147483648
        %v2539 = vor.u32 1.1754944e-38, %v2538
        %v2540 = vsel %vm2537, %v2539, %v2535
        %v2541 = vmul.f32 1.0, %v2540
        %v2542 = vrcp.pop %v1918
        %v2543 = vmul.f32 %v1918, %v2542
        %v2544 = vsub.f32 1.0, %v2543
        %v2545 = vmul.f32 %v2542, %v2544
        %v2546 = vadd.f32 %v2542, %v2545
        %vm2547 = vweird.f32 %v1918
        %vm2548 = vweird.f32 %v2542
        %vm2549 = vmor %vm2547, %vm2548
        %v2550 = vsel %vm2549, %v2542, %v2546
        %v2551 = vand.u32 2147483647, %v1918
        %vm2552 = vcmp.eq.f32.partialorder %v2551, 8.507059e+37
        %v2553 = vand.u32 %v1918, 2147483648
        %v2554 = vor.u32 1.1754944e-38, %v2553
        %v2555 = vsel %vm2552, %v2554, %v2550
        %v2556 = vmul.f32 1.0, %v2555
        %v2557 = vrcp.pop %v1919
        %v2558 = vmul.f32 %v1919, %v2557
        %v2559 = vsub.f32 1.0, %v2558
        %v2560 = vmul.f32 %v2557, %v2559
        %v2561 = vadd.f32 %v2557, %v2560
        %vm2562 = vweird.f32 %v1919
        %vm2563 = vweird.f32 %v2557
        %vm2564 = vmor %vm2562, %vm2563
        %v2565 = vsel %vm2564, %v2557, %v2561
        %v2566 = vand.u32 2147483647, %v1919
        %vm2567 = vcmp.eq.f32.partialorder %v2566, 8.507059e+37
        %v2568 = vand.u32 %v1919, 2147483648
        %v2569 = vor.u32 1.1754944e-38, %v2568
        %v2570 = vsel %vm2567, %v2569, %v2565
        %v2571 = vmul.f32 1.0, %v2570
        %v2572 = vrcp.pop %v1920
        %v2573 = vmul.f32 %v1920, %v2572
        %v2574 = vsub.f32 1.0, %v2573
        %v2575 = vmul.f32 %v2572, %v2574
        %v2576 = vadd.f32 %v2572, %v2575
        %vm2577 = vweird.f32 %v1920
        %vm2578 = vweird.f32 %v2572
        %vm2579 = vmor %vm2577, %vm2578
        %v2580 = vsel %vm2579, %v2572, %v2576
        %v2581 = vand.u32 2147483647, %v1920
        %vm2582 = vcmp.eq.f32.partialorder %v2581, 8.507059e+37
        %v2583 = vand.u32 %v1920, 2147483648
        %v2584 = vor.u32 1.1754944e-38, %v2583
        %v2585 = vsel %vm2582, %v2584, %v2580
        %v2586 = vmul.f32 1.0, %v2585
        %v2587 = vrcp.pop %v1921
        %v2588 = vmul.f32 %v1921, %v2587
        %v2589 = vsub.f32 1.0, %v2588
        %v2590 = vmul.f32 %v2587, %v2589
        %v2591 = vadd.f32 %v2587, %v2590
        %vm2592 = vweird.f32 %v1921
        %vm2593 = vweird.f32 %v2587
        %vm2594 = vmor %vm2592, %vm2593
        %v2595 = vsel %vm2594, %v2587, %v2591
        %v2596 = vand.u32 2147483647, %v1921
        %vm2597 = vcmp.eq.f32.partialorder %v2596, 8.507059e+37
        %v2598 = vand.u32 %v1921, 2147483648
        %v2599 = vor.u32 1.1754944e-38, %v2598
        %v2600 = vsel %vm2597, %v2599, %v2595
        %v2601 = vmul.f32 1.0, %v2600
        %v2602 = vrcp.pop %v1922
        %v2603 = vmul.f32 %v1922, %v2602
        %v2604 = vsub.f32 1.0, %v2603
        %v2605 = vmul.f32 %v2602, %v2604
        %v2606 = vadd.f32 %v2602, %v2605
        %vm2607 = vweird.f32 %v1922
        %vm2608 = vweird.f32 %v2602
        %vm2609 = vmor %vm2607, %vm2608
        %v2610 = vsel %vm2609, %v2602, %v2606
        %v2611 = vand.u32 2147483647, %v1922
        %vm2612 = vcmp.eq.f32.partialorder %v2611, 8.507059e+37
        %v2613 = vand.u32 %v1922, 2147483648
        %v2614 = vor.u32 1.1754944e-38, %v2613
        %v2615 = vsel %vm2612, %v2614, %v2610
        %v2616 = vmul.f32 1.0, %v2615
        %v2617 = vrcp.pop %v1923
        %v2618 = vmul.f32 %v1923, %v2617
        %v2619 = vsub.f32 1.0, %v2618
        %v2620 = vmul.f32 %v2617, %v2619
        %v2621 = vadd.f32 %v2617, %v2620
        %vm2622 = vweird.f32 %v1923
        %vm2623 = vweird.f32 %v2617
        %vm2624 = vmor %vm2622, %vm2623
        %v2625 = vsel %vm2624, %v2617, %v2621
        %v2626 = vand.u32 2147483647, %v1923
        %vm2627 = vcmp.eq.f32.partialorder %v2626, 8.507059e+37
        %v2628 = vand.u32 %v1923, 2147483648
        %v2629 = vor.u32 1.1754944e-38, %v2628
        %v2630 = vsel %vm2627, %v2629, %v2625
        %v2631 = vmul.f32 1.0, %v2630
        %v2632 = vrcp.pop %v1924
        %v2633 = vmul.f32 %v1924, %v2632
        %v2634 = vsub.f32 1.0, %v2633
        %v2635 = vmul.f32 %v2632, %v2634
        %v2636 = vadd.f32 %v2632, %v2635
        %vm2637 = vweird.f32 %v1924
        %vm2638 = vweird.f32 %v2632
        %vm2639 = vmor %vm2637, %vm2638
        %v2640 = vsel %vm2639, %v2632, %v2636
        %v2641 = vand.u32 2147483647, %v1924
        %vm2642 = vcmp.eq.f32.partialorder %v2641, 8.507059e+37
        %v2643 = vand.u32 %v1924, 2147483648
        %v2644 = vor.u32 1.1754944e-38, %v2643
        %v2645 = vsel %vm2642, %v2644, %v2640
        %v2646 = vmul.f32 1.0, %v2645
        %v2647 = vrcp.pop %v1925
        %v2648 = vmul.f32 %v1925, %v2647
        %v2649 = vsub.f32 1.0, %v2648
        %v2650 = vmul.f32 %v2647, %v2649
        %v2651 = vadd.f32 %v2647, %v2650
        %vm2652 = vweird.f32 %v1925
        %vm2653 = vweird.f32 %v2647
        %vm2654 = vmor %vm2652, %vm2653
        %v2655 = vsel %vm2654, %v2647, %v2651
        %v2656 = vand.u32 2147483647, %v1925
        %vm2657 = vcmp.eq.f32.partialorder %v2656, 8.507059e+37
        %v2658 = vand.u32 %v1925, 2147483648
        %v2659 = vor.u32 1.1754944e-38, %v2658
        %v2660 = vsel %vm2657, %v2659, %v2655
        %v2661 = vmul.f32 1.0, %v2660
        %v2662 = vrcp.pop %v1926
        %v2663 = vmul.f32 %v1926, %v2662
        %v2664 = vsub.f32 1.0, %v2663
        %v2665 = vmul.f32 %v2662, %v2664
        %v2666 = vadd.f32 %v2662, %v2665
        %vm2667 = vweird.f32 %v1926
        %vm2668 = vweird.f32 %v2662
        %vm2669 = vmor %vm2667, %vm2668
        %v2670 = vsel %vm2669, %v2662, %v2666
        %v2671 = vand.u32 2147483647, %v1926
        %vm2672 = vcmp.eq.f32.partialorder %v2671, 8.507059e+37
        %v2673 = vand.u32 %v1926, 2147483648
        %v2674 = vor.u32 1.1754944e-38, %v2673
        %v2675 = vsel %vm2672, %v2674, %v2670
        %v2676 = vmul.f32 1.0, %v2675
        %v2677 = vrcp.pop %v1927
        %v2678 = vmul.f32 %v1927, %v2677
        %v2679 = vsub.f32 1.0, %v2678
        %v2680 = vmul.f32 %v2677, %v2679
        %v2681 = vadd.f32 %v2677, %v2680
        %vm2682 = vweird.f32 %v1927
        %vm2683 = vweird.f32 %v2677
        %vm2684 = vmor %vm2682, %vm2683
        %v2685 = vsel %vm2684, %v2677, %v2681
        %v2686 = vand.u32 2147483647, %v1927
        %vm2687 = vcmp.eq.f32.partialorder %v2686, 8.507059e+37
        %v2688 = vand.u32 %v1927, 2147483648
        %v2689 = vor.u32 1.1754944e-38, %v2688
        %v2690 = vsel %vm2687, %v2689, %v2685
        %v2691 = vmul.f32 1.0, %v2690
        %v2692 = vrcp.pop %v1928
        %v2693 = vmul.f32 %v1928, %v2692
        %v2694 = vsub.f32 1.0, %v2693
        %v2695 = vmul.f32 %v2692, %v2694
        %v2696 = vadd.f32 %v2692, %v2695
        %vm2697 = vweird.f32 %v1928
        %vm2698 = vweird.f32 %v2692
        %vm2699 = vmor %vm2697, %vm2698
        %v2700 = vsel %vm2699, %v2692, %v2696
        %v2701 = vand.u32 2147483647, %v1928
        %vm2702 = vcmp.eq.f32.partialorder %v2701, 8.507059e+37
        %v2703 = vand.u32 %v1928, 2147483648
        %v2704 = vor.u32 1.1754944e-38, %v2703
        %v2705 = vsel %vm2702, %v2704, %v2700
        %v2706 = vmul.f32 1.0, %v2705
        %v2707 = vrcp.pop %v1929
        %v2708 = vmul.f32 %v1929, %v2707
        %v2709 = vsub.f32 1.0, %v2708
        %v2710 = vmul.f32 %v2707, %v2709
        %v2711 = vadd.f32 %v2707, %v2710
        %vm2712 = vweird.f32 %v1929
        %vm2713 = vweird.f32 %v2707
        %vm2714 = vmor %vm2712, %vm2713
        %v2715 = vsel %vm2714, %v2707, %v2711
        %v2716 = vand.u32 2147483647, %v1929
        %vm2717 = vcmp.eq.f32.partialorder %v2716, 8.507059e+37
        %v2718 = vand.u32 %v1929, 2147483648
        %v2719 = vor.u32 1.1754944e-38, %v2718
        %v2720 = vsel %vm2717, %v2719, %v2715
        %v2721 = vmul.f32 1.0, %v2720
        %v2722 = vrcp.pop %v1930
        %v2723 = vmul.f32 %v1930, %v2722
        %v2724 = vsub.f32 1.0, %v2723
        %v2725 = vmul.f32 %v2722, %v2724
        %v2726 = vadd.f32 %v2722, %v2725
        %vm2727 = vweird.f32 %v1930
        %vm2728 = vweird.f32 %v2722
        %vm2729 = vmor %vm2727, %vm2728
        %v2730 = vsel %vm2729, %v2722, %v2726
        %v2731 = vand.u32 2147483647, %v1930
        %vm2732 = vcmp.eq.f32.partialorder %v2731, 8.507059e+37
        %v2733 = vand.u32 %v1930, 2147483648
        %v2734 = vor.u32 1.1754944e-38, %v2733
        %v2735 = vsel %vm2732, %v2734, %v2730
        %v2736 = vmul.f32 1.0, %v2735
        %v2737 = vrcp.pop %v1931
        %v2738 = vmul.f32 %v1931, %v2737
        %v2739 = vsub.f32 1.0, %v2738
        %v2740 = vmul.f32 %v2737, %v2739
        %v2741 = vadd.f32 %v2737, %v2740
        %vm2742 = vweird.f32 %v1931
        %vm2743 = vweird.f32 %v2737
        %vm2744 = vmor %vm2742, %vm2743
        %v2745 = vsel %vm2744, %v2737, %v2741
        %v2746 = vand.u32 2147483647, %v1931
        %vm2747 = vcmp.eq.f32.partialorder %v2746, 8.507059e+37
        %v2748 = vand.u32 %v1931, 2147483648
        %v2749 = vor.u32 1.1754944e-38, %v2748
        %v2750 = vsel %vm2747, %v2749, %v2745
        %v2751 = vmul.f32 1.0, %v2750
        %v2752 = vrcp.pop %v1932
        %v2753 = vmul.f32 %v1932, %v2752
        %v2754 = vsub.f32 1.0, %v2753
        %v2755 = vmul.f32 %v2752, %v2754
        %v2756 = vadd.f32 %v2752, %v2755
        %vm2757 = vweird.f32 %v1932
        %vm2758 = vweird.f32 %v2752
        %vm2759 = vmor %vm2757, %vm2758
        %v2760 = vsel %vm2759, %v2752, %v2756
        %v2761 = vand.u32 2147483647, %v1932
        %vm2762 = vcmp.eq.f32.partialorder %v2761, 8.507059e+37
        %v2763 = vand.u32 %v1932, 2147483648
        %v2764 = vor.u32 1.1754944e-38, %v2763
        %v2765 = vsel %vm2762, %v2764, %v2760
        %v2766 = vmul.f32 1.0, %v2765
        %v2767 = vrcp.pop %v1933
        %v2768 = vmul.f32 %v1933, %v2767
        %v2769 = vsub.f32 1.0, %v2768
        %v2770 = vmul.f32 %v2767, %v2769
        %v2771 = vadd.f32 %v2767, %v2770
        %vm2772 = vweird.f32 %v1933
        %vm2773 = vweird.f32 %v2767
        %vm2774 = vmor %vm2772, %vm2773
        %v2775 = vsel %vm2774, %v2767, %v2771
        %v2776 = vand.u32 2147483647, %v1933
        %vm2777 = vcmp.eq.f32.partialorder %v2776, 8.507059e+37
        %v2778 = vand.u32 %v1933, 2147483648
        %v2779 = vor.u32 1.1754944e-38, %v2778
        %v2780 = vsel %vm2777, %v2779, %v2775
        %v2781 = vmul.f32 1.0, %v2780
        %v2782 = vrcp.pop %v1934
        %v2783 = vmul.f32 %v1934, %v2782
        %v2784 = vsub.f32 1.0, %v2783
        %v2785 = vmul.f32 %v2782, %v2784
        %v2786 = vadd.f32 %v2782, %v2785
        %vm2787 = vweird.f32 %v1934
        %vm2788 = vweird.f32 %v2782
        %vm2789 = vmor %vm2787, %vm2788
        %v2790 = vsel %vm2789, %v2782, %v2786
        %v2791 = vand.u32 2147483647, %v1934
        %vm2792 = vcmp.eq.f32.partialorder %v2791, 8.507059e+37
        %v2793 = vand.u32 %v1934, 2147483648
        %v2794 = vor.u32 1.1754944e-38, %v2793
        %v2795 = vsel %vm2792, %v2794, %v2790
        %v2796 = vmul.f32 1.0, %v2795
        %v2797 = vrcp.pop %v1935
        %v2798 = vmul.f32 %v1935, %v2797
        %v2799 = vsub.f32 1.0, %v2798
        %v2800 = vmul.f32 %v2797, %v2799
        %v2801 = vadd.f32 %v2797, %v2800
        %vm2802 = vweird.f32 %v1935
        %vm2803 = vweird.f32 %v2797
        %vm2804 = vmor %vm2802, %vm2803
        %v2805 = vsel %vm2804, %v2797, %v2801
        %v2806 = vand.u32 2147483647, %v1935
        %vm2807 = vcmp.eq.f32.partialorder %v2806, 8.507059e+37
        %v2808 = vand.u32 %v1935, 2147483648
        %v2809 = vor.u32 1.1754944e-38, %v2808
        %v2810 = vsel %vm2807, %v2809, %v2805
        %v2811 = vmul.f32 1.0, %v2810
        %v2812 = vrcp.pop %v1936
        %v2813 = vmul.f32 %v1936, %v2812
        %v2814 = vsub.f32 1.0, %v2813
        %v2815 = vmul.f32 %v2812, %v2814
        %v2816 = vadd.f32 %v2812, %v2815
        %vm2817 = vweird.f32 %v1936
        %vm2818 = vweird.f32 %v2812
        %vm2819 = vmor %vm2817, %vm2818
        %v2820 = vsel %vm2819, %v2812, %v2816
        %v2821 = vand.u32 2147483647, %v1936
        %vm2822 = vcmp.eq.f32.partialorder %v2821, 8.507059e+37
        %v2823 = vand.u32 %v1936, 2147483648
        %v2824 = vor.u32 1.1754944e-38, %v2823
        %v2825 = vsel %vm2822, %v2824, %v2820
        %v2826 = vmul.f32 1.0, %v2825
        %v2827 = vrcp.pop %v1937
        %v2828 = vmul.f32 %v1937, %v2827
        %v2829 = vsub.f32 1.0, %v2828
        %v2830 = vmul.f32 %v2827, %v2829
        %v2831 = vadd.f32 %v2827, %v2830
        %vm2832 = vweird.f32 %v1937
        %vm2833 = vweird.f32 %v2827
        %vm2834 = vmor %vm2832, %vm2833
        %v2835 = vsel %vm2834, %v2827, %v2831
        %v2836 = vand.u32 2147483647, %v1937
        %vm2837 = vcmp.eq.f32.partialorder %v2836, 8.507059e+37
        %v2838 = vand.u32 %v1937, 2147483648
        %v2839 = vor.u32 1.1754944e-38, %v2838
        %v2840 = vsel %vm2837, %v2839, %v2835
        %v2841 = vmul.f32 1.0, %v2840
        %v2842 = vrcp.pop %v1938
        %v2843 = vmul.f32 %v1938, %v2842
        %v2844 = vsub.f32 1.0, %v2843
        %v2845 = vmul.f32 %v2842, %v2844
        %v2846 = vadd.f32 %v2842, %v2845
        %vm2847 = vweird.f32 %v1938
        %vm2848 = vweird.f32 %v2842
        %vm2849 = vmor %vm2847, %vm2848
        %v2850 = vsel %vm2849, %v2842, %v2846
        %v2851 = vand.u32 2147483647, %v1938
        %vm2852 = vcmp.eq.f32.partialorder %v2851, 8.507059e+37
        %v2853 = vand.u32 %v1938, 2147483648
        %v2854 = vor.u32 1.1754944e-38, %v2853
        %v2855 = vsel %vm2852, %v2854, %v2850
        %v2856 = vmul.f32 1.0, %v2855
        %v2857 = vrcp.pop %v1939
        %v2858 = vmul.f32 %v1939, %v2857
        %v2859 = vsub.f32 1.0, %v2858
        %v2860 = vmul.f32 %v2857, %v2859
        %v2861 = vadd.f32 %v2857, %v2860
        %vm2862 = vweird.f32 %v1939
        %vm2863 = vweird.f32 %v2857
        %vm2864 = vmor %vm2862, %vm2863
        %v2865 = vsel %vm2864, %v2857, %v2861
        %v2866 = vand.u32 2147483647, %v1939
        %vm2867 = vcmp.eq.f32.partialorder %v2866, 8.507059e+37
        %v2868 = vand.u32 %v1939, 2147483648
        %v2869 = vor.u32 1.1754944e-38, %v2868
        %v2870 = vsel %vm2867, %v2869, %v2865
        %v2871 = vmul.f32 1.0, %v2870
        %v2872 = vrcp.pop %v1940
        %v2873 = vmul.f32 %v1940, %v2872
        %v2874 = vsub.f32 1.0, %v2873
        %v2875 = vmul.f32 %v2872, %v2874
        %v2876 = vadd.f32 %v2872, %v2875
        %vm2877 = vweird.f32 %v1940
        %vm2878 = vweird.f32 %v2872
        %vm2879 = vmor %vm2877, %vm2878
        %v2880 = vsel %vm2879, %v2872, %v2876
        %v2881 = vand.u32 2147483647, %v1940
        %vm2882 = vcmp.eq.f32.partialorder %v2881, 8.507059e+37
        %v2883 = vand.u32 %v1940, 2147483648
        %v2884 = vor.u32 1.1754944e-38, %v2883
        %v2885 = vsel %vm2882, %v2884, %v2880
        %v2886 = vmul.f32 1.0, %v2885
        %v2887 = vrcp.pop %v1941
        %v2888 = vmul.f32 %v1941, %v2887
        %v2889 = vsub.f32 1.0, %v2888
        %v2890 = vmul.f32 %v2887, %v2889
        %v2891 = vadd.f32 %v2887, %v2890
        %vm2892 = vweird.f32 %v1941
        %vm2893 = vweird.f32 %v2887
        %vm2894 = vmor %vm2892, %vm2893
        %v2895 = vsel %vm2894, %v2887, %v2891
        %v2896 = vand.u32 2147483647, %v1941
        %vm2897 = vcmp.eq.f32.partialorder %v2896, 8.507059e+37
        %v2898 = vand.u32 %v1941, 2147483648
        %v2899 = vor.u32 1.1754944e-38, %v2898
        %v2900 = vsel %vm2897, %v2899, %v2895
        %v2901 = vmul.f32 1.0, %v2900
        %v2902 = vmul.f32 %v1622, %v1956
        %v2903 = vmul.f32 %v1623, %v1971
        %v2904 = vmul.f32 %v1624, %v1986
        %v2905 = vmul.f32 %v1625, %v2001
        %v2906 = vmul.f32 %v1626, %v2016
        %v2907 = vmul.f32 %v1627, %v2031
        %v2908 = vmul.f32 %v1628, %v2046
        %v2909 = vmul.f32 %v1629, %v2061
        %v2910 = vmul.f32 %v1630, %v2076
        %v2911 = vmul.f32 %v1631, %v2091
        %v2912 = vmul.f32 %v1632, %v2106
        %v2913 = vmul.f32 %v1633, %v2121
        %v2914 = vmul.f32 %v1634, %v2136
        %v2915 = vmul.f32 %v1635, %v2151
        %v2916 = vmul.f32 %v1636, %v2166
        %v2917 = vmul.f32 %v1637, %v2181
        %v2918 = vmul.f32 %v1638, %v2196
        %v2919 = vmul.f32 %v1639, %v2211
        %v2920 = vmul.f32 %v1640, %v2226
        %v2921 = vmul.f32 %v1641, %v2241
        %v2922 = vmul.f32 %v1642, %v2256
        %v2923 = vmul.f32 %v1643, %v2271
        %v2924 = vmul.f32 %v1644, %v2286
        %v2925 = vmul.f32 %v1645, %v2301
        %v2926 = vmul.f32 %v1646, %v2316
        %v2927 = vmul.f32 %v1647, %v2331
        %v2928 = vmul.f32 %v1648, %v2346
        %v2929 = vmul.f32 %v1649, %v2361
        %v2930 = vmul.f32 %v1650, %v2376
        %v2931 = vmul.f32 %v1651, %v2391
        %v2932 = vmul.f32 %v1652, %v2406
        %v2933 = vmul.f32 %v1653, %v2421
        %v2934 = vmul.f32 %v1654, %v2436
        %v2935 = vmul.f32 %v1655, %v2451
        %v2936 = vmul.f32 %v1656, %v2466
        %v2937 = vmul.f32 %v1657, %v2481
        %v2938 = vmul.f32 %v1658, %v2496
        %v2939 = vmul.f32 %v1659, %v2511
        %v2940 = vmul.f32 %v1660, %v2526
        %v2941 = vmul.f32 %v1661, %v2541
        %v2942 = vmul.f32 %v1662, %v2556
        %v2943 = vmul.f32 %v1663, %v2571
        %v2944 = vmul.f32 %v1664, %v2586
        %v2945 = vmul.f32 %v1665, %v2601
        %v2946 = vmul.f32 %v1666, %v2616
        %v2947 = vmul.f32 %v1667, %v2631
        %v2948 = vmul.f32 %v1668, %v2646
        %v2949 = vmul.f32 %v1669, %v2661
        %v2950 = vmul.f32 %v1670, %v2676
        %v2951 = vmul.f32 %v1671, %v2691
        %v2952 = vmul.f32 %v1672, %v2706
        %v2953 = vmul.f32 %v1673, %v2721
        %v2954 = vmul.f32 %v1674, %v2736
        %v2955 = vmul.f32 %v1675, %v2751
        %v2956 = vmul.f32 %v1676, %v2766
        %v2957 = vmul.f32 %v1677, %v2781
        %v2958 = vmul.f32 %v1678, %v2796
        %v2959 = vmul.f32 %v1679, %v2811
        %v2960 = vmul.f32 %v1680, %v2826
        %v2961 = vmul.f32 %v1681, %v2841
        %v2962 = vmul.f32 %v1682, %v2856
        %v2963 = vmul.f32 %v1683, %v2871
        %v2964 = vmul.f32 %v1684, %v2886
        %v2965 = vmul.f32 %v1685, %v2901
        %2966 = vst [vmem:[%s218] sm:$0xff] %v2902
        %2967 = vst [vmem:[%s218 + $0x8] sm:$0xff] %v2903
        %2968 = vst [vmem:[%s218 + $0x10] sm:$0xff] %v2904
        %2969 = vst [vmem:[%s218 + $0x18] sm:$0xff] %v2905
        %2970 = vst [vmem:[%s218 + $0x20] sm:$0xff] %v2906
        %2971 = vst [vmem:[%s218 + $0x28] sm:$0xff] %v2907
        %2972 = vst [vmem:[%s218 + $0x30] sm:$0xff] %v2908
        %2973 = vst [vmem:[%s218 + $0x38] sm:$0xff] %v2909
        %2974 = vst [vmem:[%s218 + $0x40] sm:$0xff] %v2910
        %2975 = vst [vmem:[%s218 + $0x48] sm:$0xff] %v2911
        %2976 = vst [vmem:[%s218 + $0x50] sm:$0xff] %v2912
        %2977 = vst [vmem:[%s218 + $0x58] sm:$0xff] %v2913
        %2978 = vst [vmem:[%s218 + $0x60] sm:$0xff] %v2914
        %2979 = vst [vmem:[%s218 + $0x68] sm:$0xff] %v2915
        %2980 = vst [vmem:[%s218 + $0x70] sm:$0xff] %v2916
        %2981 = vst [vmem:[%s218 + $0x78] sm:$0xff] %v2917
        %2982 = vst [vmem:[%s218 + $0x80] sm:$0xff] %v2918
        %2983 = vst [vmem:[%s218 + $0x88] sm:$0xff] %v2919
        %2984 = vst [vmem:[%s218 + $0x90] sm:$0xff] %v2920
        %2985 = vst [vmem:[%s218 + $0x98] sm:$0xff] %v2921
        %2986 = vst [vmem:[%s218 + $0xa0] sm:$0xff] %v2922
        %2987 = vst [vmem:[%s218 + $0xa8] sm:$0xff] %v2923
        %2988 = vst [vmem:[%s218 + $0xb0] sm:$0xff] %v2924
        %2989 = vst [vmem:[%s218 + $0xb8] sm:$0xff] %v2925
        %2990 = vst [vmem:[%s218 + $0xc0] sm:$0xff] %v2926
        %2991 = vst [vmem:[%s218 + $0xc8] sm:$0xff] %v2927
        %2992 = vst [vmem:[%s218 + $0xd0] sm:$0xff] %v2928
        %2993 = vst [vmem:[%s218 + $0xd8] sm:$0xff] %v2929
        %2994 = vst [vmem:[%s218 + $0xe0] sm:$0xff] %v2930
        %2995 = vst [vmem:[%s218 + $0xe8] sm:$0xff] %v2931
        %2996 = vst [vmem:[%s218 + $0xf0] sm:$0xff] %v2932
        %2997 = vst [vmem:[%s218 + $0xf8] sm:$0xff] %v2933
        %2998 = vst [vmem:[%s218 + $0x100] sm:$0xff] %v2934
        %2999 = vst [vmem:[%s218 + $0x108] sm:$0xff] %v2935
        %3000 = vst [vmem:[%s218 + $0x110] sm:$0xff] %v2936
        %3001 = vst [vmem:[%s218 + $0x118] sm:$0xff] %v2937
        %3002 = vst [vmem:[%s218 + $0x120] sm:$0xff] %v2938
        %3003 = vst [vmem:[%s218 + $0x128] sm:$0xff] %v2939
        %3004 = vst [vmem:[%s218 + $0x130] sm:$0xff] %v2940
        %3005 = vst [vmem:[%s218 + $0x138] sm:$0xff] %v2941
        %3006 = vst [vmem:[%s218 + $0x140] sm:$0xff] %v2942
        %3007 = vst [vmem:[%s218 + $0x148] sm:$0xff] %v2943
        %3008 = vst [vmem:[%s218 + $0x150] sm:$0xff] %v2944
        %3009 = vst [vmem:[%s218 + $0x158] sm:$0xff] %v2945
        %3010 = vst [vmem:[%s218 + $0x160] sm:$0xff] %v2946
        %3011 = vst [vmem:[%s218 + $0x168] sm:$0xff] %v2947
        %3012 = vst [vmem:[%s218 + $0x170] sm:$0xff] %v2948
        %3013 = vst [vmem:[%s218 + $0x178] sm:$0xff] %v2949
        %3014 = vst [vmem:[%s218 + $0x180] sm:$0xff] %v2950
        %3015 = vst [vmem:[%s218 + $0x188] sm:$0xff] %v2951
        %3016 = vst [vmem:[%s218 + $0x190] sm:$0xff] %v2952
        %3017 = vst [vmem:[%s218 + $0x198] sm:$0xff] %v2953
        %3018 = vst [vmem:[%s218 + $0x1a0] sm:$0xff] %v2954
        %3019 = vst [vmem:[%s218 + $0x1a8] sm:$0xff] %v2955
        %3020 = vst [vmem:[%s218 + $0x1b0] sm:$0xff] %v2956
        %3021 = vst [vmem:[%s218 + $0x1b8] sm:$0xff] %v2957
        %3022 = vst [vmem:[%s218 + $0x1c0] sm:$0xff] %v2958
        %3023 = vst [vmem:[%s218 + $0x1c8] sm:$0xff] %v2959
        %3024 = vst [vmem:[%s218 + $0x1d0] sm:$0xff] %v2960
        %3025 = vst [vmem:[%s218 + $0x1d8] sm:$0xff] %v2961
        %3026 = vst [vmem:[%s218 + $0x1e0] sm:$0xff] %v2962
        %3027 = vst [vmem:[%s218 + $0x1e8] sm:$0xff] %v2963
        %3028 = vst [vmem:[%s218 + $0x1f0] sm:$0xff] %v2964
        %3029 = vst [vmem:[%s218 + $0x1f8] sm:$0xff] %v2965
        %s3030 = sand.u32 %s137, 1
        %s3031 = scalar_lea.sflag [#allocation3], %s3030
        %s3032 = sand.u32 %s137, 1
        %s3033 = smul.addr %s3032, 512
        %s3034 = scalar_lea.vmem [#allocation2], %s3033
        // Predicated region
        $region41: #{tpu_custom_call.1} parent=39 // pred_check
          %p3035 = pneg %p147
        $region42: #{tpu_custom_call.1} parent=39 // pred_check_branch
          %3037 = sbr.rel (%p3035) target = $region44
        $region43: #{tpu_custom_call.1} parent=39 // pred_region
          %s3038 = smul.u32 32, %s19
          %3040 = vsyncadd %s3031, 0
          %s3041 = smul.addr %s3038, 2
          %s3042 = smul.addr %s3041, 8
          %s3043 = scalar_lea.hbm %s5, %s3042
          %s3044 = sshll.u32 %s3034, 4
          %s3045 = int_to_ptr.vmem [resolvable:$true] %s3044
          %s3046 = sshll.u32 %s3043, 4
          %s3047 = int_to_ptr.hbm [resolvable:$true] %s3046
          %3052 = dma.vmem_to_hbm [thread:$0]  %s3045, 8192, %s3047, %s3031, 256, 256, 16
        $region44: #{tpu_custom_call.1} parent=39 // pred_fallthru
          _
      $region40: #{tpu_custom_call.1} parent=5 // pred_fallthru
        _
      %p3053 = scmp.le.s32.totalorder 2, %s14
      // Predicated region
      $region45: #{tpu_custom_call.1} parent=5 // pred_check
        %p3054 = pneg %p3053
      $region46: #{tpu_custom_call.1} parent=5 // pred_check_branch
        %3056 = sbr.rel (%p3054) target = $region48
      $region47: #{tpu_custom_call.1} parent=5 // pred_region
        %s3057 = ssub.s32 %s14, 2
        // Predicated region
        $region49: #{tpu_custom_call.1} parent=47 // pred_check
          %p3058 = pneg %p153
        $region50: #{tpu_custom_call.1} parent=47 // pred_check_branch
          %3060 = sbr.rel (%p3058) target = $region52
        $region51: #{tpu_custom_call.1} parent=47 // pred_region
          %s3061 = sand.u32 %s138, 1
          %s3062 = scalar_lea.sflag [#allocation3], %s3061
          %s3063 = sand.u32 %s138, 1
          %s3064 = smul.addr %s3063, 512
          %s3065 = scalar_lea.vmem [#allocation2], %s3064
          %3067 = dma.done %s3062, 8192
        $region52: #{tpu_custom_call.1} parent=47 // pred_fallthru
          _
      $region48: #{tpu_custom_call.1} parent=5 // pred_fallthru
        _
    $region6: #{tpu_custom_call.1} parent=1 // loop_footer
      %s18 = sadd.s32 1, %s14
    $region7: #{tpu_custom_call.1} parent=1 // loop_footer_branch
      %13 = sbr.rel target = $region3
    $region8: #{tpu_custom_call.1} parent=1 // loop_exit
      _
    %3068 = vsyncpa [#allocation3], 1
    %s3069 = scalar_lea.sflag [#allocation3], 1
    %3070 = vsyncpa %s3069, 1

// kernel: tpu_custom_call.1
$region0: #{tpu_custom_call.1}
  #allocation0 [shape = 'u32[]', space=smem, size = 0x4, offset = 0x4, fixed_abs, tag = 'smem constant byte address 0x4 - core index']
  #allocation1 [shape = 'u32[72,128]{1,0:T(1,128)}', space=vmem, size = 0x9000, scoped, tag = 'internal scratch']
  %s0 = inlined_call_operand.vmem [shape: f32[768,92], index: 0, kind: input, shape index: {}]
  %s1 = inlined_call_operand.vmem [shape: f32[92,256], index: 1, kind: input, shape index: {}]
  %s2 = inlined_call_operand.vmem [shape: f32[1,256], index: 2, kind: input, shape index: {}]
  %s3 = inlined_call_operand.vmem [shape: f32[1,256], index: 3, kind: input, shape index: {}]
  %s4 = inlined_call_operand.vmem [shape: f32[1,256], index: 4, kind: input, shape index: {}]
  %s5 = inlined_call_operand.hbm [shape: f32[768,256], index: 5, kind: output, shape index: {}]
  %s6 = sld [smem:[#allocation0]]
  $region53: #{tpu_custom_call.1} parent=0
    _
  %s8 = ssub.s32 1, %s6
  %s9 = scalar_select 0, %s8, %s6
  $region1: #{tpu_custom_call.1} parent=0
    #allocation2 [shape = 'u8[524288]{0}', space=vmem, size = 0x80000, scoped, tag = 'output window, operand 0']
    #allocation3 [shape = 's32[2]{0}', space=sflag, size = 0x8, scoped, tag = 'scoped memory for tpu_custom_call.1']
    %10 = vsyncpa [#allocation3], 0
    %s11 = scalar_lea.sflag [#allocation3], 1
    %12 = vsyncpa %s11, 0
    loop: start=0, step=1, limit=5
    $region2: #{tpu_custom_call.1} parent=1 // loop_pre_header
      _
    $region3: #{tpu_custom_call.1} parent=1 // loop_header
      %s14 = sphi 0, %s18
      %p15 = scmp.ge.s32.totalorder %s14, 5
      %s24 = sphi 0, %s26
      %s27 = sphi 0, %s24
      %s28 = sphi 0, %s27
      %s44 = sphi 0, %s28
      %s48 = sphi 0, %s48
      %s50 = sphi 0, %s48
      %s51 = sphi 0, %s50
      %s65 = sphi 0, %s51
      %s69 = sphi 0, %s69
      %s71 = sphi 0, %s69
      %s72 = sphi 0, %s71
      %s86 = sphi 0, %s72
      %s90 = sphi 0, %s90
      %s92 = sphi 0, %s90
      %s93 = sphi 0, %s92
      %s107 = sphi 0, %s93
      %s111 = sphi 0, %s111
      %s113 = sphi 0, %s111
      %s114 = sphi 0, %s113
      %s128 = sphi 0, %s114
      %s134 = sphi 0, %s136
      %s137 = sphi 0, %s134
      %s138 = sphi 0, %s137
      %s154 = sphi 0, %s138
    $region4: #{tpu_custom_call.1} parent=1 // loop_header_branch
      %17 = sbr.rel (%p15) target = $region8
    $region5: #{tpu_custom_call.1} parent=1 // loop_body
      %s19 = ssub.s32 %s14, 1
      %s20 = ssub.s32 %s14, 2
      %s21 = sadd.s32 %s14, 1
      %s22 = ssub.s32 %s14, %s21
      %p23 = scmp.eq.s32.totalorder %s22, 0
      %s25 = sadd.s32 %s24, 1
      %s26 = scalar_select %p23, %s24, %s25
      %p29 = pneg %p23
      %p30 = scmp.eq.s32.totalorder %s14, 2
      %p31 = por %p29, %p30
      %p32 = scmp.ne.s32.totalorder %s24, %s27
      %p33 = scmp.eq.s32.totalorder %s14, 0
      %p34 = por %p32, %p33
      %p35 = scmp.ne.s32.totalorder %s24, %s27
      %p36 = scmp.eq.s32.totalorder %s19, 2
      %p37 = por %p35, %p36
      %p38 = scmp.ne.s32.totalorder %s27, %s28
      %p39 = scmp.eq.s32.totalorder %s19, 0
      %p40 = por %p38, %p39
      %p41 = scmp.ne.s32.totalorder %s27, %s28
      %p42 = scmp.eq.s32.totalorder %s20, 2
      %p43 = por %p41, %p42
      %p45 = scmp.ne.s32.totalorder %s28, %s44
      %p46 = scmp.eq.s32.totalorder %s20, 0
      %p47 = por %p45, %p46
      %s49 = sadd.s32 %s48, 1
      %p52 = scmp.eq.s32.totalorder %s14, 2
      %p53 = scmp.ne.s32.totalorder %s48, %s50
      %p54 = scmp.eq.s32.totalorder %s14, 0
      %p55 = por %p53, %p54
      %p56 = scmp.ne.s32.totalorder %s48, %s50
      %p57 = scmp.eq.s32.totalorder %s19, 2
      %p58 = por %p56, %p57
      %p59 = scmp.ne.s32.totalorder %s50, %s51
      %p60 = scmp.eq.s32.totalorder %s19, 0
      %p61 = por %p59, %p60
      %p62 = scmp.ne.s32.totalorder %s50, %s51
      %p63 = scmp.eq.s32.totalorder %s20, 2
      %p64 = por %p62, %p63
      %p66 = scmp.ne.s32.totalorder %s51, %s65
      %p67 = scmp.eq.s32.totalorder %s20, 0
      %p68 = por %p66, %p67
      %s70 = sadd.s32 %s69, 1
      %p73 = scmp.eq.s32.totalorder %s14, 2
      %p74 = scmp.ne.s32.totalorder %s69, %s71
      %p75 = scmp.eq.s32.totalorder %s14, 0
      %p76 = por %p74, %p75
      %p77 = scmp.ne.s32.totalorder %s69, %s71
      %p78 = scmp.eq.s32.totalorder %s19, 2
      %p79 = por %p77, %p78
      %p80 = scmp.ne.s32.totalorder %s71, %s72
      %p81 = scmp.eq.s32.totalorder %s19, 0
      %p82 = por %p80, %p81
      %p83 = scmp.ne.s32.totalorder %s71, %s72
      %p84 = scmp.eq.s32.totalorder %s20, 2
      %p85 = por %p83, %p84
      %p87 = scmp.ne.s32.totalorder %s72, %s86
      %p88 = scmp.eq.s32.totalorder %s20, 0
      %p89 = por %p87, %p88
      %s91 = sadd.s32 %s90, 1
      %p94 = scmp.eq.s32.totalorder %s14, 2
      %p95 = scmp.ne.s32.totalorder %s90, %s92
      %p96 = scmp.eq.s32.totalorder %s14, 0
      %p97 = por %p95, %p96
      %p98 = scmp.ne.s32.totalorder %s90, %s92
      %p99 = scmp.eq.s32.totalorder %s19, 2
      %p100 = por %p98, %p99
      %p101 = scmp.ne.s32.totalorder %s92, %s93
      %p102 = scmp.eq.s32.totalorder %s19, 0
      %p103 = por %p101, %p102
      %p104 = scmp.ne.s32.totalorder %s92, %s93
      %p105 = scmp.eq.s32.totalorder %s20, 2
      %p106 = por %p104, %p105
      %p108 = scmp.ne.s32.totalorder %s93, %s107
      %p109 = scmp.eq.s32.totalorder %s20, 0
      %p110 = por %p108, %p109
      %s112 = sadd.s32 %s111, 1
      %p115 = scmp.eq.s32.totalorder %s14, 2
      %p116 = scmp.ne.s32.totalorder %s111, %s113
      %p117 = scmp.eq.s32.totalorder %s14, 0
      %p118 = por %p116, %p117
      %p119 = scmp.ne.s32.totalorder %s111, %s113
      %p120 = scmp.eq.s32.totalorder %s19, 2
      %p121 = por %p119, %p120
      %p122 = scmp.ne.s32.totalorder %s113, %s114
      %p123 = scmp.eq.s32.totalorder %s19, 0
      %p124 = por %p122, %p123
      %p125 = scmp.ne.s32.totalorder %s113, %s114
      %p126 = scmp.eq.s32.totalorder %s20, 2
      %p127 = por %p125, %p126
      %p129 = scmp.ne.s32.totalorder %s114, %s128
      %p130 = scmp.eq.s32.totalorder %s20, 0
      %p131 = por %p129, %p130
      %s132 = ssub.s32 %s14, %s21
      %p133 = scmp.eq.s32.totalorder %s132, 0
      %s135 = sadd.s32 %s134, 1
      %s136 = scalar_select %p133, %s134, %s135
      %p139 = pneg %p133
      %p140 = scmp.eq.s32.totalorder %s14, 2
      %p141 = por %p139, %p140
      %p142 = scmp.ne.s32.totalorder %s134, %s137
      %p143 = scmp.eq.s32.totalorder %s14, 0
      %p144 = por %p142, %p143
      %p145 = scmp.ne.s32.totalorder %s134, %s137
      %p146 = scmp.eq.s32.totalorder %s19, 2
      %p147 = por %p145, %p146
      %p148 = scmp.ne.s32.totalorder %s137, %s138
      %p149 = scmp.eq.s32.totalorder %s19, 0
      %p150 = por %p148, %p149
      %p151 = scmp.ne.s32.totalorder %s137, %s138
      %p152 = scmp.eq.s32.totalorder %s20, 2
      %p153 = por %p151, %p152
      %p155 = scmp.ne.s32.totalorder %s138, %s154
      %p156 = scmp.eq.s32.totalorder %s20, 0
      %p157 = por %p155, %p156
      %p158 = scmp.le.s32.totalorder 1, %s14
      %p159 = scmp.lt.s32.totalorder %s14, 4
      %p160 = pnand %p158, %p159
      %p161 = pneg %p160
      // Predicated region
      $region9: #{tpu_custom_call.1} parent=5 // pred_check
        _
      $region10: #{tpu_custom_call.1} parent=5 // pred_check_branch
        %163 = sbr.rel (%p160) target = $region12
      $region11: #{tpu_custom_call.1} parent=5 // pred_region
        %s164 = ssub.s32 %s14, 1
        // Predicated region
        $region13: #{tpu_custom_call.1} parent=11 // pred_check
          %p165 = pneg %p61
        $region14: #{tpu_custom_call.1} parent=11 // pred_check_branch
          %167 = sbr.rel (%p165) target = $region16
        $region15: #{tpu_custom_call.1} parent=11 // pred_region
          _
        $region16: #{tpu_custom_call.1} parent=11 // pred_fallthru
          _
        // Predicated region
        $region17: #{tpu_custom_call.1} parent=11 // pred_check
          %p168 = pneg %p82
        $region18: #{tpu_custom_call.1} parent=11 // pred_check_branch
          %170 = sbr.rel (%p168) target = $region20
        $region19: #{tpu_custom_call.1} parent=11 // pred_region
          _
        $region20: #{tpu_custom_call.1} parent=11 // pred_fallthru
          _
        // Predicated region
        $region21: #{tpu_custom_call.1} parent=11 // pred_check
          %p171 = pneg %p103
        $region22: #{tpu_custom_call.1} parent=11 // pred_check_branch
          %173 = sbr.rel (%p171) target = $region24
        $region23: #{tpu_custom_call.1} parent=11 // pred_region
          _
        $region24: #{tpu_custom_call.1} parent=11 // pred_fallthru
          _
        // Predicated region
        $region25: #{tpu_custom_call.1} parent=11 // pred_check
          %p174 = pneg %p124
        $region26: #{tpu_custom_call.1} parent=11 // pred_check_branch
          %176 = sbr.rel (%p174) target = $region28
        $region27: #{tpu_custom_call.1} parent=11 // pred_region
          _
        $region28: #{tpu_custom_call.1} parent=11 // pred_fallthru
          _
      $region12: #{tpu_custom_call.1} parent=5 // pred_fallthru
        _
      %p177 = scmp.lt.s32.totalorder %s14, 3
      // Predicated region
      $region29: #{tpu_custom_call.1} parent=5 // pred_check
        %p178 = pneg %p177
      $region30: #{tpu_custom_call.1} parent=5 // pred_check_branch
        %180 = sbr.rel (%p178) target = $region32
      $region31: #{tpu_custom_call.1} parent=5 // pred_region
        // Predicated region
        $region33: #{tpu_custom_call.1} parent=31 // pred_check
          %p181 = pneg %p34
        $region34: #{tpu_custom_call.1} parent=31 // pred_check_branch
          %183 = sbr.rel (%p181) target = $region36
        $region35: #{tpu_custom_call.1} parent=31 // pred_region
          %s184 = smul.u32 32, %s14
          %p185 = scmp.lt.s32.totalorder %s184, 95
          %s186 = scalar_select %p185, %s184, 95
          %s187 = smul.addr %s186, 8
          %s188 = scalar_lea.vmem %s0, %s187
          %s189 = smul.u32 32, %s14
        $region36: #{tpu_custom_call.1} parent=31 // pred_fallthru
          _
      $region32: #{tpu_custom_call.1} parent=5 // pred_fallthru
        _
      %p190 = scmp.le.s32.totalorder 1, %s14
      %p191 = scmp.lt.s32.totalorder %s14, 4
      %p192 = pnand %p190, %p191
      %p193 = pneg %p192
      // Predicated region
      $region37: #{tpu_custom_call.1} parent=5 // pred_check
        _
      $region38: #{tpu_custom_call.1} parent=5 // pred_check_branch
        %195 = sbr.rel (%p192) target = $region40
      $region39: #{tpu_custom_call.1} parent=5 // pred_region
        %s196 = ssub.s32 %s14, 1
        %s197 = smul.u32 32, %s19
        %p198 = scmp.lt.s32.totalorder %s197, 95
        %s199 = scalar_select %p198, %s197, 95
        %s200 = smul.addr %s199, 8
        %s201 = scalar_lea.vmem %s0, %s200
        %p202 = pneg %p40
        %p203 = pneg %p37
        %p204 = pneg %p61
        %p205 = pneg %p58
        %p206 = pneg %p82
        %p207 = pneg %p79
        %p208 = pneg %p103
        %p209 = pneg %p100
        %p210 = pneg %p124
        %p211 = pneg %p121
        %p212 = pneg %p150
        %p213 = pneg %p147
        %s214 = sand.u32 %s137, 1
        %s215 = scalar_lea.sflag [#allocation3], %s214
        %s216 = sand.u32 %s137, 1
        %s217 = smul.addr %s216, 512
        %s218 = scalar_lea.vmem [#allocation2], %s217
        %s219 = smul.u32 32, %s19
        %p220 = scmp.lt.s32.totalorder %s219, 95
        %s221 = scalar_select %p220, %s219, 95
        %s222 = smul.addr %s221, 8
        %s223 = scalar_lea.vmem %s0, %s222
        %s224 = smul.u32 32, %s19
        %s225 = smul.u32 32, %s19
        %v226 = vld [vmem:[%s223] sm:$0xff]
        %v227 = vld [vmem:[%s223 + $0x8] sm:$0xff]
        %v228 = vld [vmem:[%s223 + $0x10] sm:$0xff]
        %v229 = vld [vmem:[%s223 + $0x18] sm:$0xff]
        %v230 = vld [vmem:[%s223 + $0x20] sm:$0xff]
        %v231 = vld [vmem:[%s223 + $0x28] sm:$0xff]
        %v232 = vld [vmem:[%s223 + $0x30] sm:$0xff]
        %v233 = vld [vmem:[%s223 + $0x38] sm:$0xff]
        %v234 = vld [vmem:[%s223 + $0x40] sm:$0xff]
        %v235 = vld [vmem:[%s223 + $0x48] sm:$0xff]
        %v236 = vld [vmem:[%s223 + $0x50] sm:$0xff]
        %v237 = vld [vmem:[%s223 + $0x58] sm:$0xff]
        %v238 = vld [vmem:[%s223 + $0x60] sm:$0xff]
        %v239 = vld [vmem:[%s223 + $0x68] sm:$0xff]
        %v240 = vld [vmem:[%s223 + $0x70] sm:$0xff]
        %v241 = vld [vmem:[%s223 + $0x78] sm:$0xff]
        %v242 = vld [vmem:[%s223 + $0x80] sm:$0xff]
        %v243 = vld [vmem:[%s223 + $0x88] sm:$0xff]
        %v244 = vld [vmem:[%s223 + $0x90] sm:$0xff]
        %v245 = vld [vmem:[%s223 + $0x98] sm:$0xff]
        %v246 = vld [vmem:[%s223 + $0xa0] sm:$0xff]
        %v247 = vld [vmem:[%s223 + $0xa8] sm:$0xff]
        %v248 = vld [vmem:[%s223 + $0xb0] sm:$0xff]
        %v249 = vld [vmem:[%s223 + $0xb8] sm:$0xff]
        %v250 = vld [vmem:[%s223 + $0xc0] sm:$0xff]
        %v251 = vld [vmem:[%s223 + $0xc8] sm:$0xff]
        %v252 = vld [vmem:[%s223 + $0xd0] sm:$0xff]
        %v253 = vld [vmem:[%s223 + $0xd8] sm:$0xff]
        %v254 = vld [vmem:[%s223 + $0xe0] sm:$0xff]
        %v255 = vld [vmem:[%s223 + $0xe8] sm:$0xff]
        %v256 = vld [vmem:[%s223 + $0xf0] sm:$0xff]
        %v257 = vld [vmem:[%s223 + $0xf8] sm:$0xff]
        %v258 = vld [vmem:[%s1] sm:$0xff]
        %v259 = vld [vmem:[%s1 + $0x8] sm:$0xff]
        %v260 = vld [vmem:[%s1 + $0x10] sm:$0xff]
        %v261 = vld [vmem:[%s1 + $0x18] sm:$0xff]
        %v262 = vld [vmem:[%s1 + $0x20] sm:$0xff]
        %v263 = vld [vmem:[%s1 + $0x28] sm:$0xff]
        %v264 = vld [vmem:[%s1 + $0x30] sm:$0xff]
        %v265 = vld [vmem:[%s1 + $0x38] sm:$0xff]
        %v266 = vld [vmem:[%s1 + $0x40] sm:$0xff]
        %v267 = vld [vmem:[%s1 + $0x48] sm:$0xff]
        %v268 = vld [vmem:[%s1 + $0x50] sm:$0xff]
        %v269 = vld [vmem:[%s1 + $0x58] sm:$0xff]
        %v270 = vld [vmem:[%s1 + $0x60] sm:$0xff]
        %v271 = vld [vmem:[%s1 + $0x68] sm:$0xff]
        %v272 = vld [vmem:[%s1 + $0x70] sm:$0xff]
        %v273 = vld [vmem:[%s1 + $0x78] sm:$0xff]
        %v274 = vld [vmem:[%s1 + $0x80] sm:$0xff]
        %v275 = vld [vmem:[%s1 + $0x88] sm:$0xff]
        %v276 = vld [vmem:[%s1 + $0x90] sm:$0xff]
        %v277 = vld [vmem:[%s1 + $0x98] sm:$0xff]
        %v278 = vld [vmem:[%s1 + $0xa0] sm:$0xff]
        %v279 = vld [vmem:[%s1 + $0xa8] sm:$0xff]
        %v280 = vld [vmem:[%s1 + $0xb0] sm:$0xf]
        %v281 = vld [vmem:[%s1 + $0xb8] sm:$0xf]
        %v282 = vld [vmem:[%s2] sm:$0x3]
        %v284 = vperm.slane %v282, 0
        %v285 = vperm.slane %v282, 1
        %vm288 = vcmask 752640
        %v290 = vsel %vm288, %v226, 0
        %v293 = vsel %vm288, %v227, 0
        %v296 = vsel %vm288, %v228, 0
        %v299 = vsel %vm288, %v229, 0
        %v302 = vsel %vm288, %v230, 0
        %v305 = vsel %vm288, %v231, 0
        %v308 = vsel %vm288, %v232, 0
        %v311 = vsel %vm288, %v233, 0
        %v314 = vsel %vm288, %v234, 0
        %v317 = vsel %vm288, %v235, 0
        %v320 = vsel %vm288, %v236, 0
        %v323 = vsel %vm288, %v237, 0
        %v326 = vsel %vm288, %v238, 0
        %v329 = vsel %vm288, %v239, 0
        %v332 = vsel %vm288, %v240, 0
        %v335 = vsel %vm288, %v241, 0
        %v338 = vsel %vm288, %v242, 0
        %v341 = vsel %vm288, %v243, 0
        %v344 = vsel %vm288, %v244, 0
        %v347 = vsel %vm288, %v245, 0
        %v350 = vsel %vm288, %v246, 0
        %v353 = vsel %vm288, %v247, 0
        %v356 = vsel %vm288, %v248, 0
        %v359 = vsel %vm288, %v249, 0
        %v362 = vsel %vm288, %v250, 0
        %v365 = vsel %vm288, %v251, 0
        %v368 = vsel %vm288, %v252, 0
        %v371 = vsel %vm288, %v253, 0
        %v374 = vsel %vm288, %v254, 0
        %v377 = vsel %vm288, %v255, 0
        %v380 = vsel %vm288, %v256, 0
        %v383 = vsel %vm288, %v257, 0
        %vm385 = vcmask 1043456
        %v387 = vsel %vm385, %v280, 0
        %v390 = vsel %vm385, %v281, 0
        %392 = vmatpush.msra.mxu0 0.0
        %393 = vmatpush.msra.mxu0 0.0
        %394 = vmatpush.msra.mxu0 0.0
        %395 = vmatpush.msra.mxu0 0.0
        %396 = vmatpush.msra.mxu0 %v387
        %397 = vmatpush.msra.mxu0 %v278
        %398 = vmatpush.msra.mxu0 %v276
        %399 = vmatpush.msra.mxu0 %v274
        %400 = vmatpush.msra.mxu0 %v272
        %401 = vmatpush.msra.mxu0 %v270
        %402 = vmatpush.msra.mxu0 %v268
        %403 = vmatpush.msra.mxu0 %v266
        %404 = vmatpush.msra.mxu0 %v264
        %405 = vmatpush.msra.mxu0 %v262
        %406 = vmatpush.msra.mxu0 %v260
        %407 = vmatpush.msra.mxu0 %v258
        %408 = vmatmul.f32.gmra.mxu0 %v290
        %v409 = vpop.f32.mrf.mxu0
        %v410 = vadd.f32 %v284, %v409
        %411 = vmatmul.f32.gmra.mxu0 %v293
        %v412 = vpop.f32.mrf.mxu0
        %v413 = vadd.f32 %v284, %v412
        %414 = vmatmul.f32.gmra.mxu0 %v296
        %v415 = vpop.f32.mrf.mxu0
        %v416 = vadd.f32 %v284, %v415
        %417 = vmatmul.f32.gmra.mxu0 %v299
        %v418 = vpop.f32.mrf.mxu0
        %v419 = vadd.f32 %v284, %v418
        %420 = vmatmul.f32.gmra.mxu0 %v302
        %v421 = vpop.f32.mrf.mxu0
        %v422 = vadd.f32 %v284, %v421
        %423 = vmatmul.f32.gmra.mxu0 %v305
        %v424 = vpop.f32.mrf.mxu0
        %v425 = vadd.f32 %v284, %v424
        %426 = vmatmul.f32.gmra.mxu0 %v308
        %v427 = vpop.f32.mrf.mxu0
        %v428 = vadd.f32 %v284, %v427
        %429 = vmatmul.f32.gmra.mxu0 %v311
        %v430 = vpop.f32.mrf.mxu0
        %v431 = vadd.f32 %v284, %v430
        %432 = vmatmul.f32.gmra.mxu0 %v314
        %v433 = vpop.f32.mrf.mxu0
        %v434 = vadd.f32 %v284, %v433
        %435 = vmatmul.f32.gmra.mxu0 %v317
        %v436 = vpop.f32.mrf.mxu0
        %v437 = vadd.f32 %v284, %v436
        %438 = vmatmul.f32.gmra.mxu0 %v320
        %v439 = vpop.f32.mrf.mxu0
        %v440 = vadd.f32 %v284, %v439
        %441 = vmatmul.f32.gmra.mxu0 %v323
        %v442 = vpop.f32.mrf.mxu0
        %v443 = vadd.f32 %v284, %v442
        %444 = vmatmul.f32.gmra.mxu0 %v326
        %v445 = vpop.f32.mrf.mxu0
        %v446 = vadd.f32 %v284, %v445
        %447 = vmatmul.f32.gmra.mxu0 %v329
        %v448 = vpop.f32.mrf.mxu0
        %v449 = vadd.f32 %v284, %v448
        %450 = vmatmul.f32.gmra.mxu0 %v332
        %v451 = vpop.f32.mrf.mxu0
        %v452 = vadd.f32 %v284, %v451
        %453 = vmatmul.f32.gmra.mxu0 %v335
        %v454 = vpop.f32.mrf.mxu0
        %v455 = vadd.f32 %v284, %v454
        %456 = vmatmul.f32.gmra.mxu0 %v338
        %v457 = vpop.f32.mrf.mxu0
        %v458 = vadd.f32 %v284, %v457
        %459 = vmatmul.f32.gmra.mxu0 %v341
        %v460 = vpop.f32.mrf.mxu0
        %v461 = vadd.f32 %v284, %v460
        %462 = vmatmul.f32.gmra.mxu0 %v344
        %v463 = vpop.f32.mrf.mxu0
        %v464 = vadd.f32 %v284, %v463
        %465 = vmatmul.f32.gmra.mxu0 %v347
        %v466 = vpop.f32.mrf.mxu0
        %v467 = vadd.f32 %v284, %v466
        %468 = vmatmul.f32.gmra.mxu0 %v350
        %v469 = vpop.f32.mrf.mxu0
        %v470 = vadd.f32 %v284, %v469
        %471 = vmatmul.f32.gmra.mxu0 %v353
        %v472 = vpop.f32.mrf.mxu0
        %v473 = vadd.f32 %v284, %v472
        %474 = vmatmul.f32.gmra.mxu0 %v356
        %v475 = vpop.f32.mrf.mxu0
        %v476 = vadd.f32 %v284, %v475
        %477 = vmatmul.f32.gmra.mxu0 %v359
        %v478 = vpop.f32.mrf.mxu0
        %v479 = vadd.f32 %v284, %v478
        %480 = vmatmul.f32.gmra.mxu0 %v362
        %v481 = vpop.f32.mrf.mxu0
        %v482 = vadd.f32 %v284, %v481
        %483 = vmatmul.f32.gmra.mxu0 %v365
        %v484 = vpop.f32.mrf.mxu0
        %v485 = vadd.f32 %v284, %v484
        %486 = vmatmul.f32.gmra.mxu0 %v368
        %v487 = vpop.f32.mrf.mxu0
        %v488 = vadd.f32 %v284, %v487
        %489 = vmatmul.f32.gmra.mxu0 %v371
        %v490 = vpop.f32.mrf.mxu0
        %v491 = vadd.f32 %v284, %v490
        %492 = vmatmul.f32.gmra.mxu0 %v374
        %v493 = vpop.f32.mrf.mxu0
        %v494 = vadd.f32 %v284, %v493
        %495 = vmatmul.f32.gmra.mxu0 %v377
        %v496 = vpop.f32.mrf.mxu0
        %v497 = vadd.f32 %v284, %v496
        %498 = vmatmul.f32.gmra.mxu0 %v380
        %v499 = vpop.f32.mrf.mxu0
        %v500 = vadd.f32 %v284, %v499
        %501 = vmatmul.f32.gmra.mxu0 %v383
        %v502 = vpop.f32.mrf.mxu0
        %v503 = vadd.f32 %v284, %v502
        %504 = vdwg.mxu0
        %505 = vmatpush.msra.mxu0 0.0
        %506 = vmatpush.msra.mxu0 0.0
        %507 = vmatpush.msra.mxu0 0.0
        %508 = vmatpush.msra.mxu0 0.0
        %509 = vmatpush.msra.mxu0 %v390
        %510 = vmatpush.msra.mxu0 %v279
        %511 = vmatpush.msra.mxu0 %v277
        %512 = vmatpush.msra.mxu0 %v275
        %513 = vmatpush.msra.mxu0 %v273
        %514 = vmatpush.msra.mxu0 %v271
        %515 = vmatpush.msra.mxu0 %v269
        %516 = vmatpush.msra.mxu0 %v267
        %517 = vmatpush.msra.mxu0 %v265
        %518 = vmatpush.msra.mxu0 %v263
        %519 = vmatpush.msra.mxu0 %v261
        %520 = vmatpush.msra.mxu0 %v259
        %521 = vmatmul.f32.gmra.mxu0 %v290
        %v522 = vpop.f32.mrf.mxu0
        %v523 = vadd.f32 %v285, %v522
        %524 = vmatmul.f32.gmra.mxu0 %v293
        %v525 = vpop.f32.mrf.mxu0
        %v526 = vadd.f32 %v285, %v525
        %527 = vmatmul.f32.gmra.mxu0 %v296
        %v528 = vpop.f32.mrf.mxu0
        %v529 = vadd.f32 %v285, %v528
        %530 = vmatmul.f32.gmra.mxu0 %v299
        %v531 = vpop.f32.mrf.mxu0
        %v532 = vadd.f32 %v285, %v531
        %533 = vmatmul.f32.gmra.mxu0 %v302
        %v534 = vpop.f32.mrf.mxu0
        %v535 = vadd.f32 %v285, %v534
        %536 = vmatmul.f32.gmra.mxu0 %v305
        %v537 = vpop.f32.mrf.mxu0
        %v538 = vadd.f32 %v285, %v537
        %539 = vmatmul.f32.gmra.mxu0 %v308
        %v540 = vpop.f32.mrf.mxu0
        %v541 = vadd.f32 %v285, %v540
        %542 = vmatmul.f32.gmra.mxu0 %v311
        %v543 = vpop.f32.mrf.mxu0
        %v544 = vadd.f32 %v285, %v543
        %545 = vmatmul.f32.gmra.mxu0 %v314
        %v546 = vpop.f32.mrf.mxu0
        %v547 = vadd.f32 %v285, %v546
        %548 = vmatmul.f32.gmra.mxu0 %v317
        %v549 = vpop.f32.mrf.mxu0
        %v550 = vadd.f32 %v285, %v549
        %551 = vmatmul.f32.gmra.mxu0 %v320
        %v552 = vpop.f32.mrf.mxu0
        %v553 = vadd.f32 %v285, %v552
        %554 = vmatmul.f32.gmra.mxu0 %v323
        %v555 = vpop.f32.mrf.mxu0
        %v556 = vadd.f32 %v285, %v555
        %557 = vmatmul.f32.gmra.mxu0 %v326
        %v558 = vpop.f32.mrf.mxu0
        %v559 = vadd.f32 %v285, %v558
        %560 = vmatmul.f32.gmra.mxu0 %v329
        %v561 = vpop.f32.mrf.mxu0
        %v562 = vadd.f32 %v285, %v561
        %563 = vmatmul.f32.gmra.mxu0 %v332
        %v564 = vpop.f32.mrf.mxu0
        %v565 = vadd.f32 %v285, %v564
        %566 = vmatmul.f32.gmra.mxu0 %v335
        %v567 = vpop.f32.mrf.mxu0
        %v568 = vadd.f32 %v285, %v567
        %569 = vmatmul.f32.gmra.mxu0 %v338
        %v570 = vpop.f32.mrf.mxu0
        %v571 = vadd.f32 %v285, %v570
        %572 = vmatmul.f32.gmra.mxu0 %v341
        %v573 = vpop.f32.mrf.mxu0
        %v574 = vadd.f32 %v285, %v573
        %575 = vmatmul.f32.gmra.mxu0 %v344
        %v576 = vpop.f32.mrf.mxu0
        %v577 = vadd.f32 %v285, %v576
        %578 = vmatmul.f32.gmra.mxu0 %v347
        %v579 = vpop.f32.mrf.mxu0
        %v580 = vadd.f32 %v285, %v579
        %581 = vmatmul.f32.gmra.mxu0 %v350
        %v582 = vpop.f32.mrf.mxu0
        %v583 = vadd.f32 %v285, %v582
        %584 = vmatmul.f32.gmra.mxu0 %v353
        %v585 = vpop.f32.mrf.mxu0
        %v586 = vadd.f32 %v285, %v585
        %587 = vmatmul.f32.gmra.mxu0 %v356
        %v588 = vpop.f32.mrf.mxu0
        %v589 = vadd.f32 %v285, %v588
        %590 = vmatmul.f32.gmra.mxu0 %v359
        %v591 = vpop.f32.mrf.mxu0
        %v592 = vadd.f32 %v285, %v591
        %593 = vmatmul.f32.gmra.mxu0 %v362
        %v594 = vpop.f32.mrf.mxu0
        %v595 = vadd.f32 %v285, %v594
        %596 = vmatmul.f32.gmra.mxu0 %v365
        %v597 = vpop.f32.mrf.mxu0
        %v598 = vadd.f32 %v285, %v597
        %599 = vmatmul.f32.gmra.mxu0 %v368
        %v600 = vpop.f32.mrf.mxu0
        %v601 = vadd.f32 %v285, %v600
        %602 = vmatmul.f32.gmra.mxu0 %v371
        %v603 = vpop.f32.mrf.mxu0
        %v604 = vadd.f32 %v285, %v603
        %605 = vmatmul.f32.gmra.mxu0 %v374
        %v606 = vpop.f32.mrf.mxu0
        %v607 = vadd.f32 %v285, %v606
        %608 = vmatmul.f32.gmra.mxu0 %v377
        %v609 = vpop.f32.mrf.mxu0
        %v610 = vadd.f32 %v285, %v609
        %611 = vmatmul.f32.gmra.mxu0 %v380
        %v612 = vpop.f32.mrf.mxu0
        %v613 = vadd.f32 %v285, %v612
        %614 = vmatmul.f32.gmra.mxu0 %v383
        %v615 = vpop.f32.mrf.mxu0
        %v616 = vadd.f32 %v285, %v615
        %617 = vdwg.mxu0
        %v618 = vld [vmem:[%s3] sm:$0x3]
        %v619 = vld [vmem:[%s4] sm:$0x3]
        %v620 = vadd.f32 %v410, %v523
        %621 = vadd.xlane.f32.xlu0 %v620
        %v622 = vpop.xlane.xlu0 %621
        %v623 = vadd.f32 %v413, %v526
        %624 = vadd.xlane.f32.xlu0 %v623
        %v625 = vpop.xlane.xlu0 %624
        %v626 = vadd.f32 %v416, %v529
        %627 = vadd.xlane.f32.xlu0 %v626
        %v628 = vpop.xlane.xlu0 %627
        %v629 = vadd.f32 %v419, %v532
        %630 = vadd.xlane.f32.xlu0 %v629
        %v631 = vpop.xlane.xlu0 %630
        %v632 = vadd.f32 %v422, %v535
        %633 = vadd.xlane.f32.xlu0 %v632
        %v634 = vpop.xlane.xlu0 %633
        %v635 = vadd.f32 %v425, %v538
        %636 = vadd.xlane.f32.xlu0 %v635
        %v637 = vpop.xlane.xlu0 %636
        %v638 = vadd.f32 %v428, %v541
        %639 = vadd.xlane.f32.xlu0 %v638
        %v640 = vpop.xlane.xlu0 %639
        %v641 = vadd.f32 %v431, %v544
        %642 = vadd.xlane.f32.xlu0 %v641
        %v643 = vpop.xlane.xlu0 %642
        %v644 = vadd.f32 %v434, %v547
        %645 = vadd.xlane.f32.xlu0 %v644
        %v646 = vpop.xlane.xlu0 %645
        %v647 = vadd.f32 %v437, %v550
        %648 = vadd.xlane.f32.xlu0 %v647
        %v649 = vpop.xlane.xlu0 %648
        %v650 = vadd.f32 %v440, %v553
        %651 = vadd.xlane.f32.xlu0 %v650
        %v652 = vpop.xlane.xlu0 %651
        %v653 = vadd.f32 %v443, %v556
        %654 = vadd.xlane.f32.xlu0 %v653
        %v655 = vpop.xlane.xlu0 %654
        %v656 = vadd.f32 %v446, %v559
        %657 = vadd.xlane.f32.xlu0 %v656
        %v658 = vpop.xlane.xlu0 %657
        %v659 = vadd.f32 %v449, %v562
        %660 = vadd.xlane.f32.xlu0 %v659
        %v661 = vpop.xlane.xlu0 %660
        %v662 = vadd.f32 %v452, %v565
        %663 = vadd.xlane.f32.xlu0 %v662
        %v664 = vpop.xlane.xlu0 %663
        %v665 = vadd.f32 %v455, %v568
        %666 = vadd.xlane.f32.xlu0 %v665
        %v667 = vpop.xlane.xlu0 %666
        %v668 = vadd.f32 %v458, %v571
        %669 = vadd.xlane.f32.xlu0 %v668
        %v670 = vpop.xlane.xlu0 %669
        %v671 = vadd.f32 %v461, %v574
        %672 = vadd.xlane.f32.xlu0 %v671
        %v673 = vpop.xlane.xlu0 %672
        %v674 = vadd.f32 %v464, %v577
        %675 = vadd.xlane.f32.xlu0 %v674
        %v676 = vpop.xlane.xlu0 %675
        %v677 = vadd.f32 %v467, %v580
        %678 = vadd.xlane.f32.xlu0 %v677
        %v679 = vpop.xlane.xlu0 %678
        %v680 = vadd.f32 %v470, %v583
        %681 = vadd.xlane.f32.xlu0 %v680
        %v682 = vpop.xlane.xlu0 %681
        %v683 = vadd.f32 %v473, %v586
        %684 = vadd.xlane.f32.xlu0 %v683
        %v685 = vpop.xlane.xlu0 %684
        %v686 = vadd.f32 %v476, %v589
        %687 = vadd.xlane.f32.xlu0 %v686
        %v688 = vpop.xlane.xlu0 %687
        %v689 = vadd.f32 %v479, %v592
        %690 = vadd.xlane.f32.xlu0 %v689
        %v691 = vpop.xlane.xlu0 %690
        %v692 = vadd.f32 %v482, %v595
        %693 = vadd.xlane.f32.xlu0 %v692
        %v694 = vpop.xlane.xlu0 %693
        %v695 = vadd.f32 %v485, %v598
        %696 = vadd.xlane.f32.xlu0 %v695
        %v697 = vpop.xlane.xlu0 %696
        %v698 = vadd.f32 %v488, %v601
        %699 = vadd.xlane.f32.xlu0 %v698
        %v700 = vpop.xlane.xlu0 %699
        %v701 = vadd.f32 %v491, %v604
        %702 = vadd.xlane.f32.xlu0 %v701
        %v703 = vpop.xlane.xlu0 %702
        %v704 = vadd.f32 %v494, %v607
        %705 = vadd.xlane.f32.xlu0 %v704
        %v706 = vpop.xlane.xlu0 %705
        %v707 = vadd.f32 %v497, %v610
        %708 = vadd.xlane.f32.xlu0 %v707
        %v709 = vpop.xlane.xlu0 %708
        %v710 = vadd.f32 %v500, %v613
        %711 = vadd.xlane.f32.xlu0 %v710
        %v712 = vpop.xlane.xlu0 %711
        %v713 = vadd.f32 %v503, %v616
        %714 = vadd.xlane.f32.xlu0 %v713
        %v715 = vpop.xlane.xlu0 %714
        %v716 = vmul.f32 %v410, %v410
        %v717 = vmul.f32 %v523, %v523
        %v718 = vmul.f32 %v413, %v413
        %v719 = vmul.f32 %v526, %v526
        %v720 = vmul.f32 %v416, %v416
        %v721 = vmul.f32 %v529, %v529
        %v722 = vmul.f32 %v419, %v419
        %v723 = vmul.f32 %v532, %v532
        %v724 = vmul.f32 %v422, %v422
        %v725 = vmul.f32 %v535, %v535
        %v726 = vmul.f32 %v425, %v425
        %v727 = vmul.f32 %v538, %v538
        %v728 = vmul.f32 %v428, %v428
        %v729 = vmul.f32 %v541, %v541
        %v730 = vmul.f32 %v431, %v431
        %v731 = vmul.f32 %v544, %v544
        %v732 = vmul.f32 %v434, %v434
        %v733 = vmul.f32 %v547, %v547
        %v734 = vmul.f32 %v437, %v437
        %v735 = vmul.f32 %v550, %v550
        %v736 = vmul.f32 %v440, %v440
        %v737 = vmul.f32 %v553, %v553
        %v738 = vmul.f32 %v443, %v443
        %v739 = vmul.f32 %v556, %v556
        %v740 = vmul.f32 %v446, %v446
        %v741 = vmul.f32 %v559, %v559
        %v742 = vmul.f32 %v449, %v449
        %v743 = vmul.f32 %v562, %v562
        %v744 = vmul.f32 %v452, %v452
        %v745 = vmul.f32 %v565, %v565
        %v746 = vmul.f32 %v455, %v455
        %v747 = vmul.f32 %v568, %v568
        %v748 = vmul.f32 %v458, %v458
        %v749 = vmul.f32 %v571, %v571
        %v750 = vmul.f32 %v461, %v461
        %v751 = vmul.f32 %v574, %v574
        %v752 = vmul.f32 %v464, %v464
        %v753 = vmul.f32 %v577, %v577
        %v754 = vmul.f32 %v467, %v467
        %v755 = vmul.f32 %v580, %v580
        %v756 = vmul.f32 %v470, %v470
        %v757 = vmul.f32 %v583, %v583
        %v758 = vmul.f32 %v473, %v473
        %v759 = vmul.f32 %v586, %v586
        %v760 = vmul.f32 %v476, %v476
        %v761 = vmul.f32 %v589, %v589
        %v762 = vmul.f32 %v479, %v479
        %v763 = vmul.f32 %v592, %v592
        %v764 = vmul.f32 %v482, %v482
        %v765 = vmul.f32 %v595, %v595
        %v766 = vmul.f32 %v485, %v485
        %v767 = vmul.f32 %v598, %v598
        %v768 = vmul.f32 %v488, %v488
        %v769 = vmul.f32 %v601, %v601
        %v770 = vmul.f32 %v491, %v491
        %v771 = vmul.f32 %v604, %v604
        %v772 = vmul.f32 %v494, %v494
        %v773 = vmul.f32 %v607, %v607
        %v774 = vmul.f32 %v497, %v497
        %v775 = vmul.f32 %v610, %v610
        %v776 = vmul.f32 %v500, %v500
        %v777 = vmul.f32 %v613, %v613
        %v778 = vmul.f32 %v503, %v503
        %v779 = vmul.f32 %v616, %v616
        %v780 = vadd.f32 %v716, %v717
        %781 = vadd.xlane.f32.xlu0 %v780
        %v782 = vpop.xlane.xlu0 %781
        %v783 = vadd.f32 %v718, %v719
        %784 = vadd.xlane.f32.xlu0 %v783
        %v785 = vpop.xlane.xlu0 %784
        %v786 = vadd.f32 %v720, %v721
        %787 = vadd.xlane.f32.xlu0 %v786
        %v788 = vpop.xlane.xlu0 %787
        %v789 = vadd.f32 %v722, %v723
        %790 = vadd.xlane.f32.xlu0 %v789
        %v791 = vpop.xlane.xlu0 %790
        %v792 = vadd.f32 %v724, %v725
        %793 = vadd.xlane.f32.xlu0 %v792
        %v794 = vpop.xlane.xlu0 %793
        %v795 = vadd.f32 %v726, %v727
        %796 = vadd.xlane.f32.xlu0 %v795
        %v797 = vpop.xlane.xlu0 %796
        %v798 = vadd.f32 %v728, %v729
        %799 = vadd.xlane.f32.xlu0 %v798
        %v800 = vpop.xlane.xlu0 %799
        %v801 = vadd.f32 %v730, %v731
        %802 = vadd.xlane.f32.xlu0 %v801
        %v803 = vpop.xlane.xlu0 %802
        %v804 = vadd.f32 %v732, %v733
        %805 = vadd.xlane.f32.xlu0 %v804
        %v806 = vpop.xlane.xlu0 %805
        %v807 = vadd.f32 %v734, %v735
        %808 = vadd.xlane.f32.xlu0 %v807
        %v809 = vpop.xlane.xlu0 %808
        %v810 = vadd.f32 %v736, %v737
        %811 = vadd.xlane.f32.xlu0 %v810
        %v812 = vpop.xlane.xlu0 %811
        %v813 = vadd.f32 %v738, %v739
        %814 = vadd.xlane.f32.xlu0 %v813
        %v815 = vpop.xlane.xlu0 %814
        %v816 = vadd.f32 %v740, %v741
        %817 = vadd.xlane.f32.xlu0 %v816
        %v818 = vpop.xlane.xlu0 %817
        %v819 = vadd.f32 %v742, %v743
        %820 = vadd.xlane.f32.xlu0 %v819
        %v821 = vpop.xlane.xlu0 %820
        %v822 = vadd.f32 %v744, %v745
        %823 = vadd.xlane.f32.xlu0 %v822
        %v824 = vpop.xlane.xlu0 %823
        %v825 = vadd.f32 %v746, %v747
        %826 = vadd.xlane.f32.xlu0 %v825
        %v827 = vpop.xlane.xlu0 %826
        %v828 = vadd.f32 %v748, %v749
        %829 = vadd.xlane.f32.xlu0 %v828
        %v830 = vpop.xlane.xlu0 %829
        %v831 = vadd.f32 %v750, %v751
        %832 = vadd.xlane.f32.xlu0 %v831
        %v833 = vpop.xlane.xlu0 %832
        %v834 = vadd.f32 %v752, %v753
        %835 = vadd.xlane.f32.xlu0 %v834
        %v836 = vpop.xlane.xlu0 %835
        %v837 = vadd.f32 %v754, %v755
        %838 = vadd.xlane.f32.xlu0 %v837
        %v839 = vpop.xlane.xlu0 %838
        %v840 = vadd.f32 %v756, %v757
        %841 = vadd.xlane.f32.xlu0 %v840
        %v842 = vpop.xlane.xlu0 %841
        %v843 = vadd.f32 %v758, %v759
        %844 = vadd.xlane.f32.xlu0 %v843
        %v845 = vpop.xlane.xlu0 %844
        %v846 = vadd.f32 %v760, %v761
        %847 = vadd.xlane.f32.xlu0 %v846
        %v848 = vpop.xlane.xlu0 %847
        %v849 = vadd.f32 %v762, %v763
        %850 = vadd.xlane.f32.xlu0 %v849
        %v851 = vpop.xlane.xlu0 %850
        %v852 = vadd.f32 %v764, %v765
        %853 = vadd.xlane.f32.xlu0 %v852
        %v854 = vpop.xlane.xlu0 %853
        %v855 = vadd.f32 %v766, %v767
        %856 = vadd.xlane.f32.xlu0 %v855
        %v857 = vpop.xlane.xlu0 %856
        %v858 = vadd.f32 %v768, %v769
        %859 = vadd.xlane.f32.xlu0 %v858
        %v860 = vpop.xlane.xlu0 %859
        %v861 = vadd.f32 %v770, %v771
        %862 = vadd.xlane.f32.xlu0 %v861
        %v863 = vpop.xlane.xlu0 %862
        %v864 = vadd.f32 %v772, %v773
        %865 = vadd.xlane.f32.xlu0 %v864
        %v866 = vpop.xlane.xlu0 %865
        %v867 = vadd.f32 %v774, %v775
        %868 = vadd.xlane.f32.xlu0 %v867
        %v869 = vpop.xlane.xlu0 %868
        %v870 = vadd.f32 %v776, %v777
        %871 = vadd.xlane.f32.xlu0 %v870
        %v872 = vpop.xlane.xlu0 %871
        %v873 = vadd.f32 %v778, %v779
        %874 = vadd.xlane.f32.xlu0 %v873
        %v875 = vpop.xlane.xlu0 %874
        %v876 = vmul.f32 %v622, 0.00390625
        %v877 = vmul.f32 %v625, 0.00390625
        %v878 = vmul.f32 %v628, 0.00390625
        %v879 = vmul.f32 %v631, 0.00390625
        %v880 = vmul.f32 %v634, 0.00390625
        %v881 = vmul.f32 %v637, 0.00390625
        %v882 = vmul.f32 %v640, 0.00390625
        %v883 = vmul.f32 %v643, 0.00390625
        %v884 = vmul.f32 %v646, 0.00390625
        %v885 = vmul.f32 %v649, 0.00390625
        %v886 = vmul.f32 %v652, 0.00390625
        %v887 = vmul.f32 %v655, 0.00390625
        %v888 = vmul.f32 %v658, 0.00390625
        %v889 = vmul.f32 %v661, 0.00390625
        %v890 = vmul.f32 %v664, 0.00390625
        %v891 = vmul.f32 %v667, 0.00390625
        %v892 = vmul.f32 %v670, 0.00390625
        %v893 = vmul.f32 %v673, 0.00390625
        %v894 = vmul.f32 %v676, 0.00390625
        %v895 = vmul.f32 %v679, 0.00390625
        %v896 = vmul.f32 %v682, 0.00390625
        %v897 = vmul.f32 %v685, 0.00390625
        %v898 = vmul.f32 %v688, 0.00390625
        %v899 = vmul.f32 %v691, 0.00390625
        %v900 = vmul.f32 %v694, 0.00390625
        %v901 = vmul.f32 %v697, 0.00390625
        %v902 = vmul.f32 %v700, 0.00390625
        %v903 = vmul.f32 %v703, 0.00390625
        %v904 = vmul.f32 %v706, 0.00390625
        %v905 = vmul.f32 %v709, 0.00390625
        %v906 = vmul.f32 %v712, 0.00390625
        %v907 = vmul.f32 %v715, 0.00390625
        %v908 = vmul.f32 %v782, 0.00390625
        %v909 = vmul.f32 %v785, 0.00390625
        %v910 = vmul.f32 %v788, 0.00390625
        %v911 = vmul.f32 %v791, 0.00390625
        %v912 = vmul.f32 %v794, 0.00390625
        %v913 = vmul.f32 %v797, 0.00390625
        %v914 = vmul.f32 %v800, 0.00390625
        %v915 = vmul.f32 %v803, 0.00390625
        %v916 = vmul.f32 %v806, 0.00390625
        %v917 = vmul.f32 %v809, 0.00390625
        %v918 = vmul.f32 %v812, 0.00390625
        %v919 = vmul.f32 %v815, 0.00390625
        %v920 = vmul.f32 %v818, 0.00390625
        %v921 = vmul.f32 %v821, 0.00390625
        %v922 = vmul.f32 %v824, 0.00390625
        %v923 = vmul.f32 %v827, 0.00390625
        %v924 = vmul.f32 %v830, 0.00390625
        %v925 = vmul.f32 %v833, 0.00390625
        %v926 = vmul.f32 %v836, 0.00390625
        %v927 = vmul.f32 %v839, 0.00390625
        %v928 = vmul.f32 %v842, 0.00390625
        %v929 = vmul.f32 %v845, 0.00390625
        %v930 = vmul.f32 %v848, 0.00390625
        %v931 = vmul.f32 %v851, 0.00390625
        %v932 = vmul.f32 %v854, 0.00390625
        %v933 = vmul.f32 %v857, 0.00390625
        %v934 = vmul.f32 %v860, 0.00390625
        %v935 = vmul.f32 %v863, 0.00390625
        %v936 = vmul.f32 %v866, 0.00390625
        %v937 = vmul.f32 %v869, 0.00390625
        %v938 = vmul.f32 %v872, 0.00390625
        %v939 = vmul.f32 %v875, 0.00390625
        %v940 = vmul.f32 %v876, %v876
        %v941 = vmul.f32 %v877, %v877
        %v942 = vmul.f32 %v878, %v878
        %v943 = vmul.f32 %v879, %v879
        %v944 = vmul.f32 %v880, %v880
        %v945 = vmul.f32 %v881, %v881
        %v946 = vmul.f32 %v882, %v882
        %v947 = vmul.f32 %v883, %v883
        %v948 = vmul.f32 %v884, %v884
        %v949 = vmul.f32 %v885, %v885
        %v950 = vmul.f32 %v886, %v886
        %v951 = vmul.f32 %v887, %v887
        %v952 = vmul.f32 %v888, %v888
        %v953 = vmul.f32 %v889, %v889
        %v954 = vmul.f32 %v890, %v890
        %v955 = vmul.f32 %v891, %v891
        %v956 = vmul.f32 %v892, %v892
        %v957 = vmul.f32 %v893, %v893
        %v958 = vmul.f32 %v894, %v894
        %v959 = vmul.f32 %v895, %v895
        %v960 = vmul.f32 %v896, %v896
        %v961 = vmul.f32 %v897, %v897
        %v962 = vmul.f32 %v898, %v898
        %v963 = vmul.f32 %v899, %v899
        %v964 = vmul.f32 %v900, %v900
        %v965 = vmul.f32 %v901, %v901
        %v966 = vmul.f32 %v902, %v902
        %v967 = vmul.f32 %v903, %v903
        %v968 = vmul.f32 %v904, %v904
        %v969 = vmul.f32 %v905, %v905
        %v970 = vmul.f32 %v906, %v906
        %v971 = vmul.f32 %v907, %v907
        %v972 = vsub.f32 %v908, %v940
        %v973 = vsub.f32 %v909, %v941
        %v974 = vsub.f32 %v910, %v942
        %v975 = vsub.f32 %v911, %v943
        %v976 = vsub.f32 %v912, %v944
        %v977 = vsub.f32 %v913, %v945
        %v978 = vsub.f32 %v914, %v946
        %v979 = vsub.f32 %v915, %v947
        %v980 = vsub.f32 %v916, %v948
        %v981 = vsub.f32 %v917, %v949
        %v982 = vsub.f32 %v918, %v950
        %v983 = vsub.f32 %v919, %v951
        %v984 = vsub.f32 %v920, %v952
        %v985 = vsub.f32 %v921, %v953
        %v986 = vsub.f32 %v922, %v954
        %v987 = vsub.f32 %v923, %v955
        %v988 = vsub.f32 %v924, %v956
        %v989 = vsub.f32 %v925, %v957
        %v990 = vsub.f32 %v926, %v958
        %v991 = vsub.f32 %v927, %v959
        %v992 = vsub.f32 %v928, %v960
        %v993 = vsub.f32 %v929, %v961
        %v994 = vsub.f32 %v930, %v962
        %v995 = vsub.f32 %v931, %v963
        %v996 = vsub.f32 %v932, %v964
        %v997 = vsub.f32 %v933, %v965
        %v998 = vsub.f32 %v934, %v966
        %v999 = vsub.f32 %v935, %v967
        %v1000 = vsub.f32 %v936, %v968
        %v1001 = vsub.f32 %v937, %v969
        %v1002 = vsub.f32 %v938, %v970
        %v1003 = vsub.f32 %v939, %v971
        %v1004 = vadd.f32 %v972, 1e-05
        %v1005 = vadd.f32 %v973, 1e-05
        %v1006 = vadd.f32 %v974, 1e-05
        %v1007 = vadd.f32 %v975, 1e-05
        %v1008 = vadd.f32 %v976, 1e-05
        %v1009 = vadd.f32 %v977, 1e-05
        %v1010 = vadd.f32 %v978, 1e-05
        %v1011 = vadd.f32 %v979, 1e-05
        %v1012 = vadd.f32 %v980, 1e-05
        %v1013 = vadd.f32 %v981, 1e-05
        %v1014 = vadd.f32 %v982, 1e-05
        %v1015 = vadd.f32 %v983, 1e-05
        %v1016 = vadd.f32 %v984, 1e-05
        %v1017 = vadd.f32 %v985, 1e-05
        %v1018 = vadd.f32 %v986, 1e-05
        %v1019 = vadd.f32 %v987, 1e-05
        %v1020 = vadd.f32 %v988, 1e-05
        %v1021 = vadd.f32 %v989, 1e-05
        %v1022 = vadd.f32 %v990, 1e-05
        %v1023 = vadd.f32 %v991, 1e-05
        %v1024 = vadd.f32 %v992, 1e-05
        %v1025 = vadd.f32 %v993, 1e-05
        %v1026 = vadd.f32 %v994, 1e-05
        %v1027 = vadd.f32 %v995, 1e-05
        %v1028 = vadd.f32 %v996, 1e-05
        %v1029 = vadd.f32 %v997, 1e-05
        %v1030 = vadd.f32 %v998, 1e-05
        %v1031 = vadd.f32 %v999, 1e-05
        %v1032 = vadd.f32 %v1000, 1e-05
        %v1033 = vadd.f32 %v1001, 1e-05
        %v1034 = vadd.f32 %v1002, 1e-05
        %v1035 = vadd.f32 %v1003, 1e-05
        %v1036 = vrsqrt.pop %v1004
        %v1037 = vmul.f32 %v1036, %v1004
        %v1038 = vmul.f32 %v1037, %v1036
        %v1039 = vmul.f32 0.5, %v1038
        %v1040 = vsub.f32 1.5, %v1039
        %v1041 = vmul.f32 %v1036, %v1040
        %vm1042 = vweird.f32 %v1004
        %vm1043 = vweird.f32 %v1036
        %vm1044 = vmor %vm1042, %vm1043
        %v1045 = vsel %vm1044, %v1036, %v1041
        %v1046 = vrsqrt.pop %v1005
        %v1047 = vmul.f32 %v1046, %v1005
        %v1048 = vmul.f32 %v1047, %v1046
        %v1049 = vmul.f32 0.5, %v1048
        %v1050 = vsub.f32 1.5, %v1049
        %v1051 = vmul.f32 %v1046, %v1050
        %vm1052 = vweird.f32 %v1005
        %vm1053 = vweird.f32 %v1046
        %vm1054 = vmor %vm1052, %vm1053
        %v1055 = vsel %vm1054, %v1046, %v1051
        %v1056 = vrsqrt.pop %v1006
        %v1057 = vmul.f32 %v1056, %v1006
        %v1058 = vmul.f32 %v1057, %v1056
        %v1059 = vmul.f32 0.5, %v1058
        %v1060 = vsub.f32 1.5, %v1059
        %v1061 = vmul.f32 %v1056, %v1060
        %vm1062 = vweird.f32 %v1006
        %vm1063 = vweird.f32 %v1056
        %vm1064 = vmor %vm1062, %vm1063
        %v1065 = vsel %vm1064, %v1056, %v1061
        %v1066 = vrsqrt.pop %v1007
        %v1067 = vmul.f32 %v1066, %v1007
        %v1068 = vmul.f32 %v1067, %v1066
        %v1069 = vmul.f32 0.5, %v1068
        %v1070 = vsub.f32 1.5, %v1069
        %v1071 = vmul.f32 %v1066, %v1070
        %vm1072 = vweird.f32 %v1007
        %vm1073 = vweird.f32 %v1066
        %vm1074 = vmor %vm1072, %vm1073
        %v1075 = vsel %vm1074, %v1066, %v1071
        %v1076 = vrsqrt.pop %v1008
        %v1077 = vmul.f32 %v1076, %v1008
        %v1078 = vmul.f32 %v1077, %v1076
        %v1079 = vmul.f32 0.5, %v1078
        %v1080 = vsub.f32 1.5, %v1079
        %v1081 = vmul.f32 %v1076, %v1080
        %vm1082 = vweird.f32 %v1008
        %vm1083 = vweird.f32 %v1076
        %vm1084 = vmor %vm1082, %vm1083
        %v1085 = vsel %vm1084, %v1076, %v1081
        %v1086 = vrsqrt.pop %v1009
        %v1087 = vmul.f32 %v1086, %v1009
        %v1088 = vmul.f32 %v1087, %v1086
        %v1089 = vmul.f32 0.5, %v1088
        %v1090 = vsub.f32 1.5, %v1089
        %v1091 = vmul.f32 %v1086, %v1090
        %vm1092 = vweird.f32 %v1009
        %vm1093 = vweird.f32 %v1086
        %vm1094 = vmor %vm1092, %vm1093
        %v1095 = vsel %vm1094, %v1086, %v1091
        %v1096 = vrsqrt.pop %v1010
        %v1097 = vmul.f32 %v1096, %v1010
        %v1098 = vmul.f32 %v1097, %v1096
        %v1099 = vmul.f32 0.5, %v1098
        %v1100 = vsub.f32 1.5, %v1099
        %v1101 = vmul.f32 %v1096, %v1100
        %vm1102 = vweird.f32 %v1010
        %vm1103 = vweird.f32 %v1096
        %vm1104 = vmor %vm1102, %vm1103
        %v1105 = vsel %vm1104, %v1096, %v1101
        %v1106 = vrsqrt.pop %v1011
        %v1107 = vmul.f32 %v1106, %v1011
        %v1108 = vmul.f32 %v1107, %v1106
        %v1109 = vmul.f32 0.5, %v1108
        %v1110 = vsub.f32 1.5, %v1109
        %v1111 = vmul.f32 %v1106, %v1110
        %vm1112 = vweird.f32 %v1011
        %vm1113 = vweird.f32 %v1106
        %vm1114 = vmor %vm1112, %vm1113
        %v1115 = vsel %vm1114, %v1106, %v1111
        %v1116 = vrsqrt.pop %v1012
        %v1117 = vmul.f32 %v1116, %v1012
        %v1118 = vmul.f32 %v1117, %v1116
        %v1119 = vmul.f32 0.5, %v1118
        %v1120 = vsub.f32 1.5, %v1119
        %v1121 = vmul.f32 %v1116, %v1120
        %vm1122 = vweird.f32 %v1012
        %vm1123 = vweird.f32 %v1116
        %vm1124 = vmor %vm1122, %vm1123
        %v1125 = vsel %vm1124, %v1116, %v1121
        %v1126 = vrsqrt.pop %v1013
        %v1127 = vmul.f32 %v1126, %v1013
        %v1128 = vmul.f32 %v1127, %v1126
        %v1129 = vmul.f32 0.5, %v1128
        %v1130 = vsub.f32 1.5, %v1129
        %v1131 = vmul.f32 %v1126, %v1130
        %vm1132 = vweird.f32 %v1013
        %vm1133 = vweird.f32 %v1126
        %vm1134 = vmor %vm1132, %vm1133
        %v1135 = vsel %vm1134, %v1126, %v1131
        %v1136 = vrsqrt.pop %v1014
        %v1137 = vmul.f32 %v1136, %v1014
        %v1138 = vmul.f32 %v1137, %v1136
        %v1139 = vmul.f32 0.5, %v1138
        %v1140 = vsub.f32 1.5, %v1139
        %v1141 = vmul.f32 %v1136, %v1140
        %vm1142 = vweird.f32 %v1014
        %vm1143 = vweird.f32 %v1136
        %vm1144 = vmor %vm1142, %vm1143
        %v1145 = vsel %vm1144, %v1136, %v1141
        %v1146 = vrsqrt.pop %v1015
        %v1147 = vmul.f32 %v1146, %v1015
        %v1148 = vmul.f32 %v1147, %v1146
        %v1149 = vmul.f32 0.5, %v1148
        %v1150 = vsub.f32 1.5, %v1149
        %v1151 = vmul.f32 %v1146, %v1150
        %vm1152 = vweird.f32 %v1015
        %vm1153 = vweird.f32 %v1146
        %vm1154 = vmor %vm1152, %vm1153
        %v1155 = vsel %vm1154, %v1146, %v1151
        %v1156 = vrsqrt.pop %v1016
        %v1157 = vmul.f32 %v1156, %v1016
        %v1158 = vmul.f32 %v1157, %v1156
        %v1159 = vmul.f32 0.5, %v1158
        %v1160 = vsub.f32 1.5, %v1159
        %v1161 = vmul.f32 %v1156, %v1160
        %vm1162 = vweird.f32 %v1016
        %vm1163 = vweird.f32 %v1156
        %vm1164 = vmor %vm1162, %vm1163
        %v1165 = vsel %vm1164, %v1156, %v1161
        %v1166 = vrsqrt.pop %v1017
        %v1167 = vmul.f32 %v1166, %v1017
        %v1168 = vmul.f32 %v1167, %v1166
        %v1169 = vmul.f32 0.5, %v1168
        %v1170 = vsub.f32 1.5, %v1169
        %v1171 = vmul.f32 %v1166, %v1170
        %vm1172 = vweird.f32 %v1017
        %vm1173 = vweird.f32 %v1166
        %vm1174 = vmor %vm1172, %vm1173
        %v1175 = vsel %vm1174, %v1166, %v1171
        %v1176 = vrsqrt.pop %v1018
        %v1177 = vmul.f32 %v1176, %v1018
        %v1178 = vmul.f32 %v1177, %v1176
        %v1179 = vmul.f32 0.5, %v1178
        %v1180 = vsub.f32 1.5, %v1179
        %v1181 = vmul.f32 %v1176, %v1180
        %vm1182 = vweird.f32 %v1018
        %vm1183 = vweird.f32 %v1176
        %vm1184 = vmor %vm1182, %vm1183
        %v1185 = vsel %vm1184, %v1176, %v1181
        %v1186 = vrsqrt.pop %v1019
        %v1187 = vmul.f32 %v1186, %v1019
        %v1188 = vmul.f32 %v1187, %v1186
        %v1189 = vmul.f32 0.5, %v1188
        %v1190 = vsub.f32 1.5, %v1189
        %v1191 = vmul.f32 %v1186, %v1190
        %vm1192 = vweird.f32 %v1019
        %vm1193 = vweird.f32 %v1186
        %vm1194 = vmor %vm1192, %vm1193
        %v1195 = vsel %vm1194, %v1186, %v1191
        %v1196 = vrsqrt.pop %v1020
        %v1197 = vmul.f32 %v1196, %v1020
        %v1198 = vmul.f32 %v1197, %v1196
        %v1199 = vmul.f32 0.5, %v1198
        %v1200 = vsub.f32 1.5, %v1199
        %v1201 = vmul.f32 %v1196, %v1200
        %vm1202 = vweird.f32 %v1020
        %vm1203 = vweird.f32 %v1196
        %vm1204 = vmor %vm1202, %vm1203
        %v1205 = vsel %vm1204, %v1196, %v1201
        %v1206 = vrsqrt.pop %v1021
        %v1207 = vmul.f32 %v1206, %v1021
        %v1208 = vmul.f32 %v1207, %v1206
        %v1209 = vmul.f32 0.5, %v1208
        %v1210 = vsub.f32 1.5, %v1209
        %v1211 = vmul.f32 %v1206, %v1210
        %vm1212 = vweird.f32 %v1021
        %vm1213 = vweird.f32 %v1206
        %vm1214 = vmor %vm1212, %vm1213
        %v1215 = vsel %vm1214, %v1206, %v1211
        %v1216 = vrsqrt.pop %v1022
        %v1217 = vmul.f32 %v1216, %v1022
        %v1218 = vmul.f32 %v1217, %v1216
        %v1219 = vmul.f32 0.5, %v1218
        %v1220 = vsub.f32 1.5, %v1219
        %v1221 = vmul.f32 %v1216, %v1220
        %vm1222 = vweird.f32 %v1022
        %vm1223 = vweird.f32 %v1216
        %vm1224 = vmor %vm1222, %vm1223
        %v1225 = vsel %vm1224, %v1216, %v1221
        %v1226 = vrsqrt.pop %v1023
        %v1227 = vmul.f32 %v1226, %v1023
        %v1228 = vmul.f32 %v1227, %v1226
        %v1229 = vmul.f32 0.5, %v1228
        %v1230 = vsub.f32 1.5, %v1229
        %v1231 = vmul.f32 %v1226, %v1230
        %vm1232 = vweird.f32 %v1023
        %vm1233 = vweird.f32 %v1226
        %vm1234 = vmor %vm1232, %vm1233
        %v1235 = vsel %vm1234, %v1226, %v1231
        %v1236 = vrsqrt.pop %v1024
        %v1237 = vmul.f32 %v1236, %v1024
        %v1238 = vmul.f32 %v1237, %v1236
        %v1239 = vmul.f32 0.5, %v1238
        %v1240 = vsub.f32 1.5, %v1239
        %v1241 = vmul.f32 %v1236, %v1240
        %vm1242 = vweird.f32 %v1024
        %vm1243 = vweird.f32 %v1236
        %vm1244 = vmor %vm1242, %vm1243
        %v1245 = vsel %vm1244, %v1236, %v1241
        %v1246 = vrsqrt.pop %v1025
        %v1247 = vmul.f32 %v1246, %v1025
        %v1248 = vmul.f32 %v1247, %v1246
        %v1249 = vmul.f32 0.5, %v1248
        %v1250 = vsub.f32 1.5, %v1249
        %v1251 = vmul.f32 %v1246, %v1250
        %vm1252 = vweird.f32 %v1025
        %vm1253 = vweird.f32 %v1246
        %vm1254 = vmor %vm1252, %vm1253
        %v1255 = vsel %vm1254, %v1246, %v1251
        %v1256 = vrsqrt.pop %v1026
        %v1257 = vmul.f32 %v1256, %v1026
        %v1258 = vmul.f32 %v1257, %v1256
        %v1259 = vmul.f32 0.5, %v1258
        %v1260 = vsub.f32 1.5, %v1259
        %v1261 = vmul.f32 %v1256, %v1260
        %vm1262 = vweird.f32 %v1026
        %vm1263 = vweird.f32 %v1256
        %vm1264 = vmor %vm1262, %vm1263
        %v1265 = vsel %vm1264, %v1256, %v1261
        %v1266 = vrsqrt.pop %v1027
        %v1267 = vmul.f32 %v1266, %v1027
        %v1268 = vmul.f32 %v1267, %v1266
        %v1269 = vmul.f32 0.5, %v1268
        %v1270 = vsub.f32 1.5, %v1269
        %v1271 = vmul.f32 %v1266, %v1270
        %vm1272 = vweird.f32 %v1027
        %vm1273 = vweird.f32 %v1266
        %vm1274 = vmor %vm1272, %vm1273
        %v1275 = vsel %vm1274, %v1266, %v1271
        %v1276 = vrsqrt.pop %v1028
        %v1277 = vmul.f32 %v1276, %v1028
        %v1278 = vmul.f32 %v1277, %v1276
        %v1279 = vmul.f32 0.5, %v1278
        %v1280 = vsub.f32 1.5, %v1279
        %v1281 = vmul.f32 %v1276, %v1280
        %vm1282 = vweird.f32 %v1028
        %vm1283 = vweird.f32 %v1276
        %vm1284 = vmor %vm1282, %vm1283
        %v1285 = vsel %vm1284, %v1276, %v1281
        %v1286 = vrsqrt.pop %v1029
        %v1287 = vmul.f32 %v1286, %v1029
        %v1288 = vmul.f32 %v1287, %v1286
        %v1289 = vmul.f32 0.5, %v1288
        %v1290 = vsub.f32 1.5, %v1289
        %v1291 = vmul.f32 %v1286, %v1290
        %vm1292 = vweird.f32 %v1029
        %vm1293 = vweird.f32 %v1286
        %vm1294 = vmor %vm1292, %vm1293
        %v1295 = vsel %vm1294, %v1286, %v1291
        %v1296 = vrsqrt.pop %v1030
        %v1297 = vmul.f32 %v1296, %v1030
        %v1298 = vmul.f32 %v1297, %v1296
        %v1299 = vmul.f32 0.5, %v1298
        %v1300 = vsub.f32 1.5, %v1299
        %v1301 = vmul.f32 %v1296, %v1300
        %vm1302 = vweird.f32 %v1030
        %vm1303 = vweird.f32 %v1296
        %vm1304 = vmor %vm1302, %vm1303
        %v1305 = vsel %vm1304, %v1296, %v1301
        %v1306 = vrsqrt.pop %v1031
        %v1307 = vmul.f32 %v1306, %v1031
        %v1308 = vmul.f32 %v1307, %v1306
        %v1309 = vmul.f32 0.5, %v1308
        %v1310 = vsub.f32 1.5, %v1309
        %v1311 = vmul.f32 %v1306, %v1310
        %vm1312 = vweird.f32 %v1031
        %vm1313 = vweird.f32 %v1306
        %vm1314 = vmor %vm1312, %vm1313
        %v1315 = vsel %vm1314, %v1306, %v1311
        %v1316 = vrsqrt.pop %v1032
        %v1317 = vmul.f32 %v1316, %v1032
        %v1318 = vmul.f32 %v1317, %v1316
        %v1319 = vmul.f32 0.5, %v1318
        %v1320 = vsub.f32 1.5, %v1319
        %v1321 = vmul.f32 %v1316, %v1320
        %vm1322 = vweird.f32 %v1032
        %vm1323 = vweird.f32 %v1316
        %vm1324 = vmor %vm1322, %vm1323
        %v1325 = vsel %vm1324, %v1316, %v1321
        %v1326 = vrsqrt.pop %v1033
        %v1327 = vmul.f32 %v1326, %v1033
        %v1328 = vmul.f32 %v1327, %v1326
        %v1329 = vmul.f32 0.5, %v1328
        %v1330 = vsub.f32 1.5, %v1329
        %v1331 = vmul.f32 %v1326, %v1330
        %vm1332 = vweird.f32 %v1033
        %vm1333 = vweird.f32 %v1326
        %vm1334 = vmor %vm1332, %vm1333
        %v1335 = vsel %vm1334, %v1326, %v1331
        %v1336 = vrsqrt.pop %v1034
        %v1337 = vmul.f32 %v1336, %v1034
        %v1338 = vmul.f32 %v1337, %v1336
        %v1339 = vmul.f32 0.5, %v1338
        %v1340 = vsub.f32 1.5, %v1339
        %v1341 = vmul.f32 %v1336, %v1340
        %vm1342 = vweird.f32 %v1034
        %vm1343 = vweird.f32 %v1336
        %vm1344 = vmor %vm1342, %vm1343
        %v1345 = vsel %vm1344, %v1336, %v1341
        %v1346 = vrsqrt.pop %v1035
        %v1347 = vmul.f32 %v1346, %v1035
        %v1348 = vmul.f32 %v1347, %v1346
        %v1349 = vmul.f32 0.5, %v1348
        %v1350 = vsub.f32 1.5, %v1349
        %v1351 = vmul.f32 %v1346, %v1350
        %vm1352 = vweird.f32 %v1035
        %vm1353 = vweird.f32 %v1346
        %vm1354 = vmor %vm1352, %vm1353
        %v1355 = vsel %vm1354, %v1346, %v1351
        %v1357 = vperm.slane %v618, 0
        %v1358 = vperm.slane %v618, 1
        %v1361 = vmul.f32 %v1357, %v1045
        %v1362 = vmul.f32 %v1358, %v1045
        %v1363 = vmul.f32 %v1357, %v1055
        %v1364 = vmul.f32 %v1358, %v1055
        %v1365 = vmul.f32 %v1357, %v1065
        %v1366 = vmul.f32 %v1358, %v1065
        %v1367 = vmul.f32 %v1357, %v1075
        %v1368 = vmul.f32 %v1358, %v1075
        %v1369 = vmul.f32 %v1357, %v1085
        %v1370 = vmul.f32 %v1358, %v1085
        %v1371 = vmul.f32 %v1357, %v1095
        %v1372 = vmul.f32 %v1358, %v1095
        %v1373 = vmul.f32 %v1357, %v1105
        %v1374 = vmul.f32 %v1358, %v1105
        %v1375 = vmul.f32 %v1357, %v1115
        %v1376 = vmul.f32 %v1358, %v1115
        %v1377 = vmul.f32 %v1357, %v1125
        %v1378 = vmul.f32 %v1358, %v1125
        %v1379 = vmul.f32 %v1357, %v1135
        %v1380 = vmul.f32 %v1358, %v1135
        %v1381 = vmul.f32 %v1357, %v1145
        %v1382 = vmul.f32 %v1358, %v1145
        %v1383 = vmul.f32 %v1357, %v1155
        %v1384 = vmul.f32 %v1358, %v1155
        %v1385 = vmul.f32 %v1357, %v1165
        %v1386 = vmul.f32 %v1358, %v1165
        %v1387 = vmul.f32 %v1357, %v1175
        %v1388 = vmul.f32 %v1358, %v1175
        %v1389 = vmul.f32 %v1357, %v1185
        %v1390 = vmul.f32 %v1358, %v1185
        %v1391 = vmul.f32 %v1357, %v1195
        %v1392 = vmul.f32 %v1358, %v1195
        %v1393 = vmul.f32 %v1357, %v1205
        %v1394 = vmul.f32 %v1358, %v1205
        %v1395 = vmul.f32 %v1357, %v1215
        %v1396 = vmul.f32 %v1358, %v1215
        %v1397 = vmul.f32 %v1357, %v1225
        %v1398 = vmul.f32 %v1358, %v1225
        %v1399 = vmul.f32 %v1357, %v1235
        %v1400 = vmul.f32 %v1358, %v1235
        %v1401 = vmul.f32 %v1357, %v1245
        %v1402 = vmul.f32 %v1358, %v1245
        %v1403 = vmul.f32 %v1357, %v1255
        %v1404 = vmul.f32 %v1358, %v1255
        %v1405 = vmul.f32 %v1357, %v1265
        %v1406 = vmul.f32 %v1358, %v1265
        %v1407 = vmul.f32 %v1357, %v1275
        %v1408 = vmul.f32 %v1358, %v1275
        %v1409 = vmul.f32 %v1357, %v1285
        %v1410 = vmul.f32 %v1358, %v1285
        %v1411 = vmul.f32 %v1357, %v1295
        %v1412 = vmul.f32 %v1358, %v1295
        %v1413 = vmul.f32 %v1357, %v1305
        %v1414 = vmul.f32 %v1358, %v1305
        %v1415 = vmul.f32 %v1357, %v1315
        %v1416 = vmul.f32 %v1358, %v1315
        %v1417 = vmul.f32 %v1357, %v1325
        %v1418 = vmul.f32 %v1358, %v1325
        %v1419 = vmul.f32 %v1357, %v1335
        %v1420 = vmul.f32 %v1358, %v1335
        %v1421 = vmul.f32 %v1357, %v1345
        %v1422 = vmul.f32 %v1358, %v1345
        %v1423 = vmul.f32 %v1357, %v1355
        %v1424 = vmul.f32 %v1358, %v1355
        %v1425 = vmul.f32 %v876, %v1361
        %v1426 = vmul.f32 %v876, %v1362
        %v1427 = vmul.f32 %v877, %v1363
        %v1428 = vmul.f32 %v877, %v1364
        %v1429 = vmul.f32 %v878, %v1365
        %v1430 = vmul.f32 %v878, %v1366
        %v1431 = vmul.f32 %v879, %v1367
        %v1432 = vmul.f32 %v879, %v1368
        %v1433 = vmul.f32 %v880, %v1369
        %v1434 = vmul.f32 %v880, %v1370
        %v1435 = vmul.f32 %v881, %v1371
        %v1436 = vmul.f32 %v881, %v1372
        %v1437 = vmul.f32 %v882, %v1373
        %v1438 = vmul.f32 %v882, %v1374
        %v1439 = vmul.f32 %v883, %v1375
        %v1440 = vmul.f32 %v883, %v1376
        %v1441 = vmul.f32 %v884, %v1377
        %v1442 = vmul.f32 %v884, %v1378
        %v1443 = vmul.f32 %v885, %v1379
        %v1444 = vmul.f32 %v885, %v1380
        %v1445 = vmul.f32 %v886, %v1381
        %v1446 = vmul.f32 %v886, %v1382
        %v1447 = vmul.f32 %v887, %v1383
        %v1448 = vmul.f32 %v887, %v1384
        %v1449 = vmul.f32 %v888, %v1385
        %v1450 = vmul.f32 %v888, %v1386
        %v1451 = vmul.f32 %v889, %v1387
        %v1452 = vmul.f32 %v889, %v1388
        %v1453 = vmul.f32 %v890, %v1389
        %v1454 = vmul.f32 %v890, %v1390
        %v1455 = vmul.f32 %v891, %v1391
        %v1456 = vmul.f32 %v891, %v1392
        %v1457 = vmul.f32 %v892, %v1393
        %v1458 = vmul.f32 %v892, %v1394
        %v1459 = vmul.f32 %v893, %v1395
        %v1460 = vmul.f32 %v893, %v1396
        %v1461 = vmul.f32 %v894, %v1397
        %v1462 = vmul.f32 %v894, %v1398
        %v1463 = vmul.f32 %v895, %v1399
        %v1464 = vmul.f32 %v895, %v1400
        %v1465 = vmul.f32 %v896, %v1401
        %v1466 = vmul.f32 %v896, %v1402
        %v1467 = vmul.f32 %v897, %v1403
        %v1468 = vmul.f32 %v897, %v1404
        %v1469 = vmul.f32 %v898, %v1405
        %v1470 = vmul.f32 %v898, %v1406
        %v1471 = vmul.f32 %v899, %v1407
        %v1472 = vmul.f32 %v899, %v1408
        %v1473 = vmul.f32 %v900, %v1409
        %v1474 = vmul.f32 %v900, %v1410
        %v1475 = vmul.f32 %v901, %v1411
        %v1476 = vmul.f32 %v901, %v1412
        %v1477 = vmul.f32 %v902, %v1413
        %v1478 = vmul.f32 %v902, %v1414
        %v1479 = vmul.f32 %v903, %v1415
        %v1480 = vmul.f32 %v903, %v1416
        %v1481 = vmul.f32 %v904, %v1417
        %v1482 = vmul.f32 %v904, %v1418
        %v1483 = vmul.f32 %v905, %v1419
        %v1484 = vmul.f32 %v905, %v1420
        %v1485 = vmul.f32 %v906, %v1421
        %v1486 = vmul.f32 %v906, %v1422
        %v1487 = vmul.f32 %v907, %v1423
        %v1488 = vmul.f32 %v907, %v1424
        %v1490 = vperm.slane %v619, 0
        %v1491 = vperm.slane %v619, 1
        %v1494 = vsub.f32 %v1490, %v1425
        %v1495 = vsub.f32 %v1491, %v1426
        %v1496 = vsub.f32 %v1490, %v1427
        %v1497 = vsub.f32 %v1491, %v1428
        %v1498 = vsub.f32 %v1490, %v1429
        %v1499 = vsub.f32 %v1491, %v1430
        %v1500 = vsub.f32 %v1490, %v1431
        %v1501 = vsub.f32 %v1491, %v1432
        %v1502 = vsub.f32 %v1490, %v1433
        %v1503 = vsub.f32 %v1491, %v1434
        %v1504 = vsub.f32 %v1490, %v1435
        %v1505 = vsub.f32 %v1491, %v1436
        %v1506 = vsub.f32 %v1490, %v1437
        %v1507 = vsub.f32 %v1491, %v1438
        %v1508 = vsub.f32 %v1490, %v1439
        %v1509 = vsub.f32 %v1491, %v1440
        %v1510 = vsub.f32 %v1490, %v1441
        %v1511 = vsub.f32 %v1491, %v1442
        %v1512 = vsub.f32 %v1490, %v1443
        %v1513 = vsub.f32 %v1491, %v1444
        %v1514 = vsub.f32 %v1490, %v1445
        %v1515 = vsub.f32 %v1491, %v1446
        %v1516 = vsub.f32 %v1490, %v1447
        %v1517 = vsub.f32 %v1491, %v1448
        %v1518 = vsub.f32 %v1490, %v1449
        %v1519 = vsub.f32 %v1491, %v1450
        %v1520 = vsub.f32 %v1490, %v1451
        %v1521 = vsub.f32 %v1491, %v1452
        %v1522 = vsub.f32 %v1490, %v1453
        %v1523 = vsub.f32 %v1491, %v1454
        %v1524 = vsub.f32 %v1490, %v1455
        %v1525 = vsub.f32 %v1491, %v1456
        %v1526 = vsub.f32 %v1490, %v1457
        %v1527 = vsub.f32 %v1491, %v1458
        %v1528 = vsub.f32 %v1490, %v1459
        %v1529 = vsub.f32 %v1491, %v1460
        %v1530 = vsub.f32 %v1490, %v1461
        %v1531 = vsub.f32 %v1491, %v1462
        %v1532 = vsub.f32 %v1490, %v1463
        %v1533 = vsub.f32 %v1491, %v1464
        %v1534 = vsub.f32 %v1490, %v1465
        %v1535 = vsub.f32 %v1491, %v1466
        %v1536 = vsub.f32 %v1490, %v1467
        %v1537 = vsub.f32 %v1491, %v1468
        %v1538 = vsub.f32 %v1490, %v1469
        %v1539 = vsub.f32 %v1491, %v1470
        %v1540 = vsub.f32 %v1490, %v1471
        %v1541 = vsub.f32 %v1491, %v1472
        %v1542 = vsub.f32 %v1490, %v1473
        %v1543 = vsub.f32 %v1491, %v1474
        %v1544 = vsub.f32 %v1490, %v1475
        %v1545 = vsub.f32 %v1491, %v1476
        %v1546 = vsub.f32 %v1490, %v1477
        %v1547 = vsub.f32 %v1491, %v1478
        %v1548 = vsub.f32 %v1490, %v1479
        %v1549 = vsub.f32 %v1491, %v1480
        %v1550 = vsub.f32 %v1490, %v1481
        %v1551 = vsub.f32 %v1491, %v1482
        %v1552 = vsub.f32 %v1490, %v1483
        %v1553 = vsub.f32 %v1491, %v1484
        %v1554 = vsub.f32 %v1490, %v1485
        %v1555 = vsub.f32 %v1491, %v1486
        %v1556 = vsub.f32 %v1490, %v1487
        %v1557 = vsub.f32 %v1491, %v1488
        %v1558 = vmul.f32 %v410, %v1361
        %v1559 = vmul.f32 %v523, %v1362
        %v1560 = vmul.f32 %v413, %v1363
        %v1561 = vmul.f32 %v526, %v1364
        %v1562 = vmul.f32 %v416, %v1365
        %v1563 = vmul.f32 %v529, %v1366
        %v1564 = vmul.f32 %v419, %v1367
        %v1565 = vmul.f32 %v532, %v1368
        %v1566 = vmul.f32 %v422, %v1369
        %v1567 = vmul.f32 %v535, %v1370
        %v1568 = vmul.f32 %v425, %v1371
        %v1569 = vmul.f32 %v538, %v1372
        %v1570 = vmul.f32 %v428, %v1373
        %v1571 = vmul.f32 %v541, %v1374
        %v1572 = vmul.f32 %v431, %v1375
        %v1573 = vmul.f32 %v544, %v1376
        %v1574 = vmul.f32 %v434, %v1377
        %v1575 = vmul.f32 %v547, %v1378
        %v1576 = vmul.f32 %v437, %v1379
        %v1577 = vmul.f32 %v550, %v1380
        %v1578 = vmul.f32 %v440, %v1381
        %v1579 = vmul.f32 %v553, %v1382
        %v1580 = vmul.f32 %v443, %v1383
        %v1581 = vmul.f32 %v556, %v1384
        %v1582 = vmul.f32 %v446, %v1385
        %v1583 = vmul.f32 %v559, %v1386
        %v1584 = vmul.f32 %v449, %v1387
        %v1585 = vmul.f32 %v562, %v1388
        %v1586 = vmul.f32 %v452, %v1389
        %v1587 = vmul.f32 %v565, %v1390
        %v1588 = vmul.f32 %v455, %v1391
        %v1589 = vmul.f32 %v568, %v1392
        %v1590 = vmul.f32 %v458, %v1393
        %v1591 = vmul.f32 %v571, %v1394
        %v1592 = vmul.f32 %v461, %v1395
        %v1593 = vmul.f32 %v574, %v1396
        %v1594 = vmul.f32 %v464, %v1397
        %v1595 = vmul.f32 %v577, %v1398
        %v1596 = vmul.f32 %v467, %v1399
        %v1597 = vmul.f32 %v580, %v1400
        %v1598 = vmul.f32 %v470, %v1401
        %v1599 = vmul.f32 %v583, %v1402
        %v1600 = vmul.f32 %v473, %v1403
        %v1601 = vmul.f32 %v586, %v1404
        %v1602 = vmul.f32 %v476, %v1405
        %v1603 = vmul.f32 %v589, %v1406
        %v1604 = vmul.f32 %v479, %v1407
        %v1605 = vmul.f32 %v592, %v1408
        %v1606 = vmul.f32 %v482, %v1409
        %v1607 = vmul.f32 %v595, %v1410
        %v1608 = vmul.f32 %v485, %v1411
        %v1609 = vmul.f32 %v598, %v1412
        %v1610 = vmul.f32 %v488, %v1413
        %v1611 = vmul.f32 %v601, %v1414
        %v1612 = vmul.f32 %v491, %v1415
        %v1613 = vmul.f32 %v604, %v1416
        %v1614 = vmul.f32 %v494, %v1417
        %v1615 = vmul.f32 %v607, %v1418
        %v1616 = vmul.f32 %v497, %v1419
        %v1617 = vmul.f32 %v610, %v1420
        %v1618 = vmul.f32 %v500, %v1421
        %v1619 = vmul.f32 %v613, %v1422
        %v1620 = vmul.f32 %v503, %v1423
        %v1621 = vmul.f32 %v616, %v1424
        %v1622 = vadd.f32 %v1558, %v1494
        %v1623 = vadd.f32 %v1559, %v1495
        %v1624 = vadd.f32 %v1560, %v1496
        %v1625 = vadd.f32 %v1561, %v1497
        %v1626 = vadd.f32 %v1562, %v1498
        %v1627 = vadd.f32 %v1563, %v1499
        %v1628 = vadd.f32 %v1564, %v1500
        %v1629 = vadd.f32 %v1565, %v1501
        %v1630 = vadd.f32 %v1566, %v1502
        %v1631 = vadd.f32 %v1567, %v1503
        %v1632 = vadd.f32 %v1568, %v1504
        %v1633 = vadd.f32 %v1569, %v1505
        %v1634 = vadd.f32 %v1570, %v1506
        %v1635 = vadd.f32 %v1571, %v1507
        %v1636 = vadd.f32 %v1572, %v1508
        %v1637 = vadd.f32 %v1573, %v1509
        %v1638 = vadd.f32 %v1574, %v1510
        %v1639 = vadd.f32 %v1575, %v1511
        %v1640 = vadd.f32 %v1576, %v1512
        %v1641 = vadd.f32 %v1577, %v1513
        %v1642 = vadd.f32 %v1578, %v1514
        %v1643 = vadd.f32 %v1579, %v1515
        %v1644 = vadd.f32 %v1580, %v1516
        %v1645 = vadd.f32 %v1581, %v1517
        %v1646 = vadd.f32 %v1582, %v1518
        %v1647 = vadd.f32 %v1583, %v1519
        %v1648 = vadd.f32 %v1584, %v1520
        %v1649 = vadd.f32 %v1585, %v1521
        %v1650 = vadd.f32 %v1586, %v1522
        %v1651 = vadd.f32 %v1587, %v1523
        %v1652 = vadd.f32 %v1588, %v1524
        %v1653 = vadd.f32 %v1589, %v1525
        %v1654 = vadd.f32 %v1590, %v1526
        %v1655 = vadd.f32 %v1591, %v1527
        %v1656 = vadd.f32 %v1592, %v1528
        %v1657 = vadd.f32 %v1593, %v1529
        %v1658 = vadd.f32 %v1594, %v1530
        %v1659 = vadd.f32 %v1595, %v1531
        %v1660 = vadd.f32 %v1596, %v1532
        %v1661 = vadd.f32 %v1597, %v1533
        %v1662 = vadd.f32 %v1598, %v1534
        %v1663 = vadd.f32 %v1599, %v1535
        %v1664 = vadd.f32 %v1600, %v1536
        %v1665 = vadd.f32 %v1601, %v1537
        %v1666 = vadd.f32 %v1602, %v1538
        %v1667 = vadd.f32 %v1603, %v1539
        %v1668 = vadd.f32 %v1604, %v1540
        %v1669 = vadd.f32 %v1605, %v1541
        %v1670 = vadd.f32 %v1606, %v1542
        %v1671 = vadd.f32 %v1607, %v1543
        %v1672 = vadd.f32 %v1608, %v1544
        %v1673 = vadd.f32 %v1609, %v1545
        %v1674 = vadd.f32 %v1610, %v1546
        %v1675 = vadd.f32 %v1611, %v1547
        %v1676 = vadd.f32 %v1612, %v1548
        %v1677 = vadd.f32 %v1613, %v1549
        %v1678 = vadd.f32 %v1614, %v1550
        %v1679 = vadd.f32 %v1615, %v1551
        %v1680 = vadd.f32 %v1616, %v1552
        %v1681 = vadd.f32 %v1617, %v1553
        %v1682 = vadd.f32 %v1618, %v1554
        %v1683 = vadd.f32 %v1619, %v1555
        %v1684 = vadd.f32 %v1620, %v1556
        %v1685 = vadd.f32 %v1621, %v1557
        %v1686 = vxor.u32 %v1622, 2147483648
        %v1687 = vxor.u32 %v1623, 2147483648
        %v1688 = vxor.u32 %v1624, 2147483648
        %v1689 = vxor.u32 %v1625, 2147483648
        %v1690 = vxor.u32 %v1626, 2147483648
        %v1691 = vxor.u32 %v1627, 2147483648
        %v1692 = vxor.u32 %v1628, 2147483648
        %v1693 = vxor.u32 %v1629, 2147483648
        %v1694 = vxor.u32 %v1630, 2147483648
        %v1695 = vxor.u32 %v1631, 2147483648
        %v1696 = vxor.u32 %v1632, 2147483648
        %v1697 = vxor.u32 %v1633, 2147483648
        %v1698 = vxor.u32 %v1634, 2147483648
        %v1699 = vxor.u32 %v1635, 2147483648
        %v1700 = vxor.u32 %v1636, 2147483648
        %v1701 = vxor.u32 %v1637, 2147483648
        %v1702 = vxor.u32 %v1638, 2147483648
        %v1703 = vxor.u32 %v1639, 2147483648
        %v1704 = vxor.u32 %v1640, 2147483648
        %v1705 = vxor.u32 %v1641, 2147483648
        %v1706 = vxor.u32 %v1642, 2147483648
        %v1707 = vxor.u32 %v1643, 2147483648
        %v1708 = vxor.u32 %v1644, 2147483648
        %v1709 = vxor.u32 %v1645, 2147483648
        %v1710 = vxor.u32 %v1646, 2147483648
        %v1711 = vxor.u32 %v1647, 2147483648
        %v1712 = vxor.u32 %v1648, 2147483648
        %v1713 = vxor.u32 %v1649, 2147483648
        %v1714 = vxor.u32 %v1650, 2147483648
        %v1715 = vxor.u32 %v1651, 2147483648
        %v1716 = vxor.u32 %v1652, 2147483648
        %v1717 = vxor.u32 %v1653, 2147483648
        %v1718 = vxor.u32 %v1654, 2147483648
        %v1719 = vxor.u32 %v1655, 2147483648
        %v1720 = vxor.u32 %v1656, 2147483648
        %v1721 = vxor.u32 %v1657, 2147483648
        %v1722 = vxor.u32 %v1658, 2147483648
        %v1723 = vxor.u32 %v1659, 2147483648
        %v1724 = vxor.u32 %v1660, 2147483648
        %v1725 = vxor.u32 %v1661, 2147483648
        %v1726 = vxor.u32 %v1662, 2147483648
        %v1727 = vxor.u32 %v1663, 2147483648
        %v1728 = vxor.u32 %v1664, 2147483648
        %v1729 = vxor.u32 %v1665, 2147483648
        %v1730 = vxor.u32 %v1666, 2147483648
        %v1731 = vxor.u32 %v1667, 2147483648
        %v1732 = vxor.u32 %v1668, 2147483648
        %v1733 = vxor.u32 %v1669, 2147483648
        %v1734 = vxor.u32 %v1670, 2147483648
        %v1735 = vxor.u32 %v1671, 2147483648
        %v1736 = vxor.u32 %v1672, 2147483648
        %v1737 = vxor.u32 %v1673, 2147483648
        %v1738 = vxor.u32 %v1674, 2147483648
        %v1739 = vxor.u32 %v1675, 2147483648
        %v1740 = vxor.u32 %v1676, 2147483648
        %v1741 = vxor.u32 %v1677, 2147483648
        %v1742 = vxor.u32 %v1678, 2147483648
        %v1743 = vxor.u32 %v1679, 2147483648
        %v1744 = vxor.u32 %v1680, 2147483648
        %v1745 = vxor.u32 %v1681, 2147483648
        %v1746 = vxor.u32 %v1682, 2147483648
        %v1747 = vxor.u32 %v1683, 2147483648
        %v1748 = vxor.u32 %v1684, 2147483648
        %v1749 = vxor.u32 %v1685, 2147483648
        %v1750 = vmul.f32 %v1686, 1.442695
        %v1751 = vpow.pop %v1750
        %v1752 = vmul.f32 %v1687, 1.442695
        %v1753 = vpow.pop %v1752
        %v1754 = vmul.f32 %v1688, 1.442695
        %v1755 = vpow.pop %v1754
        %v1756 = vmul.f32 %v1689, 1.442695
        %v1757 = vpow.pop %v1756
        %v1758 = vmul.f32 %v1690, 1.442695
        %v1759 = vpow.pop %v1758
        %v1760 = vmul.f32 %v1691, 1.442695
        %v1761 = vpow.pop %v1760
        %v1762 = vmul.f32 %v1692, 1.442695
        %v1763 = vpow.pop %v1762
        %v1764 = vmul.f32 %v1693, 1.442695
        %v1765 = vpow.pop %v1764
        %v1766 = vmul.f32 %v1694, 1.442695
        %v1767 = vpow.pop %v1766
        %v1768 = vmul.f32 %v1695, 1.442695
        %v1769 = vpow.pop %v1768
        %v1770 = vmul.f32 %v1696, 1.442695
        %v1771 = vpow.pop %v1770
        %v1772 = vmul.f32 %v1697, 1.442695
        %v1773 = vpow.pop %v1772
        %v1774 = vmul.f32 %v1698, 1.442695
        %v1775 = vpow.pop %v1774
        %v1776 = vmul.f32 %v1699, 1.442695
        %v1777 = vpow.pop %v1776
        %v1778 = vmul.f32 %v1700, 1.442695
        %v1779 = vpow.pop %v1778
        %v1780 = vmul.f32 %v1701, 1.442695
        %v1781 = vpow.pop %v1780
        %v1782 = vmul.f32 %v1702, 1.442695
        %v1783 = vpow.pop %v1782
        %v1784 = vmul.f32 %v1703, 1.442695
        %v1785 = vpow.pop %v1784
        %v1786 = vmul.f32 %v1704, 1.442695
        %v1787 = vpow.pop %v1786
        %v1788 = vmul.f32 %v1705, 1.442695
        %v1789 = vpow.pop %v1788
        %v1790 = vmul.f32 %v1706, 1.442695
        %v1791 = vpow.pop %v1790
        %v1792 = vmul.f32 %v1707, 1.442695
        %v1793 = vpow.pop %v1792
        %v1794 = vmul.f32 %v1708, 1.442695
        %v1795 = vpow.pop %v1794
        %v1796 = vmul.f32 %v1709, 1.442695
        %v1797 = vpow.pop %v1796
        %v1798 = vmul.f32 %v1710, 1.442695
        %v1799 = vpow.pop %v1798
        %v1800 = vmul.f32 %v1711, 1.442695
        %v1801 = vpow.pop %v1800
        %v1802 = vmul.f32 %v1712, 1.442695
        %v1803 = vpow.pop %v1802
        %v1804 = vmul.f32 %v1713, 1.442695
        %v1805 = vpow.pop %v1804
        %v1806 = vmul.f32 %v1714, 1.442695
        %v1807 = vpow.pop %v1806
        %v1808 = vmul.f32 %v1715, 1.442695
        %v1809 = vpow.pop %v1808
        %v1810 = vmul.f32 %v1716, 1.442695
        %v1811 = vpow.pop %v1810
        %v1812 = vmul.f32 %v1717, 1.442695
        %v1813 = vpow.pop %v1812
        %v1814 = vmul.f32 %v1718, 1.442695
        %v1815 = vpow.pop %v1814
        %v1816 = vmul.f32 %v1719, 1.442695
        %v1817 = vpow.pop %v1816
        %v1818 = vmul.f32 %v1720, 1.442695
        %v1819 = vpow.pop %v1818
        %v1820 = vmul.f32 %v1721, 1.442695
        %v1821 = vpow.pop %v1820
        %v1822 = vmul.f32 %v1722, 1.442695
        %v1823 = vpow.pop %v1822
        %v1824 = vmul.f32 %v1723, 1.442695
        %v1825 = vpow.pop %v1824
        %v1826 = vmul.f32 %v1724, 1.442695
        %v1827 = vpow.pop %v1826
        %v1828 = vmul.f32 %v1725, 1.442695
        %v1829 = vpow.pop %v1828
        %v1830 = vmul.f32 %v1726, 1.442695
        %v1831 = vpow.pop %v1830
        %v1832 = vmul.f32 %v1727, 1.442695
        %v1833 = vpow.pop %v1832
        %v1834 = vmul.f32 %v1728, 1.442695
        %v1835 = vpow.pop %v1834
        %v1836 = vmul.f32 %v1729, 1.442695
        %v1837 = vpow.pop %v1836
        %v1838 = vmul.f32 %v1730, 1.442695
        %v1839 = vpow.pop %v1838
        %v1840 = vmul.f32 %v1731, 1.442695
        %v1841 = vpow.pop %v1840
        %v1842 = vmul.f32 %v1732, 1.442695
        %v1843 = vpow.pop %v1842
        %v1844 = vmul.f32 %v1733, 1.442695
        %v1845 = vpow.pop %v1844
        %v1846 = vmul.f32 %v1734, 1.442695
        %v1847 = vpow.pop %v1846
        %v1848 = vmul.f32 %v1735, 1.442695
        %v1849 = vpow.pop %v1848
        %v1850 = vmul.f32 %v1736, 1.442695
        %v1851 = vpow.pop %v1850
        %v1852 = vmul.f32 %v1737, 1.442695
        %v1853 = vpow.pop %v1852
        %v1854 = vmul.f32 %v1738, 1.442695
        %v1855 = vpow.pop %v1854
        %v1856 = vmul.f32 %v1739, 1.442695
        %v1857 = vpow.pop %v1856
        %v1858 = vmul.f32 %v1740, 1.442695
        %v1859 = vpow.pop %v1858
        %v1860 = vmul.f32 %v1741, 1.442695
        %v1861 = vpow.pop %v1860
        %v1862 = vmul.f32 %v1742, 1.442695
        %v1863 = vpow.pop %v1862
        %v1864 = vmul.f32 %v1743, 1.442695
        %v1865 = vpow.pop %v1864
        %v1866 = vmul.f32 %v1744, 1.442695
        %v1867 = vpow.pop %v1866
        %v1868 = vmul.f32 %v1745, 1.442695
        %v1869 = vpow.pop %v1868
        %v1870 = vmul.f32 %v1746, 1.442695
        %v1871 = vpow.pop %v1870
        %v1872 = vmul.f32 %v1747, 1.442695
        %v1873 = vpow.pop %v1872
        %v1874 = vmul.f32 %v1748, 1.442695
        %v1875 = vpow.pop %v1874
        %v1876 = vmul.f32 %v1749, 1.442695
        %v1877 = vpow.pop %v1876
        %v1878 = vadd.f32 %v1751, 1.0
        %v1879 = vadd.f32 %v1753, 1.0
        %v1880 = vadd.f32 %v1755, 1.0
        %v1881 = vadd.f32 %v1757, 1.0
        %v1882 = vadd.f32 %v1759, 1.0
        %v1883 = vadd.f32 %v1761, 1.0
        %v1884 = vadd.f32 %v1763, 1.0
        %v1885 = vadd.f32 %v1765, 1.0
        %v1886 = vadd.f32 %v1767, 1.0
        %v1887 = vadd.f32 %v1769, 1.0
        %v1888 = vadd.f32 %v1771, 1.0
        %v1889 = vadd.f32 %v1773, 1.0
        %v1890 = vadd.f32 %v1775, 1.0
        %v1891 = vadd.f32 %v1777, 1.0
        %v1892 = vadd.f32 %v1779, 1.0
        %v1893 = vadd.f32 %v1781, 1.0
        %v1894 = vadd.f32 %v1783, 1.0
        %v1895 = vadd.f32 %v1785, 1.0
        %v1896 = vadd.f32 %v1787, 1.0
        %v1897 = vadd.f32 %v1789, 1.0
        %v1898 = vadd.f32 %v1791, 1.0
        %v1899 = vadd.f32 %v1793, 1.0
        %v1900 = vadd.f32 %v1795, 1.0
        %v1901 = vadd.f32 %v1797, 1.0
        %v1902 = vadd.f32 %v1799, 1.0
        %v1903 = vadd.f32 %v1801, 1.0
        %v1904 = vadd.f32 %v1803, 1.0
        %v1905 = vadd.f32 %v1805, 1.0
        %v1906 = vadd.f32 %v1807, 1.0
        %v1907 = vadd.f32 %v1809, 1.0
        %v1908 = vadd.f32 %v1811, 1.0
        %v1909 = vadd.f32 %v1813, 1.0
        %v1910 = vadd.f32 %v1815, 1.0
        %v1911 = vadd.f32 %v1817, 1.0
        %v1912 = vadd.f32 %v1819, 1.0
        %v1913 = vadd.f32 %v1821, 1.0
        %v1914 = vadd.f32 %v1823, 1.0
        %v1915 = vadd.f32 %v1825, 1.0
        %v1916 = vadd.f32 %v1827, 1.0
        %v1917 = vadd.f32 %v1829, 1.0
        %v1918 = vadd.f32 %v1831, 1.0
        %v1919 = vadd.f32 %v1833, 1.0
        %v1920 = vadd.f32 %v1835, 1.0
        %v1921 = vadd.f32 %v1837, 1.0
        %v1922 = vadd.f32 %v1839, 1.0
        %v1923 = vadd.f32 %v1841, 1.0
        %v1924 = vadd.f32 %v1843, 1.0
        %v1925 = vadd.f32 %v1845, 1.0
        %v1926 = vadd.f32 %v1847, 1.0
        %v1927 = vadd.f32 %v1849, 1.0
        %v1928 = vadd.f32 %v1851, 1.0
        %v1929 = vadd.f32 %v1853, 1.0
        %v1930 = vadd.f32 %v1855, 1.0
        %v1931 = vadd.f32 %v1857, 1.0
        %v1932 = vadd.f32 %v1859, 1.0
        %v1933 = vadd.f32 %v1861, 1.0
        %v1934 = vadd.f32 %v1863, 1.0
        %v1935 = vadd.f32 %v1865, 1.0
        %v1936 = vadd.f32 %v1867, 1.0
        %v1937 = vadd.f32 %v1869, 1.0
        %v1938 = vadd.f32 %v1871, 1.0
        %v1939 = vadd.f32 %v1873, 1.0
        %v1940 = vadd.f32 %v1875, 1.0
        %v1941 = vadd.f32 %v1877, 1.0
        %v1942 = vrcp.pop %v1878
        %v1943 = vmul.f32 %v1878, %v1942
        %v1944 = vsub.f32 1.0, %v1943
        %v1945 = vmul.f32 %v1942, %v1944
        %v1946 = vadd.f32 %v1942, %v1945
        %vm1947 = vweird.f32 %v1878
        %vm1948 = vweird.f32 %v1942
        %vm1949 = vmor %vm1947, %vm1948
        %v1950 = vsel %vm1949, %v1942, %v1946
        %v1951 = vand.u32 2147483647, %v1878
        %vm1952 = vcmp.eq.f32.partialorder %v1951, 8.507059e+37
        %v1953 = vand.u32 %v1878, 2147483648
        %v1954 = vor.u32 1.1754944e-38, %v1953
        %v1955 = vsel %vm1952, %v1954, %v1950
        %v1956 = vmul.f32 1.0, %v1955
        %v1957 = vrcp.pop %v1879
        %v1958 = vmul.f32 %v1879, %v1957
        %v1959 = vsub.f32 1.0, %v1958
        %v1960 = vmul.f32 %v1957, %v1959
        %v1961 = vadd.f32 %v1957, %v1960
        %vm1962 = vweird.f32 %v1879
        %vm1963 = vweird.f32 %v1957
        %vm1964 = vmor %vm1962, %vm1963
        %v1965 = vsel %vm1964, %v1957, %v1961
        %v1966 = vand.u32 2147483647, %v1879
        %vm1967 = vcmp.eq.f32.partialorder %v1966, 8.507059e+37
        %v1968 = vand.u32 %v1879, 2147483648
        %v1969 = vor.u32 1.1754944e-38, %v1968
        %v1970 = vsel %vm1967, %v1969, %v1965
        %v1971 = vmul.f32 1.0, %v1970
        %v1972 = vrcp.pop %v1880
        %v1973 = vmul.f32 %v1880, %v1972
        %v1974 = vsub.f32 1.0, %v1973
        %v1975 = vmul.f32 %v1972, %v1974
        %v1976 = vadd.f32 %v1972, %v1975
        %vm1977 = vweird.f32 %v1880
        %vm1978 = vweird.f32 %v1972
        %vm1979 = vmor %vm1977, %vm1978
        %v1980 = vsel %vm1979, %v1972, %v1976
        %v1981 = vand.u32 2147483647, %v1880
        %vm1982 = vcmp.eq.f32.partialorder %v1981, 8.507059e+37
        %v1983 = vand.u32 %v1880, 2147483648
        %v1984 = vor.u32 1.1754944e-38, %v1983
        %v1985 = vsel %vm1982, %v1984, %v1980
        %v1986 = vmul.f32 1.0, %v1985
        %v1987 = vrcp.pop %v1881
        %v1988 = vmul.f32 %v1881, %v1987
        %v1989 = vsub.f32 1.0, %v1988
        %v1990 = vmul.f32 %v1987, %v1989
        %v1991 = vadd.f32 %v1987, %v1990
        %vm1992 = vweird.f32 %v1881
        %vm1993 = vweird.f32 %v1987
        %vm1994 = vmor %vm1992, %vm1993
        %v1995 = vsel %vm1994, %v1987, %v1991
        %v1996 = vand.u32 2147483647, %v1881
        %vm1997 = vcmp.eq.f32.partialorder %v1996, 8.507059e+37
        %v1998 = vand.u32 %v1881, 2147483648
        %v1999 = vor.u32 1.1754944e-38, %v1998
        %v2000 = vsel %vm1997, %v1999, %v1995
        %v2001 = vmul.f32 1.0, %v2000
        %v2002 = vrcp.pop %v1882
        %v2003 = vmul.f32 %v1882, %v2002
        %v2004 = vsub.f32 1.0, %v2003
        %v2005 = vmul.f32 %v2002, %v2004
        %v2006 = vadd.f32 %v2002, %v2005
        %vm2007 = vweird.f32 %v1882
        %vm2008 = vweird.f32 %v2002
        %vm2009 = vmor %vm2007, %vm2008
        %v2010 = vsel %vm2009, %v2002, %v2006
        %v2011 = vand.u32 2147483647, %v1882
        %vm2012 = vcmp.eq.f32.partialorder %v2011, 8.507059e+37
        %v2013 = vand.u32 %v1882, 2147483648
        %v2014 = vor.u32 1.1754944e-38, %v2013
        %v2015 = vsel %vm2012, %v2014, %v2010
        %v2016 = vmul.f32 1.0, %v2015
        %v2017 = vrcp.pop %v1883
        %v2018 = vmul.f32 %v1883, %v2017
        %v2019 = vsub.f32 1.0, %v2018
        %v2020 = vmul.f32 %v2017, %v2019
        %v2021 = vadd.f32 %v2017, %v2020
        %vm2022 = vweird.f32 %v1883
        %vm2023 = vweird.f32 %v2017
        %vm2024 = vmor %vm2022, %vm2023
        %v2025 = vsel %vm2024, %v2017, %v2021
        %v2026 = vand.u32 2147483647, %v1883
        %vm2027 = vcmp.eq.f32.partialorder %v2026, 8.507059e+37
        %v2028 = vand.u32 %v1883, 2147483648
        %v2029 = vor.u32 1.1754944e-38, %v2028
        %v2030 = vsel %vm2027, %v2029, %v2025
        %v2031 = vmul.f32 1.0, %v2030
        %v2032 = vrcp.pop %v1884
        %v2033 = vmul.f32 %v1884, %v2032
        %v2034 = vsub.f32 1.0, %v2033
        %v2035 = vmul.f32 %v2032, %v2034
        %v2036 = vadd.f32 %v2032, %v2035
        %vm2037 = vweird.f32 %v1884
        %vm2038 = vweird.f32 %v2032
        %vm2039 = vmor %vm2037, %vm2038
        %v2040 = vsel %vm2039, %v2032, %v2036
        %v2041 = vand.u32 2147483647, %v1884
        %vm2042 = vcmp.eq.f32.partialorder %v2041, 8.507059e+37
        %v2043 = vand.u32 %v1884, 2147483648
        %v2044 = vor.u32 1.1754944e-38, %v2043
        %v2045 = vsel %vm2042, %v2044, %v2040
        %v2046 = vmul.f32 1.0, %v2045
        %v2047 = vrcp.pop %v1885
        %v2048 = vmul.f32 %v1885, %v2047
        %v2049 = vsub.f32 1.0, %v2048
        %v2050 = vmul.f32 %v2047, %v2049
        %v2051 = vadd.f32 %v2047, %v2050
        %vm2052 = vweird.f32 %v1885
        %vm2053 = vweird.f32 %v2047
        %vm2054 = vmor %vm2052, %vm2053
        %v2055 = vsel %vm2054, %v2047, %v2051
        %v2056 = vand.u32 2147483647, %v1885
        %vm2057 = vcmp.eq.f32.partialorder %v2056, 8.507059e+37
        %v2058 = vand.u32 %v1885, 2147483648
        %v2059 = vor.u32 1.1754944e-38, %v2058
        %v2060 = vsel %vm2057, %v2059, %v2055
        %v2061 = vmul.f32 1.0, %v2060
        %v2062 = vrcp.pop %v1886
        %v2063 = vmul.f32 %v1886, %v2062
        %v2064 = vsub.f32 1.0, %v2063
        %v2065 = vmul.f32 %v2062, %v2064
        %v2066 = vadd.f32 %v2062, %v2065
        %vm2067 = vweird.f32 %v1886
        %vm2068 = vweird.f32 %v2062
        %vm2069 = vmor %vm2067, %vm2068
        %v2070 = vsel %vm2069, %v2062, %v2066
        %v2071 = vand.u32 2147483647, %v1886
        %vm2072 = vcmp.eq.f32.partialorder %v2071, 8.507059e+37
        %v2073 = vand.u32 %v1886, 2147483648
        %v2074 = vor.u32 1.1754944e-38, %v2073
        %v2075 = vsel %vm2072, %v2074, %v2070
        %v2076 = vmul.f32 1.0, %v2075
        %v2077 = vrcp.pop %v1887
        %v2078 = vmul.f32 %v1887, %v2077
        %v2079 = vsub.f32 1.0, %v2078
        %v2080 = vmul.f32 %v2077, %v2079
        %v2081 = vadd.f32 %v2077, %v2080
        %vm2082 = vweird.f32 %v1887
        %vm2083 = vweird.f32 %v2077
        %vm2084 = vmor %vm2082, %vm2083
        %v2085 = vsel %vm2084, %v2077, %v2081
        %v2086 = vand.u32 2147483647, %v1887
        %vm2087 = vcmp.eq.f32.partialorder %v2086, 8.507059e+37
        %v2088 = vand.u32 %v1887, 2147483648
        %v2089 = vor.u32 1.1754944e-38, %v2088
        %v2090 = vsel %vm2087, %v2089, %v2085
        %v2091 = vmul.f32 1.0, %v2090
        %v2092 = vrcp.pop %v1888
        %v2093 = vmul.f32 %v1888, %v2092
        %v2094 = vsub.f32 1.0, %v2093
        %v2095 = vmul.f32 %v2092, %v2094
        %v2096 = vadd.f32 %v2092, %v2095
        %vm2097 = vweird.f32 %v1888
        %vm2098 = vweird.f32 %v2092
        %vm2099 = vmor %vm2097, %vm2098
        %v2100 = vsel %vm2099, %v2092, %v2096
        %v2101 = vand.u32 2147483647, %v1888
        %vm2102 = vcmp.eq.f32.partialorder %v2101, 8.507059e+37
        %v2103 = vand.u32 %v1888, 2147483648
        %v2104 = vor.u32 1.1754944e-38, %v2103
        %v2105 = vsel %vm2102, %v2104, %v2100
        %v2106 = vmul.f32 1.0, %v2105
        %v2107 = vrcp.pop %v1889
        %v2108 = vmul.f32 %v1889, %v2107
        %v2109 = vsub.f32 1.0, %v2108
        %v2110 = vmul.f32 %v2107, %v2109
        %v2111 = vadd.f32 %v2107, %v2110
        %vm2112 = vweird.f32 %v1889
        %vm2113 = vweird.f32 %v2107
        %vm2114 = vmor %vm2112, %vm2113
        %v2115 = vsel %vm2114, %v2107, %v2111
        %v2116 = vand.u32 2147483647, %v1889
        %vm2117 = vcmp.eq.f32.partialorder %v2116, 8.507059e+37
        %v2118 = vand.u32 %v1889, 2147483648
        %v2119 = vor.u32 1.1754944e-38, %v2118
        %v2120 = vsel %vm2117, %v2119, %v2115
        %v2121 = vmul.f32 1.0, %v2120
        %v2122 = vrcp.pop %v1890
        %v2123 = vmul.f32 %v1890, %v2122
        %v2124 = vsub.f32 1.0, %v2123
        %v2125 = vmul.f32 %v2122, %v2124
        %v2126 = vadd.f32 %v2122, %v2125
        %vm2127 = vweird.f32 %v1890
        %vm2128 = vweird.f32 %v2122
        %vm2129 = vmor %vm2127, %vm2128
        %v2130 = vsel %vm2129, %v2122, %v2126
        %v2131 = vand.u32 2147483647, %v1890
        %vm2132 = vcmp.eq.f32.partialorder %v2131, 8.507059e+37
        %v2133 = vand.u32 %v1890, 2147483648
        %v2134 = vor.u32 1.1754944e-38, %v2133
        %v2135 = vsel %vm2132, %v2134, %v2130
        %v2136 = vmul.f32 1.0, %v2135
        %v2137 = vrcp.pop %v1891
        %v2138 = vmul.f32 %v1891, %v2137
        %v2139 = vsub.f32 1.0, %v2138
        %v2140 = vmul.f32 %v2137, %v2139
        %v2141 = vadd.f32 %v2137, %v2140
        %vm2142 = vweird.f32 %v1891
        %vm2143 = vweird.f32 %v2137
        %vm2144 = vmor %vm2142, %vm2143
        %v2145 = vsel %vm2144, %v2137, %v2141
        %v2146 = vand.u32 2147483647, %v1891
        %vm2147 = vcmp.eq.f32.partialorder %v2146, 8.507059e+37
        %v2148 = vand.u32 %v1891, 2147483648
        %v2149 = vor.u32 1.1754944e-38, %v2148
        %v2150 = vsel %vm2147, %v2149, %v2145
        %v2151 = vmul.f32 1.0, %v2150
        %v2152 = vrcp.pop %v1892
        %v2153 = vmul.f32 %v1892, %v2152
        %v2154 = vsub.f32 1.0, %v2153
        %v2155 = vmul.f32 %v2152, %v2154
        %v2156 = vadd.f32 %v2152, %v2155
        %vm2157 = vweird.f32 %v1892
        %vm2158 = vweird.f32 %v2152
        %vm2159 = vmor %vm2157, %vm2158
        %v2160 = vsel %vm2159, %v2152, %v2156
        %v2161 = vand.u32 2147483647, %v1892
        %vm2162 = vcmp.eq.f32.partialorder %v2161, 8.507059e+37
        %v2163 = vand.u32 %v1892, 2147483648
        %v2164 = vor.u32 1.1754944e-38, %v2163
        %v2165 = vsel %vm2162, %v2164, %v2160
        %v2166 = vmul.f32 1.0, %v2165
        %v2167 = vrcp.pop %v1893
        %v2168 = vmul.f32 %v1893, %v2167
        %v2169 = vsub.f32 1.0, %v2168
        %v2170 = vmul.f32 %v2167, %v2169
        %v2171 = vadd.f32 %v2167, %v2170
        %vm2172 = vweird.f32 %v1893
        %vm2173 = vweird.f32 %v2167
        %vm2174 = vmor %vm2172, %vm2173
        %v2175 = vsel %vm2174, %v2167, %v2171
        %v2176 = vand.u32 2147483647, %v1893
        %vm2177 = vcmp.eq.f32.partialorder %v2176, 8.507059e+37
        %v2178 = vand.u32 %v1893, 2147483648
        %v2179 = vor.u32 1.1754944e-38, %v2178
        %v2180 = vsel %vm2177, %v2179, %v2175
        %v2181 = vmul.f32 1.0, %v2180
        %v2182 = vrcp.pop %v1894
        %v2183 = vmul.f32 %v1894, %v2182
        %v2184 = vsub.f32 1.0, %v2183
        %v2185 = vmul.f32 %v2182, %v2184
        %v2186 = vadd.f32 %v2182, %v2185
        %vm2187 = vweird.f32 %v1894
        %vm2188 = vweird.f32 %v2182
        %vm2189 = vmor %vm2187, %vm2188
        %v2190 = vsel %vm2189, %v2182, %v2186
        %v2191 = vand.u32 2147483647, %v1894
        %vm2192 = vcmp.eq.f32.partialorder %v2191, 8.507059e+37
        %v2193 = vand.u32 %v1894, 2147483648
        %v2194 = vor.u32 1.1754944e-38, %v2193
        %v2195 = vsel %vm2192, %v2194, %v2190
        %v2196 = vmul.f32 1.0, %v2195
        %v2197 = vrcp.pop %v1895
        %v2198 = vmul.f32 %v1895, %v2197
        %v2199 = vsub.f32 1.0, %v2198
        %v2200 = vmul.f32 %v2197, %v2199
        %v2201 = vadd.f32 %v2197, %v2200
        %vm2202 = vweird.f32 %v1895
        %vm2203 = vweird.f32 %v2197
        %vm2204 = vmor %vm2202, %vm2203
        %v2205 = vsel %vm2204, %v2197, %v2201
        %v2206 = vand.u32 2147483647, %v1895
        %vm2207 = vcmp.eq.f32.partialorder %v2206, 8.507059e+37
        %v2208 = vand.u32 %v1895, 2147483648
        %v2209 = vor.u32 1.1754944e-38, %v2208
        %v2210 = vsel %vm2207, %v2209, %v2205
        %v2211 = vmul.f32 1.0, %v2210
        %v2212 = vrcp.pop %v1896
        %v2213 = vmul.f32 %v1896, %v2212
        %v2214 = vsub.f32 1.0, %v2213
        %v2215 = vmul.f32 %v2212, %v2214
        %v2216 = vadd.f32 %v2212, %v2215
        %vm2217 = vweird.f32 %v1896
        %vm2218 = vweird.f32 %v2212
        %vm2219 = vmor %vm2217, %vm2218
        %v2220 = vsel %vm2219, %v2212, %v2216
        %v2221 = vand.u32 2147483647, %v1896
        %vm2222 = vcmp.eq.f32.partialorder %v2221, 8.507059e+37
        %v2223 = vand.u32 %v1896, 2147483648
        %v2224 = vor.u32 1.1754944e-38, %v2223
        %v2225 = vsel %vm2222, %v2224, %v2220
        %v2226 = vmul.f32 1.0, %v2225
        %v2227 = vrcp.pop %v1897
        %v2228 = vmul.f32 %v1897, %v2227
        %v2229 = vsub.f32 1.0, %v2228
        %v2230 = vmul.f32 %v2227, %v2229
        %v2231 = vadd.f32 %v2227, %v2230
        %vm2232 = vweird.f32 %v1897
        %vm2233 = vweird.f32 %v2227
        %vm2234 = vmor %vm2232, %vm2233
        %v2235 = vsel %vm2234, %v2227, %v2231
        %v2236 = vand.u32 2147483647, %v1897
        %vm2237 = vcmp.eq.f32.partialorder %v2236, 8.507059e+37
        %v2238 = vand.u32 %v1897, 2147483648
        %v2239 = vor.u32 1.1754944e-38, %v2238
        %v2240 = vsel %vm2237, %v2239, %v2235
        %v2241 = vmul.f32 1.0, %v2240
        %v2242 = vrcp.pop %v1898
        %v2243 = vmul.f32 %v1898, %v2242
        %v2244 = vsub.f32 1.0, %v2243
        %v2245 = vmul.f32 %v2242, %v2244
        %v2246 = vadd.f32 %v2242, %v2245
        %vm2247 = vweird.f32 %v1898
        %vm2248 = vweird.f32 %v2242
        %vm2249 = vmor %vm2247, %vm2248
        %v2250 = vsel %vm2249, %v2242, %v2246
        %v2251 = vand.u32 2147483647, %v1898
        %vm2252 = vcmp.eq.f32.partialorder %v2251, 8.507059e+37
        %v2253 = vand.u32 %v1898, 2147483648
        %v2254 = vor.u32 1.1754944e-38, %v2253
        %v2255 = vsel %vm2252, %v2254, %v2250
        %v2256 = vmul.f32 1.0, %v2255
        %v2257 = vrcp.pop %v1899
        %v2258 = vmul.f32 %v1899, %v2257
        %v2259 = vsub.f32 1.0, %v2258
        %v2260 = vmul.f32 %v2257, %v2259
        %v2261 = vadd.f32 %v2257, %v2260
        %vm2262 = vweird.f32 %v1899
        %vm2263 = vweird.f32 %v2257
        %vm2264 = vmor %vm2262, %vm2263
        %v2265 = vsel %vm2264, %v2257, %v2261
        %v2266 = vand.u32 2147483647, %v1899
        %vm2267 = vcmp.eq.f32.partialorder %v2266, 8.507059e+37
        %v2268 = vand.u32 %v1899, 2147483648
        %v2269 = vor.u32 1.1754944e-38, %v2268
        %v2270 = vsel %vm2267, %v2269, %v2265
        %v2271 = vmul.f32 1.0, %v2270
        %v2272 = vrcp.pop %v1900
        %v2273 = vmul.f32 %v1900, %v2272
        %v2274 = vsub.f32 1.0, %v2273
        %v2275 = vmul.f32 %v2272, %v2274
        %v2276 = vadd.f32 %v2272, %v2275
        %vm2277 = vweird.f32 %v1900
        %vm2278 = vweird.f32 %v2272
        %vm2279 = vmor %vm2277, %vm2278
        %v2280 = vsel %vm2279, %v2272, %v2276
        %v2281 = vand.u32 2147483647, %v1900
        %vm2282 = vcmp.eq.f32.partialorder %v2281, 8.507059e+37
        %v2283 = vand.u32 %v1900, 2147483648
        %v2284 = vor.u32 1.1754944e-38, %v2283
        %v2285 = vsel %vm2282, %v2284, %v2280
        %v2286 = vmul.f32 1.0, %v2285
        %v2287 = vrcp.pop %v1901
        %v2288 = vmul.f32 %v1901, %v2287
        %v2289 = vsub.f32 1.0, %v2288
        %v2290 = vmul.f32 %v2287, %v2289
        %v2291 = vadd.f32 %v2287, %v2290
        %vm2292 = vweird.f32 %v1901
        %vm2293 = vweird.f32 %v2287
        %vm2294 = vmor %vm2292, %vm2293
        %v2295 = vsel %vm2294, %v2287, %v2291
        %v2296 = vand.u32 2147483647, %v1901
        %vm2297 = vcmp.eq.f32.partialorder %v2296, 8.507059e+37
        %v2298 = vand.u32 %v1901, 2147483648
        %v2299 = vor.u32 1.1754944e-38, %v2298
        %v2300 = vsel %vm2297, %v2299, %v2295
        %v2301 = vmul.f32 1.0, %v2300
        %v2302 = vrcp.pop %v1902
        %v2303 = vmul.f32 %v1902, %v2302
        %v2304 = vsub.f32 1.0, %v2303
        %v2305 = vmul.f32 %v2302, %v2304
        %v2306 = vadd.f32 %v2302, %v2305
        %vm2307 = vweird.f32 %v1902
        %vm2308 = vweird.f32 %v2302
        %vm2309 = vmor %vm2307, %vm2308
        %v2310 = vsel %vm2309, %v2302, %v2306
        %v2311 = vand.u32 2147483647, %v1902
        %vm2312 = vcmp.eq.f32.partialorder %v2311, 8.507059e+37
        %v2313 = vand.u32 %v1902, 2147483648
        %v2314 = vor.u32 1.1754944e-38, %v2313
        %v2315 = vsel %vm2312, %v2314, %v2310
        %v2316 = vmul.f32 1.0, %v2315
        %v2317 = vrcp.pop %v1903
        %v2318 = vmul.f32 %v1903, %v2317
        %v2319 = vsub.f32 1.0, %v2318
        %v2320 = vmul.f32 %v2317, %v2319
        %v2321 = vadd.f32 %v2317, %v2320
        %vm2322 = vweird.f32 %v1903
        %vm2323 = vweird.f32 %v2317
        %vm2324 = vmor %vm2322, %vm2323
        %v2325 = vsel %vm2324, %v2317, %v2321
        %v2326 = vand.u32 2147483647, %v1903
        %vm2327 = vcmp.eq.f32.partialorder %v2326, 8.507059e+37
        %v2328 = vand.u32 %v1903, 2147483648
        %v2329 = vor.u32 1.1754944e-38, %v2328
        %v2330 = vsel %vm2327, %v2329, %v2325
        %v2331 = vmul.f32 1.0, %v2330
        %v2332 = vrcp.pop %v1904
        %v2333 = vmul.f32 %v1904, %v2332
        %v2334 = vsub.f32 1.0, %v2333
        %v2335 = vmul.f32 %v2332, %v2334
        %v2336 = vadd.f32 %v2332, %v2335
        %vm2337 = vweird.f32 %v1904
        %vm2338 = vweird.f32 %v2332
        %vm2339 = vmor %vm2337, %vm2338
        %v2340 = vsel %vm2339, %v2332, %v2336
        %v2341 = vand.u32 2147483647, %v1904
        %vm2342 = vcmp.eq.f32.partialorder %v2341, 8.507059e+37
        %v2343 = vand.u32 %v1904, 2147483648
        %v2344 = vor.u32 1.1754944e-38, %v2343
        %v2345 = vsel %vm2342, %v2344, %v2340
        %v2346 = vmul.f32 1.0, %v2345
        %v2347 = vrcp.pop %v1905
        %v2348 = vmul.f32 %v1905, %v2347
        %v2349 = vsub.f32 1.0, %v2348
        %v2350 = vmul.f32 %v2347, %v2349
        %v2351 = vadd.f32 %v2347, %v2350
        %vm2352 = vweird.f32 %v1905
        %vm2353 = vweird.f32 %v2347
        %vm2354 = vmor %vm2352, %vm2353
        %v2355 = vsel %vm2354, %v2347, %v2351
        %v2356 = vand.u32 2147483647, %v1905
        %vm2357 = vcmp.eq.f32.partialorder %v2356, 8.507059e+37
        %v2358 = vand.u32 %v1905, 2147483648
        %v2359 = vor.u32 1.1754944e-38, %v2358
        %v2360 = vsel %vm2357, %v2359, %v2355
        %v2361 = vmul.f32 1.0, %v2360
        %v2362 = vrcp.pop %v1906
        %v2363 = vmul.f32 %v1906, %v2362
        %v2364 = vsub.f32 1.0, %v2363
        %v2365 = vmul.f32 %v2362, %v2364
        %v2366 = vadd.f32 %v2362, %v2365
        %vm2367 = vweird.f32 %v1906
        %vm2368 = vweird.f32 %v2362
        %vm2369 = vmor %vm2367, %vm2368
        %v2370 = vsel %vm2369, %v2362, %v2366
        %v2371 = vand.u32 2147483647, %v1906
        %vm2372 = vcmp.eq.f32.partialorder %v2371, 8.507059e+37
        %v2373 = vand.u32 %v1906, 2147483648
        %v2374 = vor.u32 1.1754944e-38, %v2373
        %v2375 = vsel %vm2372, %v2374, %v2370
        %v2376 = vmul.f32 1.0, %v2375
        %v2377 = vrcp.pop %v1907
        %v2378 = vmul.f32 %v1907, %v2377
        %v2379 = vsub.f32 1.0, %v2378
        %v2380 = vmul.f32 %v2377, %v2379
        %v2381 = vadd.f32 %v2377, %v2380
        %vm2382 = vweird.f32 %v1907
        %vm2383 = vweird.f32 %v2377
        %vm2384 = vmor %vm2382, %vm2383
        %v2385 = vsel %vm2384, %v2377, %v2381
        %v2386 = vand.u32 2147483647, %v1907
        %vm2387 = vcmp.eq.f32.partialorder %v2386, 8.507059e+37
        %v2388 = vand.u32 %v1907, 2147483648
        %v2389 = vor.u32 1.1754944e-38, %v2388
        %v2390 = vsel %vm2387, %v2389, %v2385
        %v2391 = vmul.f32 1.0, %v2390
        %v2392 = vrcp.pop %v1908
        %v2393 = vmul.f32 %v1908, %v2392
        %v2394 = vsub.f32 1.0, %v2393
        %v2395 = vmul.f32 %v2392, %v2394
        %v2396 = vadd.f32 %v2392, %v2395
        %vm2397 = vweird.f32 %v1908
        %vm2398 = vweird.f32 %v2392
        %vm2399 = vmor %vm2397, %vm2398
        %v2400 = vsel %vm2399, %v2392, %v2396
        %v2401 = vand.u32 2147483647, %v1908
        %vm2402 = vcmp.eq.f32.partialorder %v2401, 8.507059e+37
        %v2403 = vand.u32 %v1908, 2147483648
        %v2404 = vor.u32 1.1754944e-38, %v2403
        %v2405 = vsel %vm2402, %v2404, %v2400
        %v2406 = vmul.f32 1.0, %v2405
        %v2407 = vrcp.pop %v1909
        %v2408 = vmul.f32 %v1909, %v2407
        %v2409 = vsub.f32 1.0, %v2408
        %v2410 = vmul.f32 %v2407, %v2409
        %v2411 = vadd.f32 %v2407, %v2410
        %vm2412 = vweird.f32 %v1909
        %vm2413 = vweird.f32 %v2407
        %vm2414 = vmor %vm2412, %vm2413
        %v2415 = vsel %vm2414, %v2407, %v2411
        %v2416 = vand.u32 2147483647, %v1909
        %vm2417 = vcmp.eq.f32.partialorder %v2416, 8.507059e+37
        %v2418 = vand.u32 %v1909, 2147483648
        %v2419 = vor.u32 1.1754944e-38, %v2418
        %v2420 = vsel %vm2417, %v2419, %v2415
        %v2421 = vmul.f32 1.0, %v2420
        %v2422 = vrcp.pop %v1910
        %v2423 = vmul.f32 %v1910, %v2422
        %v2424 = vsub.f32 1.0, %v2423
        %v2425 = vmul.f32 %v2422, %v2424
        %v2426 = vadd.f32 %v2422, %v2425
        %vm2427 = vweird.f32 %v1910
        %vm2428 = vweird.f32 %v2422
        %vm2429 = vmor %vm2427, %vm2428
        %v2430 = vsel %vm2429, %v2422, %v2426
        %v2431 = vand.u32 2147483647, %v1910
        %vm2432 = vcmp.eq.f32.partialorder %v2431, 8.507059e+37
        %v2433 = vand.u32 %v1910, 2147483648
        %v2434 = vor.u32 1.1754944e-38, %v2433
        %v2435 = vsel %vm2432, %v2434, %v2430
        %v2436 = vmul.f32 1.0, %v2435
        %v2437 = vrcp.pop %v1911
        %v2438 = vmul.f32 %v1911, %v2437
        %v2439 = vsub.f32 1.0, %v2438
        %v2440 = vmul.f32 %v2437, %v2439
        %v2441 = vadd.f32 %v2437, %v2440
        %vm2442 = vweird.f32 %v1911
        %vm2443 = vweird.f32 %v2437
        %vm2444 = vmor %vm2442, %vm2443
        %v2445 = vsel %vm2444, %v2437, %v2441
        %v2446 = vand.u32 2147483647, %v1911
        %vm2447 = vcmp.eq.f32.partialorder %v2446, 8.507059e+37
        %v2448 = vand.u32 %v1911, 2147483648
        %v2449 = vor.u32 1.1754944e-38, %v2448
        %v2450 = vsel %vm2447, %v2449, %v2445
        %v2451 = vmul.f32 1.0, %v2450
        %v2452 = vrcp.pop %v1912
        %v2453 = vmul.f32 %v1912, %v2452
        %v2454 = vsub.f32 1.0, %v2453
        %v2455 = vmul.f32 %v2452, %v2454
        %v2456 = vadd.f32 %v2452, %v2455
        %vm2457 = vweird.f32 %v1912
        %vm2458 = vweird.f32 %v2452
        %vm2459 = vmor %vm2457, %vm2458
        %v2460 = vsel %vm2459, %v2452, %v2456
        %v2461 = vand.u32 2147483647, %v1912
        %vm2462 = vcmp.eq.f32.partialorder %v2461, 8.507059e+37
        %v2463 = vand.u32 %v1912, 2147483648
        %v2464 = vor.u32 1.1754944e-38, %v2463
        %v2465 = vsel %vm2462, %v2464, %v2460
        %v2466 = vmul.f32 1.0, %v2465
        %v2467 = vrcp.pop %v1913
        %v2468 = vmul.f32 %v1913, %v2467
        %v2469 = vsub.f32 1.0, %v2468
        %v2470 = vmul.f32 %v2467, %v2469
        %v2471 = vadd.f32 %v2467, %v2470
        %vm2472 = vweird.f32 %v1913
        %vm2473 = vweird.f32 %v2467
        %vm2474 = vmor %vm2472, %vm2473
        %v2475 = vsel %vm2474, %v2467, %v2471
        %v2476 = vand.u32 2147483647, %v1913
        %vm2477 = vcmp.eq.f32.partialorder %v2476, 8.507059e+37
        %v2478 = vand.u32 %v1913, 2147483648
        %v2479 = vor.u32 1.1754944e-38, %v2478
        %v2480 = vsel %vm2477, %v2479, %v2475
        %v2481 = vmul.f32 1.0, %v2480
        %v2482 = vrcp.pop %v1914
        %v2483 = vmul.f32 %v1914, %v2482
        %v2484 = vsub.f32 1.0, %v2483
        %v2485 = vmul.f32 %v2482, %v2484
        %v2486 = vadd.f32 %v2482, %v2485
        %vm2487 = vweird.f32 %v1914
        %vm2488 = vweird.f32 %v2482
        %vm2489 = vmor %vm2487, %vm2488
        %v2490 = vsel %vm2489, %v2482, %v2486
        %v2491 = vand.u32 2147483647, %v1914
        %vm2492 = vcmp.eq.f32.partialorder %v2491, 8.507059e+37
        %v2493 = vand.u32 %v1914, 2147483648
        %v2494 = vor.u32 1.1754944e-38, %v2493
        %v2495 = vsel %vm2492, %v2494, %v2490
        %v2496 = vmul.f32 1.0, %v2495
        %v2497 = vrcp.pop %v1915
        %v2498 = vmul.f32 %v1915, %v2497
        %v2499 = vsub.f32 1.0, %v2498
        %v2500 = vmul.f32 %v2497, %v2499
        %v2501 = vadd.f32 %v2497, %v2500
        %vm2502 = vweird.f32 %v1915
        %vm2503 = vweird.f32 %v2497
        %vm2504 = vmor %vm2502, %vm2503
        %v2505 = vsel %vm2504, %v2497, %v2501
        %v2506 = vand.u32 2147483647, %v1915
        %vm2507 = vcmp.eq.f32.partialorder %v2506, 8.507059e+37
        %v2508 = vand.u32 %v1915, 2147483648
        %v2509 = vor.u32 1.1754944e-38, %v2508
        %v2510 = vsel %vm2507, %v2509, %v2505
        %v2511 = vmul.f32 1.0, %v2510
        %v2512 = vrcp.pop %v1916
        %v2513 = vmul.f32 %v1916, %v2512
        %v2514 = vsub.f32 1.0, %v2513
        %v2515 = vmul.f32 %v2512, %v2514
        %v2516 = vadd.f32 %v2512, %v2515
        %vm2517 = vweird.f32 %v1916
        %vm2518 = vweird.f32 %v2512
        %vm2519 = vmor %vm2517, %vm2518
        %v2520 = vsel %vm2519, %v2512, %v2516
        %v2521 = vand.u32 2147483647, %v1916
        %vm2522 = vcmp.eq.f32.partialorder %v2521, 8.507059e+37
        %v2523 = vand.u32 %v1916, 2147483648
        %v2524 = vor.u32 1.1754944e-38, %v2523
        %v2525 = vsel %vm2522, %v2524, %v2520
        %v2526 = vmul.f32 1.0, %v2525
        %v2527 = vrcp.pop %v1917
        %v2528 = vmul.f32 %v1917, %v2527
        %v2529 = vsub.f32 1.0, %v2528
        %v2530 = vmul.f32 %v2527, %v2529
        %v2531 = vadd.f32 %v2527, %v2530
        %vm2532 = vweird.f32 %v1917
        %vm2533 = vweird.f32 %v2527
        %vm2534 = vmor %vm2532, %vm2533
        %v2535 = vsel %vm2534, %v2527, %v2531
        %v2536 = vand.u32 2147483647, %v1917
        %vm2537 = vcmp.eq.f32.partialorder %v2536, 8.507059e+37
        %v2538 = vand.u32 %v1917, 2147483648
        %v2539 = vor.u32 1.1754944e-38, %v2538
        %v2540 = vsel %vm2537, %v2539, %v2535
        %v2541 = vmul.f32 1.0, %v2540
        %v2542 = vrcp.pop %v1918
        %v2543 = vmul.f32 %v1918, %v2542
        %v2544 = vsub.f32 1.0, %v2543
        %v2545 = vmul.f32 %v2542, %v2544
        %v2546 = vadd.f32 %v2542, %v2545
        %vm2547 = vweird.f32 %v1918
        %vm2548 = vweird.f32 %v2542
        %vm2549 = vmor %vm2547, %vm2548
        %v2550 = vsel %vm2549, %v2542, %v2546
        %v2551 = vand.u32 2147483647, %v1918
        %vm2552 = vcmp.eq.f32.partialorder %v2551, 8.507059e+37
        %v2553 = vand.u32 %v1918, 2147483648
        %v2554 = vor.u32 1.1754944e-38, %v2553
        %v2555 = vsel %vm2552, %v2554, %v2550
        %v2556 = vmul.f32 1.0, %v2555
        %v2557 = vrcp.pop %v1919
        %v2558 = vmul.f32 %v1919, %v2557
        %v2559 = vsub.f32 1.0, %v2558
        %v2560 = vmul.f32 %v2557, %v2559
        %v2561 = vadd.f32 %v2557, %v2560
        %vm2562 = vweird.f32 %v1919
        %vm2563 = vweird.f32 %v2557
        %vm2564 = vmor %vm2562, %vm2563
        %v2565 = vsel %vm2564, %v2557, %v2561
        %v2566 = vand.u32 2147483647, %v1919
        %vm2567 = vcmp.eq.f32.partialorder %v2566, 8.507059e+37
        %v2568 = vand.u32 %v1919, 2147483648
        %v2569 = vor.u32 1.1754944e-38, %v2568
        %v2570 = vsel %vm2567, %v2569, %v2565
        %v2571 = vmul.f32 1.0, %v2570
        %v2572 = vrcp.pop %v1920
        %v2573 = vmul.f32 %v1920, %v2572
        %v2574 = vsub.f32 1.0, %v2573
        %v2575 = vmul.f32 %v2572, %v2574
        %v2576 = vadd.f32 %v2572, %v2575
        %vm2577 = vweird.f32 %v1920
        %vm2578 = vweird.f32 %v2572
        %vm2579 = vmor %vm2577, %vm2578
        %v2580 = vsel %vm2579, %v2572, %v2576
        %v2581 = vand.u32 2147483647, %v1920
        %vm2582 = vcmp.eq.f32.partialorder %v2581, 8.507059e+37
        %v2583 = vand.u32 %v1920, 2147483648
        %v2584 = vor.u32 1.1754944e-38, %v2583
        %v2585 = vsel %vm2582, %v2584, %v2580
        %v2586 = vmul.f32 1.0, %v2585
        %v2587 = vrcp.pop %v1921
        %v2588 = vmul.f32 %v1921, %v2587
        %v2589 = vsub.f32 1.0, %v2588
        %v2590 = vmul.f32 %v2587, %v2589
        %v2591 = vadd.f32 %v2587, %v2590
        %vm2592 = vweird.f32 %v1921
        %vm2593 = vweird.f32 %v2587
        %vm2594 = vmor %vm2592, %vm2593
        %v2595 = vsel %vm2594, %v2587, %v2591
        %v2596 = vand.u32 2147483647, %v1921
        %vm2597 = vcmp.eq.f32.partialorder %v2596, 8.507059e+37
        %v2598 = vand.u32 %v1921, 2147483648
        %v2599 = vor.u32 1.1754944e-38, %v2598
        %v2600 = vsel %vm2597, %v2599, %v2595
        %v2601 = vmul.f32 1.0, %v2600
        %v2602 = vrcp.pop %v1922
        %v2603 = vmul.f32 %v1922, %v2602
        %v2604 = vsub.f32 1.0, %v2603
        %v2605 = vmul.f32 %v2602, %v2604
        %v2606 = vadd.f32 %v2602, %v2605
        %vm2607 = vweird.f32 %v1922
        %vm2608 = vweird.f32 %v2602
        %vm2609 = vmor %vm2607, %vm2608
        %v2610 = vsel %vm2609, %v2602, %v2606
        %v2611 = vand.u32 2147483647, %v1922
        %vm2612 = vcmp.eq.f32.partialorder %v2611, 8.507059e+37
        %v2613 = vand.u32 %v1922, 2147483648
        %v2614 = vor.u32 1.1754944e-38, %v2613
        %v2615 = vsel %vm2612, %v2614, %v2610
        %v2616 = vmul.f32 1.0, %v2615
        %v2617 = vrcp.pop %v1923
        %v2618 = vmul.f32 %v1923, %v2617
        %v2619 = vsub.f32 1.0, %v2618
        %v2620 = vmul.f32 %v2617, %v2619
        %v2621 = vadd.f32 %v2617, %v2620
        %vm2622 = vweird.f32 %v1923
        %vm2623 = vweird.f32 %v2617
        %vm2624 = vmor %vm2622, %vm2623
        %v2625 = vsel %vm2624, %v2617, %v2621
        %v2626 = vand.u32 2147483647, %v1923
        %vm2627 = vcmp.eq.f32.partialorder %v2626, 8.507059e+37
        %v2628 = vand.u32 %v1923, 2147483648
        %v2629 = vor.u32 1.1754944e-38, %v2628
        %v2630 = vsel %vm2627, %v2629, %v2625
        %v2631 = vmul.f32 1.0, %v2630
        %v2632 = vrcp.pop %v1924
        %v2633 = vmul.f32 %v1924, %v2632
        %v2634 = vsub.f32 1.0, %v2633
        %v2635 = vmul.f32 %v2632, %v2634
        %v2636 = vadd.f32 %v2632, %v2635
        %vm2637 = vweird.f32 %v1924
        %vm2638 = vweird.f32 %v2632
        %vm2639 = vmor %vm2637, %vm2638
        %v2640 = vsel %vm2639, %v2632, %v2636
        %v2641 = vand.u32 2147483647, %v1924
        %vm2642 = vcmp.eq.f32.partialorder %v2641, 8.507059e+37
        %v2643 = vand.u32 %v1924, 2147483648
        %v2644 = vor.u32 1.1754944e-38, %v2643
        %v2645 = vsel %vm2642, %v2644, %v2640
        %v2646 = vmul.f32 1.0, %v2645
        %v2647 = vrcp.pop %v1925
        %v2648 = vmul.f32 %v1925, %v2647
        %v2649 = vsub.f32 1.0, %v2648
        %v2650 = vmul.f32 %v2647, %v2649
        %v2651 = vadd.f32 %v2647, %v2650
        %vm2652 = vweird.f32 %v1925
        %vm2653 = vweird.f32 %v2647
        %vm2654 = vmor %vm2652, %vm2653
        %v2655 = vsel %vm2654, %v2647, %v2651
        %v2656 = vand.u32 2147483647, %v1925
        %vm2657 = vcmp.eq.f32.partialorder %v2656, 8.507059e+37
        %v2658 = vand.u32 %v1925, 2147483648
        %v2659 = vor.u32 1.1754944e-38, %v2658
        %v2660 = vsel %vm2657, %v2659, %v2655
        %v2661 = vmul.f32 1.0, %v2660
        %v2662 = vrcp.pop %v1926
        %v2663 = vmul.f32 %v1926, %v2662
        %v2664 = vsub.f32 1.0, %v2663
        %v2665 = vmul.f32 %v2662, %v2664
        %v2666 = vadd.f32 %v2662, %v2665
        %vm2667 = vweird.f32 %v1926
        %vm2668 = vweird.f32 %v2662
        %vm2669 = vmor %vm2667, %vm2668
        %v2670 = vsel %vm2669, %v2662, %v2666
        %v2671 = vand.u32 2147483647, %v1926
        %vm2672 = vcmp.eq.f32.partialorder %v2671, 8.507059e+37
        %v2673 = vand.u32 %v1926, 2147483648
        %v2674 = vor.u32 1.1754944e-38, %v2673
        %v2675 = vsel %vm2672, %v2674, %v2670
        %v2676 = vmul.f32 1.0, %v2675
        %v2677 = vrcp.pop %v1927
        %v2678 = vmul.f32 %v1927, %v2677
        %v2679 = vsub.f32 1.0, %v2678
        %v2680 = vmul.f32 %v2677, %v2679
        %v2681 = vadd.f32 %v2677, %v2680
        %vm2682 = vweird.f32 %v1927
        %vm2683 = vweird.f32 %v2677
        %vm2684 = vmor %vm2682, %vm2683
        %v2685 = vsel %vm2684, %v2677, %v2681
        %v2686 = vand.u32 2147483647, %v1927
        %vm2687 = vcmp.eq.f32.partialorder %v2686, 8.507059e+37
        %v2688 = vand.u32 %v1927, 2147483648
        %v2689 = vor.u32 1.1754944e-38, %v2688
        %v2690 = vsel %vm2687, %v2689, %v2685
        %v2691 = vmul.f32 1.0, %v2690
        %v2692 = vrcp.pop %v1928
        %v2693 = vmul.f32 %v1928, %v2692
        %v2694 = vsub.f32 1.0, %v2693
        %v2695 = vmul.f32 %v2692, %v2694
        %v2696 = vadd.f32 %v2692, %v2695
        %vm2697 = vweird.f32 %v1928
        %vm2698 = vweird.f32 %v2692
        %vm2699 = vmor %vm2697, %vm2698
        %v2700 = vsel %vm2699, %v2692, %v2696
        %v2701 = vand.u32 2147483647, %v1928
        %vm2702 = vcmp.eq.f32.partialorder %v2701, 8.507059e+37
        %v2703 = vand.u32 %v1928, 2147483648
        %v2704 = vor.u32 1.1754944e-38, %v2703
        %v2705 = vsel %vm2702, %v2704, %v2700
        %v2706 = vmul.f32 1.0, %v2705
        %v2707 = vrcp.pop %v1929
        %v2708 = vmul.f32 %v1929, %v2707
        %v2709 = vsub.f32 1.0, %v2708
        %v2710 = vmul.f32 %v2707, %v2709
        %v2711 = vadd.f32 %v2707, %v2710
        %vm2712 = vweird.f32 %v1929
        %vm2713 = vweird.f32 %v2707
        %vm2714 = vmor %vm2712, %vm2713
        %v2715 = vsel %vm2714, %v2707, %v2711
        %v2716 = vand.u32 2147483647, %v1929
        %vm2717 = vcmp.eq.f32.partialorder %v2716, 8.507059e+37
        %v2718 = vand.u32 %v1929, 2147483648
        %v2719 = vor.u32 1.1754944e-38, %v2718
        %v2720 = vsel %vm2717, %v2719, %v2715
        %v2721 = vmul.f32 1.0, %v2720
        %v2722 = vrcp.pop %v1930
        %v2723 = vmul.f32 %v1930, %v2722
        %v2724 = vsub.f32 1.0, %v2723
        %v2725 = vmul.f32 %v2722, %v2724
        %v2726 = vadd.f32 %v2722, %v2725
        %vm2727 = vweird.f32 %v1930
        %vm2728 = vweird.f32 %v2722
        %vm2729 = vmor %vm2727, %vm2728
        %v2730 = vsel %vm2729, %v2722, %v2726
        %v2731 = vand.u32 2147483647, %v1930
        %vm2732 = vcmp.eq.f32.partialorder %v2731, 8.507059e+37
        %v2733 = vand.u32 %v1930, 2147483648
        %v2734 = vor.u32 1.1754944e-38, %v2733
        %v2735 = vsel %vm2732, %v2734, %v2730
        %v2736 = vmul.f32 1.0, %v2735
        %v2737 = vrcp.pop %v1931
        %v2738 = vmul.f32 %v1931, %v2737
        %v2739 = vsub.f32 1.0, %v2738
        %v2740 = vmul.f32 %v2737, %v2739
        %v2741 = vadd.f32 %v2737, %v2740
        %vm2742 = vweird.f32 %v1931
        %vm2743 = vweird.f32 %v2737
        %vm2744 = vmor %vm2742, %vm2743
        %v2745 = vsel %vm2744, %v2737, %v2741
        %v2746 = vand.u32 2147483647, %v1931
        %vm2747 = vcmp.eq.f32.partialorder %v2746, 8.507059e+37
        %v2748 = vand.u32 %v1931, 2147483648
        %v2749 = vor.u32 1.1754944e-38, %v2748
        %v2750 = vsel %vm2747, %v2749, %v2745
        %v2751 = vmul.f32 1.0, %v2750
        %v2752 = vrcp.pop %v1932
        %v2753 = vmul.f32 %v1932, %v2752
        %v2754 = vsub.f32 1.0, %v2753
        %v2755 = vmul.f32 %v2752, %v2754
        %v2756 = vadd.f32 %v2752, %v2755
        %vm2757 = vweird.f32 %v1932
        %vm2758 = vweird.f32 %v2752
        %vm2759 = vmor %vm2757, %vm2758
        %v2760 = vsel %vm2759, %v2752, %v2756
        %v2761 = vand.u32 2147483647, %v1932
        %vm2762 = vcmp.eq.f32.partialorder %v2761, 8.507059e+37
        %v2763 = vand.u32 %v1932, 2147483648
        %v2764 = vor.u32 1.1754944e-38, %v2763
        %v2765 = vsel %vm2762, %v2764, %v2760
        %v2766 = vmul.f32 1.0, %v2765
        %v2767 = vrcp.pop %v1933
        %v2768 = vmul.f32 %v1933, %v2767
        %v2769 = vsub.f32 1.0, %v2768
        %v2770 = vmul.f32 %v2767, %v2769
        %v2771 = vadd.f32 %v2767, %v2770
        %vm2772 = vweird.f32 %v1933
        %vm2773 = vweird.f32 %v2767
        %vm2774 = vmor %vm2772, %vm2773
        %v2775 = vsel %vm2774, %v2767, %v2771
        %v2776 = vand.u32 2147483647, %v1933
        %vm2777 = vcmp.eq.f32.partialorder %v2776, 8.507059e+37
        %v2778 = vand.u32 %v1933, 2147483648
        %v2779 = vor.u32 1.1754944e-38, %v2778
        %v2780 = vsel %vm2777, %v2779, %v2775
        %v2781 = vmul.f32 1.0, %v2780
        %v2782 = vrcp.pop %v1934
        %v2783 = vmul.f32 %v1934, %v2782
        %v2784 = vsub.f32 1.0, %v2783
        %v2785 = vmul.f32 %v2782, %v2784
        %v2786 = vadd.f32 %v2782, %v2785
        %vm2787 = vweird.f32 %v1934
        %vm2788 = vweird.f32 %v2782
        %vm2789 = vmor %vm2787, %vm2788
        %v2790 = vsel %vm2789, %v2782, %v2786
        %v2791 = vand.u32 2147483647, %v1934
        %vm2792 = vcmp.eq.f32.partialorder %v2791, 8.507059e+37
        %v2793 = vand.u32 %v1934, 2147483648
        %v2794 = vor.u32 1.1754944e-38, %v2793
        %v2795 = vsel %vm2792, %v2794, %v2790
        %v2796 = vmul.f32 1.0, %v2795
        %v2797 = vrcp.pop %v1935
        %v2798 = vmul.f32 %v1935, %v2797
        %v2799 = vsub.f32 1.0, %v2798
        %v2800 = vmul.f32 %v2797, %v2799
        %v2801 = vadd.f32 %v2797, %v2800
        %vm2802 = vweird.f32 %v1935
        %vm2803 = vweird.f32 %v2797
        %vm2804 = vmor %vm2802, %vm2803
        %v2805 = vsel %vm2804, %v2797, %v2801
        %v2806 = vand.u32 2147483647, %v1935
        %vm2807 = vcmp.eq.f32.partialorder %v2806, 8.507059e+37
        %v2808 = vand.u32 %v1935, 2147483648
        %v2809 = vor.u32 1.1754944e-38, %v2808
        %v2810 = vsel %vm2807, %v2809, %v2805
        %v2811 = vmul.f32 1.0, %v2810
        %v2812 = vrcp.pop %v1936
        %v2813 = vmul.f32 %v1936, %v2812
        %v2814 = vsub.f32 1.0, %v2813
        %v2815 = vmul.f32 %v2812, %v2814
        %v2816 = vadd.f32 %v2812, %v2815
        %vm2817 = vweird.f32 %v1936
        %vm2818 = vweird.f32 %v2812
        %vm2819 = vmor %vm2817, %vm2818
        %v2820 = vsel %vm2819, %v2812, %v2816
        %v2821 = vand.u32 2147483647, %v1936
        %vm2822 = vcmp.eq.f32.partialorder %v2821, 8.507059e+37
        %v2823 = vand.u32 %v1936, 2147483648
        %v2824 = vor.u32 1.1754944e-38, %v2823
        %v2825 = vsel %vm2822, %v2824, %v2820
        %v2826 = vmul.f32 1.0, %v2825
        %v2827 = vrcp.pop %v1937
        %v2828 = vmul.f32 %v1937, %v2827
        %v2829 = vsub.f32 1.0, %v2828
        %v2830 = vmul.f32 %v2827, %v2829
        %v2831 = vadd.f32 %v2827, %v2830
        %vm2832 = vweird.f32 %v1937
        %vm2833 = vweird.f32 %v2827
        %vm2834 = vmor %vm2832, %vm2833
        %v2835 = vsel %vm2834, %v2827, %v2831
        %v2836 = vand.u32 2147483647, %v1937
        %vm2837 = vcmp.eq.f32.partialorder %v2836, 8.507059e+37
        %v2838 = vand.u32 %v1937, 2147483648
        %v2839 = vor.u32 1.1754944e-38, %v2838
        %v2840 = vsel %vm2837, %v2839, %v2835
        %v2841 = vmul.f32 1.0, %v2840
        %v2842 = vrcp.pop %v1938
        %v2843 = vmul.f32 %v1938, %v2842
        %v2844 = vsub.f32 1.0, %v2843
        %v2845 = vmul.f32 %v2842, %v2844
        %v2846 = vadd.f32 %v2842, %v2845
        %vm2847 = vweird.f32 %v1938
        %vm2848 = vweird.f32 %v2842
        %vm2849 = vmor %vm2847, %vm2848
        %v2850 = vsel %vm2849, %v2842, %v2846
        %v2851 = vand.u32 2147483647, %v1938
        %vm2852 = vcmp.eq.f32.partialorder %v2851, 8.507059e+37
        %v2853 = vand.u32 %v1938, 2147483648
        %v2854 = vor.u32 1.1754944e-38, %v2853
        %v2855 = vsel %vm2852, %v2854, %v2850
        %v2856 = vmul.f32 1.0, %v2855
        %v2857 = vrcp.pop %v1939
        %v2858 = vmul.f32 %v1939, %v2857
        %v2859 = vsub.f32 1.0, %v2858
        %v2860 = vmul.f32 %v2857, %v2859
        %v2861 = vadd.f32 %v2857, %v2860
        %vm2862 = vweird.f32 %v1939
        %vm2863 = vweird.f32 %v2857
        %vm2864 = vmor %vm2862, %vm2863
        %v2865 = vsel %vm2864, %v2857, %v2861
        %v2866 = vand.u32 2147483647, %v1939
        %vm2867 = vcmp.eq.f32.partialorder %v2866, 8.507059e+37
        %v2868 = vand.u32 %v1939, 2147483648
        %v2869 = vor.u32 1.1754944e-38, %v2868
        %v2870 = vsel %vm2867, %v2869, %v2865
        %v2871 = vmul.f32 1.0, %v2870
        %v2872 = vrcp.pop %v1940
        %v2873 = vmul.f32 %v1940, %v2872
        %v2874 = vsub.f32 1.0, %v2873
        %v2875 = vmul.f32 %v2872, %v2874
        %v2876 = vadd.f32 %v2872, %v2875
        %vm2877 = vweird.f32 %v1940
        %vm2878 = vweird.f32 %v2872
        %vm2879 = vmor %vm2877, %vm2878
        %v2880 = vsel %vm2879, %v2872, %v2876
        %v2881 = vand.u32 2147483647, %v1940
        %vm2882 = vcmp.eq.f32.partialorder %v2881, 8.507059e+37
        %v2883 = vand.u32 %v1940, 2147483648
        %v2884 = vor.u32 1.1754944e-38, %v2883
        %v2885 = vsel %vm2882, %v2884, %v2880
        %v2886 = vmul.f32 1.0, %v2885
        %v2887 = vrcp.pop %v1941
        %v2888 = vmul.f32 %v1941, %v2887
        %v2889 = vsub.f32 1.0, %v2888
        %v2890 = vmul.f32 %v2887, %v2889
        %v2891 = vadd.f32 %v2887, %v2890
        %vm2892 = vweird.f32 %v1941
        %vm2893 = vweird.f32 %v2887
        %vm2894 = vmor %vm2892, %vm2893
        %v2895 = vsel %vm2894, %v2887, %v2891
        %v2896 = vand.u32 2147483647, %v1941
        %vm2897 = vcmp.eq.f32.partialorder %v2896, 8.507059e+37
        %v2898 = vand.u32 %v1941, 2147483648
        %v2899 = vor.u32 1.1754944e-38, %v2898
        %v2900 = vsel %vm2897, %v2899, %v2895
        %v2901 = vmul.f32 1.0, %v2900
        %v2902 = vmul.f32 %v1622, %v1956
        %v2903 = vmul.f32 %v1623, %v1971
        %v2904 = vmul.f32 %v1624, %v1986
        %v2905 = vmul.f32 %v1625, %v2001
        %v2906 = vmul.f32 %v1626, %v2016
        %v2907 = vmul.f32 %v1627, %v2031
        %v2908 = vmul.f32 %v1628, %v2046
        %v2909 = vmul.f32 %v1629, %v2061
        %v2910 = vmul.f32 %v1630, %v2076
        %v2911 = vmul.f32 %v1631, %v2091
        %v2912 = vmul.f32 %v1632, %v2106
        %v2913 = vmul.f32 %v1633, %v2121
        %v2914 = vmul.f32 %v1634, %v2136
        %v2915 = vmul.f32 %v1635, %v2151
        %v2916 = vmul.f32 %v1636, %v2166
        %v2917 = vmul.f32 %v1637, %v2181
        %v2918 = vmul.f32 %v1638, %v2196
        %v2919 = vmul.f32 %v1639, %v2211
        %v2920 = vmul.f32 %v1640, %v2226
        %v2921 = vmul.f32 %v1641, %v2241
        %v2922 = vmul.f32 %v1642, %v2256
        %v2923 = vmul.f32 %v1643, %v2271
        %v2924 = vmul.f32 %v1644, %v2286
        %v2925 = vmul.f32 %v1645, %v2301
        %v2926 = vmul.f32 %v1646, %v2316
        %v2927 = vmul.f32 %v1647, %v2331
        %v2928 = vmul.f32 %v1648, %v2346
        %v2929 = vmul.f32 %v1649, %v2361
        %v2930 = vmul.f32 %v1650, %v2376
        %v2931 = vmul.f32 %v1651, %v2391
        %v2932 = vmul.f32 %v1652, %v2406
        %v2933 = vmul.f32 %v1653, %v2421
        %v2934 = vmul.f32 %v1654, %v2436
        %v2935 = vmul.f32 %v1655, %v2451
        %v2936 = vmul.f32 %v1656, %v2466
        %v2937 = vmul.f32 %v1657, %v2481
        %v2938 = vmul.f32 %v1658, %v2496
        %v2939 = vmul.f32 %v1659, %v2511
        %v2940 = vmul.f32 %v1660, %v2526
        %v2941 = vmul.f32 %v1661, %v2541
        %v2942 = vmul.f32 %v1662, %v2556
        %v2943 = vmul.f32 %v1663, %v2571
        %v2944 = vmul.f32 %v1664, %v2586
        %v2945 = vmul.f32 %v1665, %v2601
        %v2946 = vmul.f32 %v1666, %v2616
        %v2947 = vmul.f32 %v1667, %v2631
        %v2948 = vmul.f32 %v1668, %v2646
        %v2949 = vmul.f32 %v1669, %v2661
        %v2950 = vmul.f32 %v1670, %v2676
        %v2951 = vmul.f32 %v1671, %v2691
        %v2952 = vmul.f32 %v1672, %v2706
        %v2953 = vmul.f32 %v1673, %v2721
        %v2954 = vmul.f32 %v1674, %v2736
        %v2955 = vmul.f32 %v1675, %v2751
        %v2956 = vmul.f32 %v1676, %v2766
        %v2957 = vmul.f32 %v1677, %v2781
        %v2958 = vmul.f32 %v1678, %v2796
        %v2959 = vmul.f32 %v1679, %v2811
        %v2960 = vmul.f32 %v1680, %v2826
        %v2961 = vmul.f32 %v1681, %v2841
        %v2962 = vmul.f32 %v1682, %v2856
        %v2963 = vmul.f32 %v1683, %v2871
        %v2964 = vmul.f32 %v1684, %v2886
        %v2965 = vmul.f32 %v1685, %v2901
        %2966 = vst [vmem:[%s218] sm:$0xff] %v2902
        %2967 = vst [vmem:[%s218 + $0x8] sm:$0xff] %v2903
        %2968 = vst [vmem:[%s218 + $0x10] sm:$0xff] %v2904
        %2969 = vst [vmem:[%s218 + $0x18] sm:$0xff] %v2905
        %2970 = vst [vmem:[%s218 + $0x20] sm:$0xff] %v2906
        %2971 = vst [vmem:[%s218 + $0x28] sm:$0xff] %v2907
        %2972 = vst [vmem:[%s218 + $0x30] sm:$0xff] %v2908
        %2973 = vst [vmem:[%s218 + $0x38] sm:$0xff] %v2909
        %2974 = vst [vmem:[%s218 + $0x40] sm:$0xff] %v2910
        %2975 = vst [vmem:[%s218 + $0x48] sm:$0xff] %v2911
        %2976 = vst [vmem:[%s218 + $0x50] sm:$0xff] %v2912
        %2977 = vst [vmem:[%s218 + $0x58] sm:$0xff] %v2913
        %2978 = vst [vmem:[%s218 + $0x60] sm:$0xff] %v2914
        %2979 = vst [vmem:[%s218 + $0x68] sm:$0xff] %v2915
        %2980 = vst [vmem:[%s218 + $0x70] sm:$0xff] %v2916
        %2981 = vst [vmem:[%s218 + $0x78] sm:$0xff] %v2917
        %2982 = vst [vmem:[%s218 + $0x80] sm:$0xff] %v2918
        %2983 = vst [vmem:[%s218 + $0x88] sm:$0xff] %v2919
        %2984 = vst [vmem:[%s218 + $0x90] sm:$0xff] %v2920
        %2985 = vst [vmem:[%s218 + $0x98] sm:$0xff] %v2921
        %2986 = vst [vmem:[%s218 + $0xa0] sm:$0xff] %v2922
        %2987 = vst [vmem:[%s218 + $0xa8] sm:$0xff] %v2923
        %2988 = vst [vmem:[%s218 + $0xb0] sm:$0xff] %v2924
        %2989 = vst [vmem:[%s218 + $0xb8] sm:$0xff] %v2925
        %2990 = vst [vmem:[%s218 + $0xc0] sm:$0xff] %v2926
        %2991 = vst [vmem:[%s218 + $0xc8] sm:$0xff] %v2927
        %2992 = vst [vmem:[%s218 + $0xd0] sm:$0xff] %v2928
        %2993 = vst [vmem:[%s218 + $0xd8] sm:$0xff] %v2929
        %2994 = vst [vmem:[%s218 + $0xe0] sm:$0xff] %v2930
        %2995 = vst [vmem:[%s218 + $0xe8] sm:$0xff] %v2931
        %2996 = vst [vmem:[%s218 + $0xf0] sm:$0xff] %v2932
        %2997 = vst [vmem:[%s218 + $0xf8] sm:$0xff] %v2933
        %2998 = vst [vmem:[%s218 + $0x100] sm:$0xff] %v2934
        %2999 = vst [vmem:[%s218 + $0x108] sm:$0xff] %v2935
        %3000 = vst [vmem:[%s218 + $0x110] sm:$0xff] %v2936
        %3001 = vst [vmem:[%s218 + $0x118] sm:$0xff] %v2937
        %3002 = vst [vmem:[%s218 + $0x120] sm:$0xff] %v2938
        %3003 = vst [vmem:[%s218 + $0x128] sm:$0xff] %v2939
        %3004 = vst [vmem:[%s218 + $0x130] sm:$0xff] %v2940
        %3005 = vst [vmem:[%s218 + $0x138] sm:$0xff] %v2941
        %3006 = vst [vmem:[%s218 + $0x140] sm:$0xff] %v2942
        %3007 = vst [vmem:[%s218 + $0x148] sm:$0xff] %v2943
        %3008 = vst [vmem:[%s218 + $0x150] sm:$0xff] %v2944
        %3009 = vst [vmem:[%s218 + $0x158] sm:$0xff] %v2945
        %3010 = vst [vmem:[%s218 + $0x160] sm:$0xff] %v2946
        %3011 = vst [vmem:[%s218 + $0x168] sm:$0xff] %v2947
        %3012 = vst [vmem:[%s218 + $0x170] sm:$0xff] %v2948
        %3013 = vst [vmem:[%s218 + $0x178] sm:$0xff] %v2949
        %3014 = vst [vmem:[%s218 + $0x180] sm:$0xff] %v2950
        %3015 = vst [vmem:[%s218 + $0x188] sm:$0xff] %v2951
        %3016 = vst [vmem:[%s218 + $0x190] sm:$0xff] %v2952
        %3017 = vst [vmem:[%s218 + $0x198] sm:$0xff] %v2953
        %3018 = vst [vmem:[%s218 + $0x1a0] sm:$0xff] %v2954
        %3019 = vst [vmem:[%s218 + $0x1a8] sm:$0xff] %v2955
        %3020 = vst [vmem:[%s218 + $0x1b0] sm:$0xff] %v2956
        %3021 = vst [vmem:[%s218 + $0x1b8] sm:$0xff] %v2957
        %3022 = vst [vmem:[%s218 + $0x1c0] sm:$0xff] %v2958
        %3023 = vst [vmem:[%s218 + $0x1c8] sm:$0xff] %v2959
        %3024 = vst [vmem:[%s218 + $0x1d0] sm:$0xff] %v2960
        %3025 = vst [vmem:[%s218 + $0x1d8] sm:$0xff] %v2961
        %3026 = vst [vmem:[%s218 + $0x1e0] sm:$0xff] %v2962
        %3027 = vst [vmem:[%s218 + $0x1e8] sm:$0xff] %v2963
        %3028 = vst [vmem:[%s218 + $0x1f0] sm:$0xff] %v2964
        %3029 = vst [vmem:[%s218 + $0x1f8] sm:$0xff] %v2965
        %s3030 = sand.u32 %s137, 1
        %s3031 = scalar_lea.sflag [#allocation3], %s3030
        %s3032 = sand.u32 %s137, 1
        %s3033 = smul.addr %s3032, 512
        %s3034 = scalar_lea.vmem [#allocation2], %s3033
        // Predicated region
        $region41: #{tpu_custom_call.1} parent=39 // pred_check
          %p3035 = pneg %p147
        $region42: #{tpu_custom_call.1} parent=39 // pred_check_branch
          %3037 = sbr.rel (%p3035) target = $region44
        $region43: #{tpu_custom_call.1} parent=39 // pred_region
          %s3038 = smul.u32 32, %s19
          %3040 = vsyncadd %s3031, 0
          %s3041 = smul.addr %s3038, 2
          %s3042 = smul.addr %s3041, 8
          %s3043 = scalar_lea.hbm %s5, %s3042
          %s3044 = sshll.u32 %s3034, 4
          %s3045 = int_to_ptr.vmem [resolvable:$true] %s3044
          %s3046 = sshll.u32 %s3043, 4
          %s3047 = int_to_ptr.hbm [resolvable:$true] %s3046
          %3052 = dma.vmem_to_hbm [thread:$0]  %s3045, 8192, %s3047, %s3031, 256, 256, 16
        $region44: #{tpu_custom_call.1} parent=39 // pred_fallthru
          _
      $region40: #{tpu_custom_call.1} parent=5 // pred_fallthru
        _
      %p3053 = scmp.le.s32.totalorder 2, %s14
      // Predicated region
      $region45: #{tpu_custom_call.1} parent=5 // pred_check
        %p3054 = pneg %p3053
      $region46: #{tpu_custom_call.1} parent=5 // pred_check_branch
        %3056 = sbr.rel (%p3054) target = $region48
      $region47: #{tpu_custom_call.1} parent=5 // pred_region
        %s3057 = ssub.s32 %s14, 2
        // Predicated region
        $region49: #{tpu_custom_call.1} parent=47 // pred_check
          %p3058 = pneg %p153
        $region50: #{tpu_custom_call.1} parent=47 // pred_check_branch
          %3060 = sbr.rel (%p3058) target = $region52
        $region51: #{tpu_custom_call.1} parent=47 // pred_region
          %s3061 = sand.u32 %s138, 1
          %s3062 = scalar_lea.sflag [#allocation3], %s3061
          %s3063 = sand.u32 %s138, 1
          %s3064 = smul.addr %s3063, 512
          %s3065 = scalar_lea.vmem [#allocation2], %s3064
          %3067 = dma.done %s3062, 8192
        $region52: #{tpu_custom_call.1} parent=47 // pred_fallthru
          _
      $region48: #{tpu_custom_call.1} parent=5 // pred_fallthru
        _
    $region6: #{tpu_custom_call.1} parent=1 // loop_footer
      %s18 = sadd.s32 1, %s14
    $region7: #{tpu_custom_call.1} parent=1 // loop_footer_branch
      %13 = sbr.rel target = $region3
    $region8: #{tpu_custom_call.1} parent=1 // loop_exit
      _
    %3068 = vsyncpa [#allocation3], 1
    %s3069 = scalar_lea.sflag [#allocation3], 1
    %3070 = vsyncpa %s3069, 1

</llo_original>
